<compile_context>
chip_gen: v6e
topology: v6e:2x2x1
jax: 0.10.0
libtpu: 0.0.40
codegen_flags: <defaults>
</compile_context>

<pallas_src>
import functools

import numpy as np
import jax
import jax.numpy as jnp
from jax.experimental import pallas as pl
from jax.experimental.pallas import tpu as pltpu

_VMEM_LIMIT = 32 * 1024 * 1024  # explicit scoped-VMEM limit (headroom on all gens)


# --------------------------- in-kernel helpers ------------------------------

def _erf(x):
    # Abramowitz & Stegun 7.1.26 (|abs err| < 1.5e-7 ~ f32 eps); only ops with
    # guaranteed Mosaic lowerings (abs / exp / div / where).
    a1, a2, a3, a4, a5 = (0.254829592, -0.284496736, 1.421413741,
                          -1.453152027, 1.061405429)
    p = 0.3275911
    ax = jnp.abs(x)
    t = 1.0 / (1.0 + p * ax)
    poly = ((((a5 * t + a4) * t + a3) * t + a2) * t + a1) * t
    y = 1.0 - poly * jnp.exp(-ax * ax)
    return jnp.where(x >= 0, y, -y)


def _gelu(x):
    # exact (erf-form) GELU, as in nn.GELU()
    return 0.5 * x * (1.0 + _erf(x * 0.7071067811865476))


def _ln(x, g, b, eps):
    mu = jnp.mean(x, axis=-1, keepdims=True)
    xc = x - mu
    var = jnp.mean(xc * xc, axis=-1, keepdims=True)
    return xc * jax.lax.rsqrt(var + eps) * g + b


def _mm(a, b):
    return jnp.dot(a, b, preferred_element_type=jnp.float32)


def _mm_t(a, b):
    # a @ b.T without materializing the transpose
    return jax.lax.dot_general(a, b, (((1,), (1,)), ((), ())),
                               preferred_element_type=jnp.float32)


# ------------------------------ Pallas kernels ------------------------------

def _embed_kernel(x_ref, w_ref, b_ref, add_ref, o_ref):
    # x: (L, Ci*p*p) im2col patches for one batch element (z and x streams
    # already concatenated along tokens); add: positional + token-type term.
    o_ref[...] = (_mm(x_ref[...].astype(jnp.bfloat16), w_ref[...])
                  + b_ref[...] + add_ref[...])


def _eva_blocks_kernel(x_ref, cos_ref, sin_ref,
                       n1g_ref, n1b_ref, qkvw_ref, qkvb_ref,
                       projw_ref, projb_ref,
                       n2g_ref, n2b_ref, fc1w_ref, fc1b_ref,
                       fc2w_ref, fc2b_ref,
                       o_ref, carry, *, H, D, eps):
    """All EVA blocks for one batch element; grid = (batch, depth).

    `carry` is a persistent VMEM scratch holding the running (L, C) feature
    map across the depth ("arbitrary") grid axis.  qkv_w is pre-transposed
    (C, 3C), q/k columns per head permuted to [even | odd] and the attention
    scale folded into the q columns, so RoPE is a dense elementwise pass and
    the per-head score is a single K=D contraction.
    """
    d = pl.program_id(1)
    C = H * D
    half = D // 2
    bf16 = jnp.bfloat16

    @pl.when(d == 0)
    def _():
        carry[...] = x_ref[...]

    x = carry[...]                                         # (L, C) f32
    cos = cos_ref[...]                                     # (L, C)
    sinm = sin_ref[...]                                    # (L, C), [-sin|+sin] per head

    # ---- attention ----
    h = _ln(x, n1g_ref[...], n1b_ref[...], eps)
    qkv = _mm(h.astype(bf16), qkvw_ref[...]) + qkvb_ref[...]   # (L, 3C) f32

    q = qkv[:, :C]
    k = qkv[:, C:2 * C]
    v = qkv[:, 2 * C:].astype(bf16)

    def rot(t):
        # swap the [even | odd] halves within each head chunk, then one dense
        # f32 rotation over the whole (L, C) slab (timm apply_rot_embed_cat).
        sw = jnp.concatenate(
            [jnp.concatenate([t[:, hh * D + half:(hh + 1) * D],
                              t[:, hh * D:hh * D + half]], axis=-1)
             for hh in range(H)], axis=-1)
        return t * cos + sw * sinm

    qr = rot(q).astype(bf16)
    kr = rot(k).astype(bf16)

    # TODO(synk): at production B*H replace this static loop with
    # lax.fori_loop(..., unroll=k) to cap vreg live ranges.
    attn = jnp.zeros((x.shape[0], C), jnp.float32)
    for hh in range(H):
        cs = slice(hh * D, (hh + 1) * D)
        s = _mm_t(qr[:, cs], kr[:, cs])                    # (L, L), scale pre-folded
        m = jnp.max(s, axis=-1, keepdims=True)
        p = jnp.exp(s - m)
        denom = jnp.sum(p, axis=-1, keepdims=True)
        o_h = _mm(p.astype(bf16), v[:, cs]) * pl.reciprocal(denom, approx=True)
        # fused per-head output projection (keeps every store lane-dense)
        attn = attn + _mm(o_h.astype(bf16), projw_ref[cs, :])
    x = x + attn + projb_ref[...]

    # ---- MLP ----
    # TODO(synk): at ViT-B scale stream fc1/fc2 over a K/N chunk axis
    # (pipeline_mode=pl.Buffered(2)) instead of keeping them fully resident.
    h = _ln(x, n2g_ref[...], n2b_ref[...], eps)
    h = _gelu(_mm(h.astype(bf16), fc1w_ref[...]) + fc1b_ref[...])
    x = x + _mm(h.astype(bf16), fc2w_ref[...]) + fc2b_ref[...]

    carry[...] = x

    @pl.when(d == pl.num_programs(1) - 1)
    def _():
        o_ref[...] = x


def _head_kernel(x_ref, ng_ref, nb_ref, fc1w_ref, fc1b_ref, o_ref, *, eps):
    # final LayerNorm + merged score/bbox fc1 + erf-GELU; lane-dense (L_x, 2C)
    # output.  The tiny (2C -> 5) fc2 + sigmoid epilogue runs in XLA glue.
    h = _ln(x_ref[...], ng_ref[...], nb_ref[...], eps)
    o_ref[...] = _gelu(_mm(h.astype(jnp.bfloat16), fc1w_ref[...]) + fc1b_ref[...])


# ------------------------------- glue / model -------------------------------

def rope_sin_cos_half(feat_shape, head_dim, ref_feat_shape, temperature=10000.0):
    """timm RotaryEmbeddingCat(in_pixels=False) 'half' sin/cos, (H*W, head_dim//2)."""
    num_bands = head_dim // 4
    exps = jnp.arange(num_bands, dtype=jnp.float32) / num_bands
    bands = 1.0 / (temperature ** exps)
    t = [jnp.arange(s, dtype=jnp.float32) / s * r
         for s, r in zip(feat_shape, ref_feat_shape)]
    grid = jnp.stack(jnp.meshgrid(*t, indexing='ij'), axis=-1)     # (H, W, 2)
    pos = grid[..., None] * bands                                  # (H, W, 2, nb)
    sin = jnp.sin(pos).reshape(-1, 2 * num_bands)
    cos = jnp.cos(pos).reshape(-1, 2 * num_bands)
    return sin, cos


def _im2col(img, patch):
    """Conv2d(patch, stride=patch) input rearrangement (pure data movement)."""
    N, Ci, H, W = img.shape
    gh, gw = H // patch, W // patch
    x = img.reshape(N, Ci, gh, patch, gw, patch)
    return jnp.transpose(x, (0, 2, 4, 1, 3, 5)).reshape(N, gh * gw,
                                                        Ci * patch * patch)


def prepare_params(p, num_heads):
    """One-time weight prep: (K, N) transposes, bf16 weight casts, q/k even/odd
    column permutation (gather-free in-kernel RoPE), attention scale folded
    into the q columns, per-depth weight stacking for the fused trunk kernel."""
    C = p['pos_embed'].shape[-1]
    D = C // num_heads
    scale = D ** -0.5
    head_perm = np.concatenate([np.arange(0, D, 2), np.arange(1, D, 2)])
    qk_perm = np.concatenate([h * D + head_perm for h in range(num_heads)])
    col_perm = np.concatenate([qk_perm, C + qk_perm, 2 * C + np.arange(C)])

    out = {
        'patch_w': jnp.transpose(
            p['patch_w'].reshape(p['patch_w'].shape[0], -1)).astype(jnp.bfloat16),
        'patch_b': p['patch_b'].reshape(1, C),
        'pos_embed': p['pos_embed'],
        'token_type_embed': p['token_type_embed'],
        'norm_g': p['norm_g'].reshape(1, C),
        'norm_b': p['norm_b'].reshape(1, C),
    }

    def prep_block(blk):
        qkv_w = jnp.transpose(blk['qkv_w'])[:, col_perm]          # (C, 3C)
        # EVA fused qkv bias = cat(q_bias, zeros (k has no bias), v_bias)
        qkv_b = jnp.concatenate([blk['q_bias'],
                                 jnp.zeros((C,), jnp.float32),
                                 blk['v_bias']])[col_perm]
        # fold the attention scale into the q columns (RoPE commutes with it)
        q_scale = jnp.concatenate([jnp.full((C,), scale, jnp.float32),
                                   jnp.ones((2 * C,), jnp.float32)])
        qkv_w = qkv_w * q_scale[None, :]
        qkv_b = qkv_b * q_scale
        return dict(
            norm1_g=blk['norm1_g'].reshape(1, C),
            norm1_b=blk['norm1_b'].reshape(1, C),
            qkv_w=qkv_w.astype(jnp.bfloat16),
            qkv_b=qkv_b.reshape(1, 3 * C),
            proj_w=jnp.transpose(blk['proj_w']).astype(jnp.bfloat16),
            proj_b=blk['proj_b'].reshape(1, C),
            norm2_g=blk['norm2_g'].reshape(1, C),
            norm2_b=blk['norm2_b'].reshape(1, C),
            fc1_w=jnp.transpose(blk['fc1_w']).astype(jnp.bfloat16),
            fc1_b=blk['fc1_b'].reshape(1, -1),
            fc2_w=jnp.transpose(blk['fc2_w']).astype(jnp.bfloat16),
            fc2_b=blk['fc2_b'].reshape(1, C),
        )

    prepped = [prep_block(b) for b in p['blocks']]
    out['blocks'] = {k: jnp.stack([b[k] for b in prepped], axis=0)
                     for k in prepped[0]}

    hd = p['head']
    out['head'] = {
        'fc1_w': jnp.concatenate([jnp.transpose(hd['score_fc1_w']),
                                  jnp.transpose(hd['bbox_fc1_w'])],
                                 axis=1).astype(jnp.bfloat16),     # (C, 2C)
        'fc1_b': jnp.concatenate([hd['score_fc1_b'],
                                  hd['bbox_fc1_b']]).reshape(1, 2 * C),
        'score_fc2_w': jnp.transpose(hd['score_fc2_w']),           # (C, 1)
        'score_fc2_b': hd['score_fc2_b'],
        'bbox_fc2_w': jnp.transpose(hd['bbox_fc2_w']),             # (C, 4)
        'bbox_fc2_b': hd['bbox_fc2_b'],
    }
    return out


@functools.partial(jax.jit, static_argnames=('z_size', 'x_size', 'grid_size',
                                             'patch', 'num_heads',
                                             'ref_feat_shape'))
def lorat_forward(params, z, x, z_feat_mask, *, z_size, x_size, grid_size,
                  patch, num_heads, ref_feat_shape=(8, 8)):
    C = params['pos_embed'].shape[-1]
    N = z.shape[0]
    D = C // num_heads
    z_W, z_H = z_size
    x_W, x_H = x_size
    L_z, L_x = z_H * z_W, x_H * x_W
    L = L_z + L_x

    pos = params['pos_embed'].reshape(1, grid_size[1], grid_size[0], C)
    z_pos = pos[:, :z_H, :z_W, :].reshape(1, L_z, C)
    x_pos = pos[:, :x_H, :x_W, :].reshape(1, L_x, C)

    # additive term per token (positional + token-type embedding) — XLA glue
    z_add = z_pos + jnp.take(params['token_type_embed'],
                             z_feat_mask.reshape(N, -1), axis=0)
    x_add = jnp.broadcast_to(x_pos + params['token_type_embed'][2][None, None, :],
                             (N, L_x, C))
    add = jnp.concatenate([z_add, x_add], axis=1).reshape(N * L, C)

    # batched patch embedding (z and x streams in one matmul, batch-parallel)
    cols = jnp.concatenate([_im2col(z, patch), _im2col(x, patch)],
                           axis=1).reshape(N * L, -1)
    Kin = cols.shape[-1]
    feat = pl.pallas_call(
        _embed_kernel,
        grid=(N,),
        in_specs=[pl.BlockSpec((L, Kin), lambda n: (n, 0)),
                  pl.BlockSpec((Kin, C), lambda n: (0, 0)),
                  pl.BlockSpec((1, C), lambda n: (0, 0)),
                  pl.BlockSpec((L, C), lambda n: (n, 0))],
        out_specs=pl.BlockSpec((L, C), lambda n: (n, 0)),
        out_shape=jax.ShapeDtypeStruct((N * L, C), jnp.float32),
        compiler_params=pltpu.CompilerParams(
            dimension_semantics=("parallel",), vmem_limit_bytes=_VMEM_LIMIT),
    )(cols, params['patch_w'], params['patch_b'], add)

    # RoPE tables, pre-tiled to (L, C) in the per-head [even | odd] layout
    sin_z, cos_z = rope_sin_cos_half((z_H, z_W), D, ref_feat_shape)
    sin_x, cos_x = rope_sin_cos_half((x_H, x_W), D, ref_feat_shape)
    sin_half = jnp.concatenate([sin_z, sin_x], axis=0)       # (L, D//2)
    cos_half = jnp.concatenate([cos_z, cos_x], axis=0)
    cos_full = jnp.tile(jnp.concatenate([cos_half, cos_half], axis=-1),
                        (1, num_heads))                      # (L, C)
    sin_signed = jnp.tile(jnp.concatenate([-sin_half, sin_half], axis=-1),
                          (1, num_heads))                    # (L, C)

    # fused trunk: one pallas_call, grid = (batch, depth), VMEM-carried feat
    blkp = params['blocks']
    depth = blkp['qkv_w'].shape[0]
    hidden = blkp['fc1_w'].shape[-1]

    def wspec(a, b):
        return pl.BlockSpec((None, a, b), lambda n, d: (d, 0, 0))

    feat = pl.pallas_call(
        functools.partial(_eva_blocks_kernel, H=num_heads, D=D, eps=1e-6),
        grid=(N, depth),
        in_specs=[
            pl.BlockSpec((L, C), lambda n, d: (n, 0)),       # feat (read at d==0)
            pl.BlockSpec((L, C), lambda n, d: (0, 0)),       # cos
            pl.BlockSpec((L, C), lambda n, d: (0, 0)),       # signed sin
            wspec(1, C), wspec(1, C),                        # norm1 g/b
            wspec(C, 3 * C), wspec(1, 3 * C),                # qkv w/b
            wspec(C, C), wspec(1, C),                        # proj w/b
            wspec(1, C), wspec(1, C),                        # norm2 g/b
            wspec(C, hidden), wspec(1, hidden),              # fc1 w/b
            wspec(hidden, C), wspec(1, C),                   # fc2 w/b
        ],
        out_specs=pl.BlockSpec((L, C), lambda n, d: (n, 0)),
        out_shape=jax.ShapeDtypeStruct((N * L, C), jnp.float32),
        scratch_shapes=[pltpu.VMEM((L, C), jnp.float32)],
        compiler_params=pltpu.CompilerParams(
            dimension_semantics=("parallel", "arbitrary"),
            vmem_limit_bytes=_VMEM_LIMIT),
    )(feat, cos_full, sin_signed,
      blkp['norm1_g'], blkp['norm1_b'], blkp['qkv_w'], blkp['qkv_b'],
      blkp['proj_w'], blkp['proj_b'], blkp['norm2_g'], blkp['norm2_b'],
      blkp['fc1_w'], blkp['fc1_b'], blkp['fc2_w'], blkp['fc2_b'])

    # final norm + merged fc1/GELU over the search-region tokens only
    xf = feat.reshape(N, L, C)[:, L_z:, :].reshape(N * L_x, C)
    hd = params['head']
    hid = pl.pallas_call(
        functools.partial(_head_kernel, eps=1e-6),
        grid=(N,),
        in_specs=[pl.BlockSpec((L_x, C), lambda n: (n, 0)),
                  pl.BlockSpec((1, C), lambda n: (0, 0)),
                  pl.BlockSpec((1, C), lambda n: (0, 0)),
                  pl.BlockSpec((C, 2 * C), lambda n: (0, 0)),
                  pl.BlockSpec((1, 2 * C), lambda n: (0, 0))],
        out_specs=pl.BlockSpec((L_x, 2 * C), lambda n: (n, 0)),
        out_shape=jax.ShapeDtypeStruct((N * L_x, 2 * C), jnp.float32),
        compiler_params=pltpu.CompilerParams(
            dimension_semantics=("parallel",), vmem_limit_bytes=_VMEM_LIMIT),
    )(xf, params['norm_g'], params['norm_b'], hd['fc1_w'], hd['fc1_b'])

    # tiny (2C -> 5) fc2 + sigmoid epilogue in XLA glue (avoids 5-lane stores)
    score = hid[:, :C] @ hd['score_fc2_w'] + hd['score_fc2_b']
    bbox = jax.nn.sigmoid(hid[:, C:] @ hd['bbox_fc2_w'] + hd['bbox_fc2_b'])

    # TODO(synk): exact MlpAnchorFreeHead anchor-free box decoding / output dict
    # format approximated (raw score map + sigmoid box map).
    score_map = score[:, 0].reshape(N, x_H, x_W)
    bbox_map = bbox.reshape(N, x_H, x_W, 4)
    return score_map, bbox_map


# -------------------------------- parameters --------------------------------

def init_params(key, *, embed_dim=32, num_heads=2, depth=2, mlp_ratio=4,
                in_chans=3, patch=4, grid=(8, 8)):
    C = embed_dim
    hidden = C * mlp_ratio

    def nrm(k, shape, std=0.02):
        return std * jax.random.normal(k, shape, jnp.float32)

    keys = iter(jax.random.split(key, 64))
    p = {}
    p['patch_w'] = nrm(next(keys), (C, in_chans, patch, patch))
    p['patch_b'] = nrm(next(keys), (C,))
    p['pos_embed'] = nrm(next(keys), (1, grid[0] * grid[1], C))
    p['token_type_embed'] = nrm(next(keys), (3, C))
    blocks = []
    for _ in range(depth):
        blocks.append({
            'norm1_g': jnp.ones((C,), jnp.float32),
            'norm1_b': jnp.zeros((C,), jnp.float32),
            'qkv_w': nrm(next(keys), (3 * C, C)),
            'q_bias': nrm(next(keys), (C,)),
            'v_bias': nrm(next(keys), (C,)),
            'proj_w': nrm(next(keys), (C, C)),
            'proj_b': nrm(next(keys), (C,)),
            'norm2_g': jnp.ones((C,), jnp.float32),
            'norm2_b': jnp.zeros((C,), jnp.float32),
            'fc1_w': nrm(next(keys), (hidden, C)),
            'fc1_b': nrm(next(keys), (hidden,)),
            'fc2_w': nrm(next(keys), (C, hidden)),
            'fc2_b': nrm(next(keys), (C,)),
        })
    p['blocks'] = blocks
    p['norm_g'] = jnp.ones((C,), jnp.float32)
    p['norm_b'] = jnp.zeros((C,), jnp.float32)
    head = {}
    for name, out_dim in (('score', 1), ('bbox', 4)):
        head[f'{name}_fc1_w'] = nrm(next(keys), (C, C))
        head[f'{name}_fc1_b'] = nrm(next(keys), (C,))
        head[f'{name}_fc2_w'] = nrm(next(keys), (out_dim, C))
        head[f'{name}_fc2_b'] = nrm(next(keys), (out_dim,))
    p['head'] = head
    return p


# ----------------------------------- main ------------------------------------

if __name__ == "__main__":
    key = jax.random.PRNGKey(0)
    k_p, k_z, k_x = jax.random.split(key, 3)

    patch = 4
    z_size = (4, 4)     # (W, H) template feature-map size
    x_size = (8, 8)     # (W, H) search-region feature-map size
    grid_size = (8, 8)  # backbone patch-embed grid
    embed_dim = 32
    num_heads = 2
    depth = 2

    raw_params = init_params(k_p, embed_dim=embed_dim, num_heads=num_heads,
                             depth=depth, in_chans=3, patch=patch,
                             grid=grid_size)
    params = prepare_params(raw_params, num_heads)   # one-time weight prep

    z = jax.random.normal(k_z, (2, 3, z_size[1] * patch, z_size[0] * patch),
                          jnp.float32)                         # (2, 3, 16, 16)
    x = jax.random.normal(k_x, (2, 3, x_size[1] * patch, x_size[0] * patch),
                          jnp.float32)                         # (2, 3, 32, 32)
    z_feat_mask = jnp.zeros((2, z_size[1], z_size[0]),
                            jnp.int32).at[:, 1:3, 1:3].set(1)  # (2, 4, 4)

    score_map, bbox_map = lorat_forward(
        params, z, x, z_feat_mask, z_size=z_size, x_size=x_size,
        grid_size=grid_size, patch=patch, num_heads=num_heads)
    jax.block_until_ready((score_map, bbox_map))
    assert score_map.shape == (2, x_size[1], x_size[0])
    assert bbox_map.shape == (2, x_size[1], x_size[0], 4)
    print("KERNEL_OK")
</pallas_src>

<mosaic_0001>
module attributes {stable_mosaic.version = 11 : i64} {
  func.func @_embed_kernel(%arg0: i32, %arg1: memref<80x48xf32, #tpu.memory_space<vmem>>, %arg2: memref<48x32xbf16, #tpu.memory_space<vmem>>, %arg3: memref<1x32xf32, #tpu.memory_space<vmem>>, %arg4: memref<80x32xf32, #tpu.memory_space<vmem>>, %arg5: memref<80x32xf32, #tpu.memory_space<vmem>>) attributes {dimension_semantics = [#tpu.dimension_semantics<parallel>], iteration_bounds = array<i64: 2>, scalar_prefetch = 0 : i64, scratch_operands = 0 : i64, tpu.core_type = #tpu.core_type<tc>, window_params = [{transform_indices = @transform_0, window_bounds = array<i64: 80, 48>}, {pipeline_mode = #tpu.pipeline_mode<synchronous>, transform_indices = @transform_1, window_bounds = array<i64: 48, 32>}, {pipeline_mode = #tpu.pipeline_mode<synchronous>, transform_indices = @transform_2, window_bounds = array<i64: 1, 32>}, {transform_indices = @transform_3, window_bounds = array<i64: 80, 32>}, {transform_indices = @transform_4, window_bounds = array<i64: 80, 32>}]} {
    %c0 = arith.constant 0 : index
    %c0_0 = arith.constant 0 : index
    %0 = vector.load %arg1[%c0, %c0_0] : memref<80x48xf32, #tpu.memory_space<vmem>>, vector<80x48xf32>
    %1 = arith.truncf %0 : vector<80x48xf32> to vector<80x48xbf16>
    %c0_1 = arith.constant 0 : index
    %c0_2 = arith.constant 0 : index
    %2 = vector.load %arg2[%c0_1, %c0_2] : memref<48x32xbf16, #tpu.memory_space<vmem>>, vector<48x32xbf16>
    %cst = arith.constant dense<0.000000e+00> : vector<80x32xf32>
    %3 = tpu.matmul %1, %2, %cst {dimension_numbers = #tpu.dot_dimension_numbers<[1], [0], [0], [1], [0, 0, 1, 1], [], []>} : vector<80x48xbf16>, vector<48x32xbf16>, vector<80x32xf32> -> vector<80x32xf32>
    %c0_3 = arith.constant 0 : index
    %c0_4 = arith.constant 0 : index
    %4 = vector.load %arg3[%c0_3, %c0_4] : memref<1x32xf32, #tpu.memory_space<vmem>>, vector<1x32xf32>
    %5 = vector.broadcast %4 : vector<1x32xf32> to vector<80x32xf32>
    %6 = arith.addf %3, %5 : vector<80x32xf32>
    %c0_5 = arith.constant 0 : index
    %c0_6 = arith.constant 0 : index
    %7 = vector.load %arg4[%c0_5, %c0_6] : memref<80x32xf32, #tpu.memory_space<vmem>>, vector<80x32xf32>
    %8 = arith.addf %6, %7 : vector<80x32xf32>
    %c0_7 = arith.constant 0 : index
    %c0_8 = arith.constant 0 : index
    %9 = vector.load %arg5[%c0_7, %c0_8] : memref<80x32xf32, #tpu.memory_space<vmem>>, vector<80x32xf32>
    tpu.vector_store %arg5[%c0_7, %c0_8], %8 {strides = array<i32>} : memref<80x32xf32, #tpu.memory_space<vmem>>, vector<80x32xf32>,
    return
  }
  func.func @transform_0(%arg0: i32) -> (i32, i32) {
    %c0_i32 = arith.constant 0 : i32
    %c0_i32_0 = arith.constant 0 : i32
    return %arg0, %c0_i32 : i32, i32
  }
  func.func @transform_1(%arg0: i32) -> (i32, i32) {
    %c0_i32 = arith.constant 0 : i32
    %c0_i32_0 = arith.constant 0 : i32
    %c0_i32_1 = arith.constant 0 : i32
    return %c0_i32, %c0_i32_0 : i32, i32
  }
  func.func @transform_2(%arg0: i32) -> (i32, i32) {
    %c0_i32 = arith.constant 0 : i32
    %c0_i32_0 = arith.constant 0 : i32
    %c0_i32_1 = arith.constant 0 : i32
    return %c0_i32, %c0_i32_0 : i32, i32
  }
  func.func @transform_3(%arg0: i32) -> (i32, i32) {
    %c0_i32 = arith.constant 0 : i32
    %c0_i32_0 = arith.constant 0 : i32
    return %arg0, %c0_i32 : i32, i32
  }
  func.func @transform_4(%arg0: i32) -> (i32, i32) {
    %c0_i32 = arith.constant 0 : i32
    %c0_i32_0 = arith.constant 0 : i32
    return %arg0, %c0_i32 : i32, i32
  }
}

module attributes {stable_mosaic.version = 11 : i64} {
  func.func @_head_kernel(%arg0: i32, %arg1: memref<64x32xf32, #tpu.memory_space<vmem>>, %arg2: memref<1x32xf32, #tpu.memory_space<vmem>>, %arg3: memref<1x32xf32, #tpu.memory_space<vmem>>, %arg4: memref<32x64xbf16, #tpu.memory_space<vmem>>, %arg5: memref<1x64xf32, #tpu.memory_space<vmem>>, %arg6: memref<64x64xf32, #tpu.memory_space<vmem>>) attributes {dimension_semantics = [#tpu.dimension_semantics<parallel>], iteration_bounds = array<i64: 2>, scalar_prefetch = 0 : i64, scratch_operands = 0 : i64, tpu.core_type = #tpu.core_type<tc>, window_params = [{transform_indices = @transform_0, window_bounds = array<i64: 64, 32>}, {pipeline_mode = #tpu.pipeline_mode<synchronous>, transform_indices = @transform_1, window_bounds = array<i64: 1, 32>}, {pipeline_mode = #tpu.pipeline_mode<synchronous>, transform_indices = @transform_2, window_bounds = array<i64: 1, 32>}, {pipeline_mode = #tpu.pipeline_mode<synchronous>, transform_indices = @transform_3, window_bounds = array<i64: 32, 64>}, {pipeline_mode = #tpu.pipeline_mode<synchronous>, transform_indices = @transform_4, window_bounds = array<i64: 1, 64>}, {transform_indices = @transform_5, window_bounds = array<i64: 64, 64>}]} {
    %c0 = arith.constant 0 : index
    %c0_0 = arith.constant 0 : index
    %0 = vector.load %arg1[%c0, %c0_0] : memref<64x32xf32, #tpu.memory_space<vmem>>, vector<64x32xf32>
    %c0_1 = arith.constant 0 : index
    %c0_2 = arith.constant 0 : index
    %1 = vector.load %arg2[%c0_1, %c0_2] : memref<1x32xf32, #tpu.memory_space<vmem>>, vector<1x32xf32>
    %c0_3 = arith.constant 0 : index
    %c0_4 = arith.constant 0 : index
    %2 = vector.load %arg3[%c0_3, %c0_4] : memref<1x32xf32, #tpu.memory_space<vmem>>, vector<1x32xf32>
    %cst = arith.constant dense<0.000000e+00> : vector<64xf32>
    %3 = vector.multi_reduction <add>, %0, %cst [1] : vector<64x32xf32> to vector<64xf32>
    %4 = vector.shape_cast %3 : vector<64xf32> to vector<64x1xf32>
    %cst_5 = arith.constant 3.200000e+01 : f32
    %5 = vector.broadcast %cst_5 : f32 to vector<64x1xf32>
    %6 = arith.divf %4, %5 : vector<64x1xf32>
    %7 = vector.broadcast %6 : vector<64x1xf32> to vector<64x32xf32>
    %8 = arith.subf %0, %7 : vector<64x32xf32>
    %9 = arith.mulf %8, %8 : vector<64x32xf32>
    %cst_6 = arith.constant dense<0.000000e+00> : vector<64xf32>
    %10 = vector.multi_reduction <add>, %9, %cst_6 [1] : vector<64x32xf32> to vector<64xf32>
    %11 = vector.shape_cast %10 : vector<64xf32> to vector<64x1xf32>
    %cst_7 = arith.constant 3.200000e+01 : f32
    %12 = vector.broadcast %cst_7 : f32 to vector<64x1xf32>
    %13 = arith.divf %11, %12 : vector<64x1xf32>
    %cst_8 = arith.constant 9.99999997E-7 : f32
    %14 = vector.broadcast %cst_8 : f32 to vector<64x1xf32>
    %15 = arith.addf %13, %14 : vector<64x1xf32>
    %16 = math.rsqrt %15 : vector<64x1xf32>
    %17 = vector.broadcast %16 : vector<64x1xf32> to vector<64x32xf32>
    %18 = arith.mulf %8, %17 : vector<64x32xf32>
    %19 = vector.broadcast %1 : vector<1x32xf32> to vector<64x32xf32>
    %20 = arith.mulf %18, %19 : vector<64x32xf32>
    %21 = vector.broadcast %2 : vector<1x32xf32> to vector<64x32xf32>
    %22 = arith.addf %20, %21 : vector<64x32xf32>
    %23 = arith.truncf %22 : vector<64x32xf32> to vector<64x32xbf16>
    %c0_9 = arith.constant 0 : index
    %c0_10 = arith.constant 0 : index
    %24 = vector.load %arg4[%c0_9, %c0_10] : memref<32x64xbf16, #tpu.memory_space<vmem>>, vector<32x64xbf16>
    %cst_11 = arith.constant dense<0.000000e+00> : vector<64x64xf32>
    %25 = tpu.matmul %23, %24, %cst_11 {dimension_numbers = #tpu.dot_dimension_numbers<[1], [0], [0], [1], [0, 0, 1, 1], [], []>} : vector<64x32xbf16>, vector<32x64xbf16>, vector<64x64xf32> -> vector<64x64xf32>
    %c0_12 = arith.constant 0 : index
    %c0_13 = arith.constant 0 : index
    %26 = vector.load %arg5[%c0_12, %c0_13] : memref<1x64xf32, #tpu.memory_space<vmem>>, vector<1x64xf32>
    %27 = vector.broadcast %26 : vector<1x64xf32> to vector<64x64xf32>
    %28 = arith.addf %25, %27 : vector<64x64xf32>
    %cst_14 = arith.constant 5.000000e-01 : f32
    %29 = vector.broadcast %cst_14 : f32 to vector<64x64xf32>
    %30 = arith.mulf %29, %28 : vector<64x64xf32>
    %cst_15 = arith.constant 0.707106769 : f32
    %31 = vector.broadcast %cst_15 : f32 to vector<64x64xf32>
    %32 = arith.mulf %28, %31 : vector<64x64xf32>
    %33 = math.absf %32 : vector<64x64xf32>
    %cst_16 = arith.constant 0.327591091 : f32
    %34 = vector.broadcast %cst_16 : f32 to vector<64x64xf32>
    %35 = arith.mulf %34, %33 : vector<64x64xf32>
    %cst_17 = arith.constant 1.000000e+00 : f32
    %36 = vector.broadcast %cst_17 : f32 to vector<64x64xf32>
    %37 = arith.addf %36, %35 : vector<64x64xf32>
    %cst_18 = arith.constant 1.000000e+00 : f32
    %38 = vector.broadcast %cst_18 : f32 to vector<64x64xf32>
    %39 = arith.divf %38, %37 : vector<64x64xf32>
    %cst_19 = arith.constant 1.06140542 : f32
    %40 = vector.broadcast %cst_19 : f32 to vector<64x64xf32>
    %41 = arith.mulf %40, %39 : vector<64x64xf32>
    %cst_20 = arith.constant -1.45315206 : f32
    %42 = vector.broadcast %cst_20 : f32 to vector<64x64xf32>
    %43 = arith.addf %41, %42 : vector<64x64xf32>
    %44 = arith.mulf %43, %39 : vector<64x64xf32>
    %cst_21 = arith.constant 1.42141378 : f32
    %45 = vector.broadcast %cst_21 : f32 to vector<64x64xf32>
    %46 = arith.addf %44, %45 : vector<64x64xf32>
    %47 = arith.mulf %46, %39 : vector<64x64xf32>
    %cst_22 = arith.constant -0.284496725 : f32
    %48 = vector.broadcast %cst_22 : f32 to vector<64x64xf32>
    %49 = arith.addf %47, %48 : vector<64x64xf32>
    %50 = arith.mulf %49, %39 : vector<64x64xf32>
    %cst_23 = arith.constant 0.254829586 : f32
    %51 = vector.broadcast %cst_23 : f32 to vector<64x64xf32>
    %52 = arith.addf %50, %51 : vector<64x64xf32>
    %53 = arith.mulf %52, %39 : vector<64x64xf32>
    %cst_24 = arith.constant 0.000000e+00 : f32
    %54 = vector.broadcast %cst_24 : f32 to vector<64x64xf32>
    %55 = arith.subf %54, %33 : vector<64x64xf32>
    %56 = arith.mulf %55, %33 : vector<64x64xf32>
    %57 = math.exp %56 : vector<64x64xf32>
    %58 = arith.mulf %53, %57 : vector<64x64xf32>
    %cst_25 = arith.constant 1.000000e+00 : f32
    %59 = vector.broadcast %cst_25 : f32 to vector<64x64xf32>
    %60 = arith.subf %59, %58 : vector<64x64xf32>
    %cst_26 = arith.constant 0.000000e+00 : f32
    %61 = vector.broadcast %cst_26 : f32 to vector<64x64xf32>
    %62 = arith.cmpf oge, %32, %61 : vector<64x64xf32>
    %cst_27 = arith.constant 0.000000e+00 : f32
    %63 = vector.broadcast %cst_27 : f32 to vector<64x64xf32>
    %64 = arith.subf %63, %60 : vector<64x64xf32>
    %65 = arith.select %62, %60, %64 : vector<64x64xi1>, vector<64x64xf32>
    %cst_28 = arith.constant 1.000000e+00 : f32
    %66 = vector.broadcast %cst_28 : f32 to vector<64x64xf32>
    %67 = arith.addf %66, %65 : vector<64x64xf32>
    %68 = arith.mulf %30, %67 : vector<64x64xf32>
    %c0_29 = arith.constant 0 : index
    %c0_30 = arith.constant 0 : index
    %69 = vector.load %arg6[%c0_29, %c0_30] : memref<64x64xf32, #tpu.memory_space<vmem>>, vector<64x64xf32>
    tpu.vector_store %arg6[%c0_29, %c0_30], %68 {strides = array<i32>} : memref<64x64xf32, #tpu.memory_space<vmem>>, vector<64x64xf32>,
    return
  }
  func.func @transform_0(%arg0: i32) -> (i32, i32) {
    %c0_i32 = arith.constant 0 : i32
    %c0_i32_0 = arith.constant 0 : i32
    return %arg0, %c0_i32 : i32, i32
  }
  func.func @transform_1(%arg0: i32) -> (i32, i32) {
    %c0_i32 = arith.constant 0 : i32
    %c0_i32_0 = arith.constant 0 : i32
    %c0_i32_1 = arith.constant 0 : i32
    return %c0_i32, %c0_i32_0 : i32, i32
  }
  func.func @transform_2(%arg0: i32) -> (i32, i32) {
    %c0_i32 = arith.constant 0 : i32
    %c0_i32_0 = arith.constant 0 : i32
    %c0_i32_1 = arith.constant 0 : i32
    return %c0_i32, %c0_i32_0 : i32, i32
  }
  func.func @transform_3(%arg0: i32) -> (i32, i32) {
    %c0_i32 = arith.constant 0 : i32
    %c0_i32_0 = arith.constant 0 : i32
    %c0_i32_1 = arith.constant 0 : i32
    return %c0_i32, %c0_i32_0 : i32, i32
  }
  func.func @transform_4(%arg0: i32) -> (i32, i32) {
    %c0_i32 = arith.constant 0 : i32
    %c0_i32_0 = arith.constant 0 : i32
    %c0_i32_1 = arith.constant 0 : i32
    return %c0_i32, %c0_i32_0 : i32, i32
  }
  func.func @transform_5(%arg0: i32) -> (i32, i32) {
    %c0_i32 = arith.constant 0 : i32
    %c0_i32_0 = arith.constant 0 : i32
    return %arg0, %c0_i32 : i32, i32
  }
}

module attributes {stable_mosaic.version = 11 : i64} {
  func.func @_eva_blocks_kernel(%arg0: i32, %arg1: i32, %arg2: memref<80x32xf32, #tpu.memory_space<vmem>>, %arg3: memref<80x32xf32, #tpu.memory_space<vmem>>, %arg4: memref<80x32xf32, #tpu.memory_space<vmem>>, %arg5: memref<1x1x32xf32, #tpu.memory_space<vmem>>, %arg6: memref<1x1x32xf32, #tpu.memory_space<vmem>>, %arg7: memref<1x32x96xbf16, #tpu.memory_space<vmem>>, %arg8: memref<1x1x96xf32, #tpu.memory_space<vmem>>, %arg9: memref<1x32x32xbf16, #tpu.memory_space<vmem>>, %arg10: memref<1x1x32xf32, #tpu.memory_space<vmem>>, %arg11: memref<1x1x32xf32, #tpu.memory_space<vmem>>, %arg12: memref<1x1x32xf32, #tpu.memory_space<vmem>>, %arg13: memref<1x32x128xbf16, #tpu.memory_space<vmem>>, %arg14: memref<1x1x128xf32, #tpu.memory_space<vmem>>, %arg15: memref<1x128x32xbf16, #tpu.memory_space<vmem>>, %arg16: memref<1x1x32xf32, #tpu.memory_space<vmem>>, %arg17: memref<80x32xf32, #tpu.memory_space<vmem>>, %arg18: memref<80x32xf32, #tpu.memory_space<vmem>>) attributes {dimension_semantics = [#tpu.dimension_semantics<parallel>, #tpu.dimension_semantics<arbitrary>], iteration_bounds = array<i64: 2, 2>, scalar_prefetch = 0 : i64, scratch_operands = 1 : i64, tpu.core_type = #tpu.core_type<tc>, window_params = [{transform_indices = @transform_0, window_bounds = array<i64: 80, 32>}, {pipeline_mode = #tpu.pipeline_mode<synchronous>, transform_indices = @transform_1, window_bounds = array<i64: 80, 32>}, {pipeline_mode = #tpu.pipeline_mode<synchronous>, transform_indices = @transform_2, window_bounds = array<i64: 80, 32>}, {transform_indices = @transform_3, window_bounds = array<i64: 1, 1, 32>}, {transform_indices = @transform_4, window_bounds = array<i64: 1, 1, 32>}, {transform_indices = @transform_5, window_bounds = array<i64: 1, 32, 96>}, {transform_indices = @transform_6, window_bounds = array<i64: 1, 1, 96>}, {transform_indices = @transform_7, window_bounds = array<i64: 1, 32, 32>}, {transform_indices = @transform_8, window_bounds = array<i64: 1, 1, 32>}, {transform_indices = @transform_9, window_bounds = array<i64: 1, 1, 32>}, {transform_indices = @transform_10, window_bounds = array<i64: 1, 1, 32>}, {transform_indices = @transform_11, window_bounds = array<i64: 1, 32, 128>}, {transform_indices = @transform_12, window_bounds = array<i64: 1, 1, 128>}, {transform_indices = @transform_13, window_bounds = array<i64: 1, 128, 32>}, {transform_indices = @transform_14, window_bounds = array<i64: 1, 1, 32>}, {transform_indices = @transform_15, window_bounds = array<i64: 80, 32>}]} {
    %c0_i32 = arith.constant 0 : i32
    %0 = arith.cmpi eq, %arg1, %c0_i32 : i32
    %1 = arith.extui %0 : i1 to i32
    %c0_i32_0 = arith.constant 0 : i32
    %2 = arith.cmpi ne, %1, %c0_i32_0 : i32
    scf.if %2 {
      %c0_85 = arith.constant 0 : index
      %c0_86 = arith.constant 0 : index
      %197 = vector.load %arg2[%c0_85, %c0_86] : memref<80x32xf32, #tpu.memory_space<vmem>>, vector<80x32xf32>
      %c0_87 = arith.constant 0 : index
      %c0_88 = arith.constant 0 : index
      %198 = vector.load %arg18[%c0_87, %c0_88] : memref<80x32xf32, #tpu.memory_space<vmem>>, vector<80x32xf32>
      tpu.vector_store %arg18[%c0_87, %c0_88], %197 {strides = array<i32>} : memref<80x32xf32, #tpu.memory_space<vmem>>, vector<80x32xf32>,
    } else {
    }
    %c0 = arith.constant 0 : index
    %c0_1 = arith.constant 0 : index
    %3 = vector.load %arg18[%c0, %c0_1] : memref<80x32xf32, #tpu.memory_space<vmem>>, vector<80x32xf32>
    %c0_2 = arith.constant 0 : index
    %c0_3 = arith.constant 0 : index
    %4 = vector.load %arg3[%c0_2, %c0_3] : memref<80x32xf32, #tpu.memory_space<vmem>>, vector<80x32xf32>
    %c0_4 = arith.constant 0 : index
    %c0_5 = arith.constant 0 : index
    %5 = vector.load %arg4[%c0_4, %c0_5] : memref<80x32xf32, #tpu.memory_space<vmem>>, vector<80x32xf32>
    %c0_6 = arith.constant 0 : index
    %c0_7 = arith.constant 0 : index
    %c0_8 = arith.constant 0 : index
    %6 = vector.load %arg5[%c0_6, %c0_7, %c0_8] : memref<1x1x32xf32, #tpu.memory_space<vmem>>, vector<1x1x32xf32>
    %7 = vector.shape_cast %6 : vector<1x1x32xf32> to vector<1x32xf32>
    %c0_9 = arith.constant 0 : index
    %c0_10 = arith.constant 0 : index
    %c0_11 = arith.constant 0 : index
    %8 = vector.load %arg6[%c0_9, %c0_10, %c0_11] : memref<1x1x32xf32, #tpu.memory_space<vmem>>, vector<1x1x32xf32>
    %9 = vector.shape_cast %8 : vector<1x1x32xf32> to vector<1x32xf32>
    %cst = arith.constant dense<0.000000e+00> : vector<80xf32>
    %10 = vector.multi_reduction <add>, %3, %cst [1] : vector<80x32xf32> to vector<80xf32>
    %11 = vector.shape_cast %10 : vector<80xf32> to vector<80x1xf32>
    %cst_12 = arith.constant 3.200000e+01 : f32
    %12 = vector.broadcast %cst_12 : f32 to vector<80x1xf32>
    %13 = arith.divf %11, %12 : vector<80x1xf32>
    %14 = vector.broadcast %13 : vector<80x1xf32> to vector<80x32xf32>
    %15 = arith.subf %3, %14 : vector<80x32xf32>
    %16 = arith.mulf %15, %15 : vector<80x32xf32>
    %cst_13 = arith.constant dense<0.000000e+00> : vector<80xf32>
    %17 = vector.multi_reduction <add>, %16, %cst_13 [1] : vector<80x32xf32> to vector<80xf32>
    %18 = vector.shape_cast %17 : vector<80xf32> to vector<80x1xf32>
    %cst_14 = arith.constant 3.200000e+01 : f32
    %19 = vector.broadcast %cst_14 : f32 to vector<80x1xf32>
    %20 = arith.divf %18, %19 : vector<80x1xf32>
    %cst_15 = arith.constant 9.99999997E-7 : f32
    %21 = vector.broadcast %cst_15 : f32 to vector<80x1xf32>
    %22 = arith.addf %20, %21 : vector<80x1xf32>
    %23 = math.rsqrt %22 : vector<80x1xf32>
    %24 = vector.broadcast %23 : vector<80x1xf32> to vector<80x32xf32>
    %25 = arith.mulf %15, %24 : vector<80x32xf32>
    %26 = vector.broadcast %7 : vector<1x32xf32> to vector<80x32xf32>
    %27 = arith.mulf %25, %26 : vector<80x32xf32>
    %28 = vector.broadcast %9 : vector<1x32xf32> to vector<80x32xf32>
    %29 = arith.addf %27, %28 : vector<80x32xf32>
    %30 = arith.truncf %29 : vector<80x32xf32> to vector<80x32xbf16>
    %c0_16 = arith.constant 0 : index
    %c0_17 = arith.constant 0 : index
    %c0_18 = arith.constant 0 : index
    %31 = vector.load %arg7[%c0_16, %c0_17, %c0_18] : memref<1x32x96xbf16, #tpu.memory_space<vmem>>, vector<1x32x96xbf16>
    %32 = vector.shape_cast %31 : vector<1x32x96xbf16> to vector<32x96xbf16>
    %cst_19 = arith.constant dense<0.000000e+00> : vector<80x96xf32>
    %33 = tpu.matmul %30, %32, %cst_19 {dimension_numbers = #tpu.dot_dimension_numbers<[1], [0], [0], [1], [0, 0, 1, 1], [], []>} : vector<80x32xbf16>, vector<32x96xbf16>, vector<80x96xf32> -> vector<80x96xf32>
    %c0_20 = arith.constant 0 : index
    %c0_21 = arith.constant 0 : index
    %c0_22 = arith.constant 0 : index
    %34 = vector.load %arg8[%c0_20, %c0_21, %c0_22] : memref<1x1x96xf32, #tpu.memory_space<vmem>>, vector<1x1x96xf32>
    %35 = vector.shape_cast %34 : vector<1x1x96xf32> to vector<1x96xf32>
    %36 = vector.broadcast %35 : vector<1x96xf32> to vector<80x96xf32>
    %37 = arith.addf %33, %36 : vector<80x96xf32>
    %38 = vector.extract_strided_slice %37 {offsets = [0, 0], sizes = [80, 32], strides = [1, 1]} : vector<80x96xf32> to vector<80x32xf32>
    %39 = vector.extract_strided_slice %37 {offsets = [0, 32], sizes = [80, 32], strides = [1, 1]} : vector<80x96xf32> to vector<80x32xf32>
    %40 = vector.extract_strided_slice %37 {offsets = [0, 64], sizes = [80, 32], strides = [1, 1]} : vector<80x96xf32> to vector<80x32xf32>
    %41 = arith.truncf %40 : vector<80x32xf32> to vector<80x32xbf16>
    %42 = vector.extract_strided_slice %38 {offsets = [0, 8], sizes = [80, 8], strides = [1, 1]} : vector<80x32xf32> to vector<80x8xf32>
    %43 = vector.extract_strided_slice %38 {offsets = [0, 0], sizes = [80, 8], strides = [1, 1]} : vector<80x32xf32> to vector<80x8xf32>
    %44 = tpu.concatenate %42, %43 in 1 : vector<80x8xf32>, vector<80x8xf32> -> vector<80x16xf32>
    %45 = vector.extract_strided_slice %38 {offsets = [0, 24], sizes = [80, 8], strides = [1, 1]} : vector<80x32xf32> to vector<80x8xf32>
    %46 = vector.extract_strided_slice %38 {offsets = [0, 16], sizes = [80, 8], strides = [1, 1]} : vector<80x32xf32> to vector<80x8xf32>
    %47 = tpu.concatenate %45, %46 in 1 : vector<80x8xf32>, vector<80x8xf32> -> vector<80x16xf32>
    %48 = tpu.concatenate %44, %47 in 1 : vector<80x16xf32>, vector<80x16xf32> -> vector<80x32xf32>
    %49 = arith.mulf %38, %4 : vector<80x32xf32>
    %50 = arith.mulf %48, %5 : vector<80x32xf32>
    %51 = arith.addf %49, %50 : vector<80x32xf32>
    %52 = arith.truncf %51 : vector<80x32xf32> to vector<80x32xbf16>
    %53 = vector.extract_strided_slice %39 {offsets = [0, 8], sizes = [80, 8], strides = [1, 1]} : vector<80x32xf32> to vector<80x8xf32>
    %54 = vector.extract_strided_slice %39 {offsets = [0, 0], sizes = [80, 8], strides = [1, 1]} : vector<80x32xf32> to vector<80x8xf32>
    %55 = tpu.concatenate %53, %54 in 1 : vector<80x8xf32>, vector<80x8xf32> -> vector<80x16xf32>
    %56 = vector.extract_strided_slice %39 {offsets = [0, 24], sizes = [80, 8], strides = [1, 1]} : vector<80x32xf32> to vector<80x8xf32>
    %57 = vector.extract_strided_slice %39 {offsets = [0, 16], sizes = [80, 8], strides = [1, 1]} : vector<80x32xf32> to vector<80x8xf32>
    %58 = tpu.concatenate %56, %57 in 1 : vector<80x8xf32>, vector<80x8xf32> -> vector<80x16xf32>
    %59 = tpu.concatenate %55, %58 in 1 : vector<80x16xf32>, vector<80x16xf32> -> vector<80x32xf32>
    %60 = arith.mulf %39, %4 : vector<80x32xf32>
    %61 = arith.mulf %59, %5 : vector<80x32xf32>
    %62 = arith.addf %60, %61 : vector<80x32xf32>
    %63 = arith.truncf %62 : vector<80x32xf32> to vector<80x32xbf16>
    %cst_23 = arith.constant 0.000000e+00 : f32
    %64 = vector.broadcast %cst_23 : f32 to vector<80x32xf32>
    %65 = vector.extract_strided_slice %52 {offsets = [0, 0], sizes = [80, 16], strides = [1, 1]} : vector<80x32xbf16> to vector<80x16xbf16>
    %66 = vector.extract_strided_slice %63 {offsets = [0, 0], sizes = [80, 16], strides = [1, 1]} : vector<80x32xbf16> to vector<80x16xbf16>
    %cst_24 = arith.constant dense<0.000000e+00> : vector<80x80xf32>
    %67 = tpu.matmul %65, %66, %cst_24 {dimension_numbers = #tpu.dot_dimension_numbers<[1], [1], [0], [0], [0, 0, 1, 0], [], []>} : vector<80x16xbf16>, vector<80x16xbf16>, vector<80x80xf32> -> vector<80x80xf32>
    %cst_25 = arith.constant dense<0xFF800000> : vector<80xf32>
    %68 = vector.multi_reduction <maximumf>, %67, %cst_25 [1] : vector<80x80xf32> to vector<80xf32>
    %69 = vector.shape_cast %68 : vector<80xf32> to vector<80x1xf32>
    %70 = vector.broadcast %69 : vector<80x1xf32> to vector<80x80xf32>
    %71 = arith.subf %67, %70 : vector<80x80xf32>
    %72 = math.exp %71 : vector<80x80xf32>
    %cst_26 = arith.constant dense<0.000000e+00> : vector<80xf32>
    %73 = vector.multi_reduction <add>, %72, %cst_26 [1] : vector<80x80xf32> to vector<80xf32>
    %74 = vector.shape_cast %73 : vector<80xf32> to vector<80x1xf32>
    %75 = arith.truncf %72 : vector<80x80xf32> to vector<80x80xbf16>
    %76 = vector.extract_strided_slice %41 {offsets = [0, 0], sizes = [80, 16], strides = [1, 1]} : vector<80x32xbf16> to vector<80x16xbf16>
    %cst_27 = arith.constant dense<0.000000e+00> : vector<80x16xf32>
    %77 = tpu.matmul %75, %76, %cst_27 {dimension_numbers = #tpu.dot_dimension_numbers<[1], [0], [0], [1], [0, 0, 1, 1], [], []>} : vector<80x80xbf16>, vector<80x16xbf16>, vector<80x16xf32> -> vector<80x16xf32>
    %78 = tpu.reciprocal %74 {approx = true} : vector<80x1xf32> -> vector<80x1xf32>
    %79 = vector.broadcast %78 : vector<80x1xf32> to vector<80x16xf32>
    %80 = arith.mulf %77, %79 : vector<80x16xf32>
    %81 = arith.truncf %80 : vector<80x16xf32> to vector<80x16xbf16>
    %c0_28 = arith.constant 0 : index
    %c0_29 = arith.constant 0 : index
    %c0_30 = arith.constant 0 : index
    %82 = vector.load %arg9[%c0_28, %c0_29, %c0_30] : memref<1x32x32xbf16, #tpu.memory_space<vmem>>, vector<1x16x32xbf16>
    %83 = vector.shape_cast %82 : vector<1x16x32xbf16> to vector<16x32xbf16>
    %cst_31 = arith.constant dense<0.000000e+00> : vector<80x32xf32>
    %84 = tpu.matmul %81, %83, %cst_31 {dimension_numbers = #tpu.dot_dimension_numbers<[1], [0], [0], [1], [0, 0, 1, 1], [], []>} : vector<80x16xbf16>, vector<16x32xbf16>, vector<80x32xf32> -> vector<80x32xf32>
    %85 = arith.addf %64, %84 : vector<80x32xf32>
    %86 = vector.extract_strided_slice %52 {offsets = [0, 16], sizes = [80, 16], strides = [1, 1]} : vector<80x32xbf16> to vector<80x16xbf16>
    %87 = vector.extract_strided_slice %63 {offsets = [0, 16], sizes = [80, 16], strides = [1, 1]} : vector<80x32xbf16> to vector<80x16xbf16>
    %cst_32 = arith.constant dense<0.000000e+00> : vector<80x80xf32>
    %88 = tpu.matmul %86, %87, %cst_32 {dimension_numbers = #tpu.dot_dimension_numbers<[1], [1], [0], [0], [0, 0, 1, 0], [], []>} : vector<80x16xbf16>, vector<80x16xbf16>, vector<80x80xf32> -> vector<80x80xf32>
    %cst_33 = arith.constant dense<0xFF800000> : vector<80xf32>
    %89 = vector.multi_reduction <maximumf>, %88, %cst_33 [1] : vector<80x80xf32> to vector<80xf32>
    %90 = vector.shape_cast %89 : vector<80xf32> to vector<80x1xf32>
    %91 = vector.broadcast %90 : vector<80x1xf32> to vector<80x80xf32>
    %92 = arith.subf %88, %91 : vector<80x80xf32>
    %93 = math.exp %92 : vector<80x80xf32>
    %cst_34 = arith.constant dense<0.000000e+00> : vector<80xf32>
    %94 = vector.multi_reduction <add>, %93, %cst_34 [1] : vector<80x80xf32> to vector<80xf32>
    %95 = vector.shape_cast %94 : vector<80xf32> to vector<80x1xf32>
    %96 = arith.truncf %93 : vector<80x80xf32> to vector<80x80xbf16>
    %97 = vector.extract_strided_slice %41 {offsets = [0, 16], sizes = [80, 16], strides = [1, 1]} : vector<80x32xbf16> to vector<80x16xbf16>
    %cst_35 = arith.constant dense<0.000000e+00> : vector<80x16xf32>
    %98 = tpu.matmul %96, %97, %cst_35 {dimension_numbers = #tpu.dot_dimension_numbers<[1], [0], [0], [1], [0, 0, 1, 1], [], []>} : vector<80x80xbf16>, vector<80x16xbf16>, vector<80x16xf32> -> vector<80x16xf32>
    %99 = tpu.reciprocal %95 {approx = true} : vector<80x1xf32> -> vector<80x1xf32>
    %100 = vector.broadcast %99 : vector<80x1xf32> to vector<80x16xf32>
    %101 = arith.mulf %98, %100 : vector<80x16xf32>
    %102 = arith.truncf %101 : vector<80x16xf32> to vector<80x16xbf16>
    %c0_36 = arith.constant 0 : index
    %c16 = arith.constant 16 : index
    %c0_37 = arith.constant 0 : index
    %103 = vector.load %arg9[%c0_36, %c16, %c0_37] : memref<1x32x32xbf16, #tpu.memory_space<vmem>>, vector<1x16x32xbf16>
    %104 = vector.shape_cast %103 : vector<1x16x32xbf16> to vector<16x32xbf16>
    %cst_38 = arith.constant dense<0.000000e+00> : vector<80x32xf32>
    %105 = tpu.matmul %102, %104, %cst_38 {dimension_numbers = #tpu.dot_dimension_numbers<[1], [0], [0], [1], [0, 0, 1, 1], [], []>} : vector<80x16xbf16>, vector<16x32xbf16>, vector<80x32xf32> -> vector<80x32xf32>
    %106 = arith.addf %85, %105 : vector<80x32xf32>
    %107 = arith.addf %3, %106 : vector<80x32xf32>
    %c0_39 = arith.constant 0 : index
    %c0_40 = arith.constant 0 : index
    %c0_41 = arith.constant 0 : index
    %108 = vector.load %arg10[%c0_39, %c0_40, %c0_41] : memref<1x1x32xf32, #tpu.memory_space<vmem>>, vector<1x1x32xf32>
    %109 = vector.shape_cast %108 : vector<1x1x32xf32> to vector<1x32xf32>
    %110 = vector.broadcast %109 : vector<1x32xf32> to vector<80x32xf32>
    %111 = arith.addf %107, %110 : vector<80x32xf32>
    %c0_42 = arith.constant 0 : index
    %c0_43 = arith.constant 0 : index
    %c0_44 = arith.constant 0 : index
    %112 = vector.load %arg11[%c0_42, %c0_43, %c0_44] : memref<1x1x32xf32, #tpu.memory_space<vmem>>, vector<1x1x32xf32>
    %113 = vector.shape_cast %112 : vector<1x1x32xf32> to vector<1x32xf32>
    %c0_45 = arith.constant 0 : index
    %c0_46 = arith.constant 0 : index
    %c0_47 = arith.constant 0 : index
    %114 = vector.load %arg12[%c0_45, %c0_46, %c0_47] : memref<1x1x32xf32, #tpu.memory_space<vmem>>, vector<1x1x32xf32>
    %115 = vector.shape_cast %114 : vector<1x1x32xf32> to vector<1x32xf32>
    %cst_48 = arith.constant dense<0.000000e+00> : vector<80xf32>
    %116 = vector.multi_reduction <add>, %111, %cst_48 [1] : vector<80x32xf32> to vector<80xf32>
    %117 = vector.shape_cast %116 : vector<80xf32> to vector<80x1xf32>
    %cst_49 = arith.constant 3.200000e+01 : f32
    %118 = vector.broadcast %cst_49 : f32 to vector<80x1xf32>
    %119 = arith.divf %117, %118 : vector<80x1xf32>
    %120 = vector.broadcast %119 : vector<80x1xf32> to vector<80x32xf32>
    %121 = arith.subf %111, %120 : vector<80x32xf32>
    %122 = arith.mulf %121, %121 : vector<80x32xf32>
    %cst_50 = arith.constant dense<0.000000e+00> : vector<80xf32>
    %123 = vector.multi_reduction <add>, %122, %cst_50 [1] : vector<80x32xf32> to vector<80xf32>
    %124 = vector.shape_cast %123 : vector<80xf32> to vector<80x1xf32>
    %cst_51 = arith.constant 3.200000e+01 : f32
    %125 = vector.broadcast %cst_51 : f32 to vector<80x1xf32>
    %126 = arith.divf %124, %125 : vector<80x1xf32>
    %cst_52 = arith.constant 9.99999997E-7 : f32
    %127 = vector.broadcast %cst_52 : f32 to vector<80x1xf32>
    %128 = arith.addf %126, %127 : vector<80x1xf32>
    %129 = math.rsqrt %128 : vector<80x1xf32>
    %130 = vector.broadcast %129 : vector<80x1xf32> to vector<80x32xf32>
    %131 = arith.mulf %121, %130 : vector<80x32xf32>
    %132 = vector.broadcast %113 : vector<1x32xf32> to vector<80x32xf32>
    %133 = arith.mulf %131, %132 : vector<80x32xf32>
    %134 = vector.broadcast %115 : vector<1x32xf32> to vector<80x32xf32>
    %135 = arith.addf %133, %134 : vector<80x32xf32>
    %136 = arith.truncf %135 : vector<80x32xf32> to vector<80x32xbf16>
    %c0_53 = arith.constant 0 : index
    %c0_54 = arith.constant 0 : index
    %c0_55 = arith.constant 0 : index
    %137 = vector.load %arg13[%c0_53, %c0_54, %c0_55] : memref<1x32x128xbf16, #tpu.memory_space<vmem>>, vector<1x32x128xbf16>
    %138 = vector.shape_cast %137 : vector<1x32x128xbf16> to vector<32x128xbf16>
    %cst_56 = arith.constant dense<0.000000e+00> : vector<80x128xf32>
    %139 = tpu.matmul %136, %138, %cst_56 {dimension_numbers = #tpu.dot_dimension_numbers<[1], [0], [0], [1], [0, 0, 1, 1], [], []>} : vector<80x32xbf16>, vector<32x128xbf16>, vector<80x128xf32> -> vector<80x128xf32>
    %c0_57 = arith.constant 0 : index
    %c0_58 = arith.constant 0 : index
    %c0_59 = arith.constant 0 : index
    %140 = vector.load %arg14[%c0_57, %c0_58, %c0_59] : memref<1x1x128xf32, #tpu.memory_space<vmem>>, vector<1x1x128xf32>
    %141 = vector.shape_cast %140 : vector<1x1x128xf32> to vector<1x128xf32>
    %142 = vector.broadcast %141 : vector<1x128xf32> to vector<80x128xf32>
    %143 = arith.addf %139, %142 : vector<80x128xf32>
    %cst_60 = arith.constant 5.000000e-01 : f32
    %144 = vector.broadcast %cst_60 : f32 to vector<80x128xf32>
    %145 = arith.mulf %144, %143 : vector<80x128xf32>
    %cst_61 = arith.constant 0.707106769 : f32
    %146 = vector.broadcast %cst_61 : f32 to vector<80x128xf32>
    %147 = arith.mulf %143, %146 : vector<80x128xf32>
    %148 = math.absf %147 : vector<80x128xf32>
    %cst_62 = arith.constant 0.327591091 : f32
    %149 = vector.broadcast %cst_62 : f32 to vector<80x128xf32>
    %150 = arith.mulf %149, %148 : vector<80x128xf32>
    %cst_63 = arith.constant 1.000000e+00 : f32
    %151 = vector.broadcast %cst_63 : f32 to vector<80x128xf32>
    %152 = arith.addf %151, %150 : vector<80x128xf32>
    %cst_64 = arith.constant 1.000000e+00 : f32
    %153 = vector.broadcast %cst_64 : f32 to vector<80x128xf32>
    %154 = arith.divf %153, %152 : vector<80x128xf32>
    %cst_65 = arith.constant 1.06140542 : f32
    %155 = vector.broadcast %cst_65 : f32 to vector<80x128xf32>
    %156 = arith.mulf %155, %154 : vector<80x128xf32>
    %cst_66 = arith.constant -1.45315206 : f32
    %157 = vector.broadcast %cst_66 : f32 to vector<80x128xf32>
    %158 = arith.addf %156, %157 : vector<80x128xf32>
    %159 = arith.mulf %158, %154 : vector<80x128xf32>
    %cst_67 = arith.constant 1.42141378 : f32
    %160 = vector.broadcast %cst_67 : f32 to vector<80x128xf32>
    %161 = arith.addf %159, %160 : vector<80x128xf32>
    %162 = arith.mulf %161, %154 : vector<80x128xf32>
    %cst_68 = arith.constant -0.284496725 : f32
    %163 = vector.broadcast %cst_68 : f32 to vector<80x128xf32>
    %164 = arith.addf %162, %163 : vector<80x128xf32>
    %165 = arith.mulf %164, %154 : vector<80x128xf32>
    %cst_69 = arith.constant 0.254829586 : f32
    %166 = vector.broadcast %cst_69 : f32 to vector<80x128xf32>
    %167 = arith.addf %165, %166 : vector<80x128xf32>
    %168 = arith.mulf %167, %154 : vector<80x128xf32>
    %cst_70 = arith.constant 0.000000e+00 : f32
    %169 = vector.broadcast %cst_70 : f32 to vector<80x128xf32>
    %170 = arith.subf %169, %148 : vector<80x128xf32>
    %171 = arith.mulf %170, %148 : vector<80x128xf32>
    %172 = math.exp %171 : vector<80x128xf32>
    %173 = arith.mulf %168, %172 : vector<80x128xf32>
    %cst_71 = arith.constant 1.000000e+00 : f32
    %174 = vector.broadcast %cst_71 : f32 to vector<80x128xf32>
    %175 = arith.subf %174, %173 : vector<80x128xf32>
    %cst_72 = arith.constant 0.000000e+00 : f32
    %176 = vector.broadcast %cst_72 : f32 to vector<80x128xf32>
    %177 = arith.cmpf oge, %147, %176 : vector<80x128xf32>
    %cst_73 = arith.constant 0.000000e+00 : f32
    %178 = vector.broadcast %cst_73 : f32 to vector<80x128xf32>
    %179 = arith.subf %178, %175 : vector<80x128xf32>
    %180 = arith.select %177, %175, %179 : vector<80x128xi1>, vector<80x128xf32>
    %cst_74 = arith.constant 1.000000e+00 : f32
    %181 = vector.broadcast %cst_74 : f32 to vector<80x128xf32>
    %182 = arith.addf %181, %180 : vector<80x128xf32>
    %183 = arith.mulf %145, %182 : vector<80x128xf32>
    %184 = arith.truncf %183 : vector<80x128xf32> to vector<80x128xbf16>
    %c0_75 = arith.constant 0 : index
    %c0_76 = arith.constant 0 : index
    %c0_77 = arith.constant 0 : index
    %185 = vector.load %arg15[%c0_75, %c0_76, %c0_77] : memref<1x128x32xbf16, #tpu.memory_space<vmem>>, vector<1x128x32xbf16>
    %186 = vector.shape_cast %185 : vector<1x128x32xbf16> to vector<128x32xbf16>
    %cst_78 = arith.constant dense<0.000000e+00> : vector<80x32xf32>
    %187 = tpu.matmul %184, %186, %cst_78 {dimension_numbers = #tpu.dot_dimension_numbers<[1], [0], [0], [1], [0, 0, 1, 1], [], []>} : vector<80x128xbf16>, vector<128x32xbf16>, vector<80x32xf32> -> vector<80x32xf32>
    %188 = arith.addf %111, %187 : vector<80x32xf32>
    %c0_79 = arith.constant 0 : index
    %c0_80 = arith.constant 0 : index
    %c0_81 = arith.constant 0 : index
    %189 = vector.load %arg16[%c0_79, %c0_80, %c0_81] : memref<1x1x32xf32, #tpu.memory_space<vmem>>, vector<1x1x32xf32>
    %190 = vector.shape_cast %189 : vector<1x1x32xf32> to vector<1x32xf32>
    %191 = vector.broadcast %190 : vector<1x32xf32> to vector<80x32xf32>
    %192 = arith.addf %188, %191 : vector<80x32xf32>
    %c0_82 = arith.constant 0 : index
    %c0_83 = arith.constant 0 : index
    %193 = vector.load %arg18[%c0_82, %c0_83] : memref<80x32xf32, #tpu.memory_space<vmem>>, vector<80x32xf32>
    tpu.vector_store %arg18[%c0_82, %c0_83], %192 {strides = array<i32>} : memref<80x32xf32, #tpu.memory_space<vmem>>, vector<80x32xf32>,
    %c1_i32 = arith.constant 1 : i32
    %194 = arith.cmpi eq, %arg1, %c1_i32 : i32
    %195 = arith.extui %194 : i1 to i32
    %c0_i32_84 = arith.constant 0 : i32
    %196 = arith.cmpi ne, %195, %c0_i32_84 : i32
    scf.if %196 {
      %c0_85 = arith.constant 0 : index
      %c0_86 = arith.constant 0 : index
      %197 = vector.load %arg17[%c0_85, %c0_86] : memref<80x32xf32, #tpu.memory_space<vmem>>, vector<80x32xf32>
      tpu.vector_store %arg17[%c0_85, %c0_86], %192 {strides = array<i32>} : memref<80x32xf32, #tpu.memory_space<vmem>>, vector<80x32xf32>,
    } else {
    }
    return
  }
  func.func @transform_0(%arg0: i32, %arg1: i32) -> (i32, i32) {
    %c0_i32 = arith.constant 0 : i32
    %c0_i32_0 = arith.constant 0 : i32
    return %arg0, %c0_i32 : i32, i32
  }
  func.func @transform_1(%arg0: i32, %arg1: i32) -> (i32, i32) {
    %c0_i32 = arith.constant 0 : i32
    %c0_i32_0 = arith.constant 0 : i32
    %c0_i32_1 = arith.constant 0 : i32
    return %c0_i32, %c0_i32_0 : i32, i32
  }
  func.func @transform_2(%arg0: i32, %arg1: i32) -> (i32, i32) {
    %c0_i32 = arith.constant 0 : i32
    %c0_i32_0 = arith.constant 0 : i32
    %c0_i32_1 = arith.constant 0 : i32
    return %c0_i32, %c0_i32_0 : i32, i32
  }
  func.func @transform_3(%arg0: i32, %arg1: i32) -> (i32, i32, i32) {
    %c0_i32 = arith.constant 0 : i32
    %c0_i32_0 = arith.constant 0 : i32
    %c0_i32_1 = arith.constant 0 : i32
    return %arg1, %c0_i32, %c0_i32_0 : i32, i32, i32
  }
  func.func @transform_4(%arg0: i32, %arg1: i32) -> (i32, i32, i32) {
    %c0_i32 = arith.constant 0 : i32
    %c0_i32_0 = arith.constant 0 : i32
    %c0_i32_1 = arith.constant 0 : i32
    return %arg1, %c0_i32, %c0_i32_0 : i32, i32, i32
  }
  func.func @transform_5(%arg0: i32, %arg1: i32) -> (i32, i32, i32) {
    %c0_i32 = arith.constant 0 : i32
    %c0_i32_0 = arith.constant 0 : i32
    %c0_i32_1 = arith.constant 0 : i32
    return %arg1, %c0_i32, %c0_i32_0 : i32, i32, i32
  }
  func.func @transform_6(%arg0: i32, %arg1: i32) -> (i32, i32, i32) {
    %c0_i32 = arith.constant 0 : i32
    %c0_i32_0 = arith.constant 0 : i32
    %c0_i32_1 = arith.constant 0 : i32
    return %arg1, %c0_i32, %c0_i32_0 : i32, i32, i32
  }
  func.func @transform_7(%arg0: i32, %arg1: i32) -> (i32, i32, i32) {
    %c0_i32 = arith.constant 0 : i32
    %c0_i32_0 = arith.constant 0 : i32
    %c0_i32_1 = arith.constant 0 : i32
    return %arg1, %c0_i32, %c0_i32_0 : i32, i32, i32
  }
  func.func @transform_8(%arg0: i32, %arg1: i32) -> (i32, i32, i32) {
    %c0_i32 = arith.constant 0 : i32
    %c0_i32_0 = arith.constant 0 : i32
    %c0_i32_1 = arith.constant 0 : i32
    return %arg1, %c0_i32, %c0_i32_0 : i32, i32, i32
  }
  func.func @transform_9(%arg0: i32, %arg1: i32) -> (i32, i32, i32) {
    %c0_i32 = arith.constant 0 : i32
    %c0_i32_0 = arith.constant 0 : i32
    %c0_i32_1 = arith.constant 0 : i32
    return %arg1, %c0_i32, %c0_i32_0 : i32, i32, i32
  }
  func.func @transform_10(%arg0: i32, %arg1: i32) -> (i32, i32, i32) {
    %c0_i32 = arith.constant 0 : i32
    %c0_i32_0 = arith.constant 0 : i32
    %c0_i32_1 = arith.constant 0 : i32
    return %arg1, %c0_i32, %c0_i32_0 : i32, i32, i32
  }
  func.func @transform_11(%arg0: i32, %arg1: i32) -> (i32, i32, i32) {
    %c0_i32 = arith.constant 0 : i32
    %c0_i32_0 = arith.constant 0 : i32
    %c0_i32_1 = arith.constant 0 : i32
    return %arg1, %c0_i32, %c0_i32_0 : i32, i32, i32
  }
  func.func @transform_12(%arg0: i32, %arg1: i32) -> (i32, i32, i32) {
    %c0_i32 = arith.constant 0 : i32
    %c0_i32_0 = arith.constant 0 : i32
    %c0_i32_1 = arith.constant 0 : i32
    return %arg1, %c0_i32, %c0_i32_0 : i32, i32, i32
  }
  func.func @transform_13(%arg0: i32, %arg1: i32) -> (i32, i32, i32) {
    %c0_i32 = arith.constant 0 : i32
    %c0_i32_0 = arith.constant 0 : i32
    %c0_i32_1 = arith.constant 0 : i32
    return %arg1, %c0_i32, %c0_i32_0 : i32, i32, i32
  }
  func.func @transform_14(%arg0: i32, %arg1: i32) -> (i32, i32, i32) {
    %c0_i32 = arith.constant 0 : i32
    %c0_i32_0 = arith.constant 0 : i32
    %c0_i32_1 = arith.constant 0 : i32
    return %arg1, %c0_i32, %c0_i32_0 : i32, i32, i32
  }
  func.func @transform_15(%arg0: i32, %arg1: i32) -> (i32, i32) {
    %c0_i32 = arith.constant 0 : i32
    %c0_i32_0 = arith.constant 0 : i32
    return %arg0, %c0_i32 : i32, i32
  }
}

</mosaic_0001>

<llo_original>
// kernel: lorat_forward.3
$region0: #{lorat_forward.3}
  #allocation0 [shape = 'u32[]', space=smem, size = 0x4, offset = 0x4, fixed_abs, tag = 'smem constant byte address 0x4 - core index']
  #allocation1 [shape = 'u32[144,128]{1,0:T(1,128)}', space=vmem, size = 0x12000, scoped, tag = 'internal scratch']
  %s0 = inlined_call_operand.vmem [shape: f32[160,48], index: 0, kind: input, shape index: {}]
  %s1 = inlined_call_operand.vmem [shape: bf16[48,32], index: 1, kind: input, shape index: {}]
  %s2 = inlined_call_operand.vmem [shape: f32[1,32], index: 2, kind: input, shape index: {}]
  %s3 = inlined_call_operand.vmem [shape: f32[160,32], index: 3, kind: input, shape index: {}]
  %s4 = inlined_call_operand.vmem [shape: f32[160,32], index: 4, kind: output, shape index: {}]
  %s5 = sld [smem:[#allocation0]]
  $region49: #{lorat_forward.3} parent=0
    _
  %s7 = ssub.s32 1, %s5
  %s8 = scalar_select 0, %s7, %s5
  loop: start=0, step=1, limit=4
  $region2: #{lorat_forward.3} parent=0 // loop_pre_header
    _
  $region3: #{lorat_forward.3} parent=0 // loop_header
    %s10 = sphi 0, %s14
    %p11 = scmp.ge.s32.totalorder %s10, 4
    %s20 = sphi 0, %s22
    %s23 = sphi 0, %s20
    %s24 = sphi 0, %s23
    %s40 = sphi 0, %s24
    %s44 = sphi 0, %s44
    %s46 = sphi 0, %s44
    %s47 = sphi 0, %s46
    %s61 = sphi 0, %s47
    %s65 = sphi 0, %s65
    %s67 = sphi 0, %s65
    %s68 = sphi 0, %s67
    %s82 = sphi 0, %s68
    %s88 = sphi 0, %s90
    %s91 = sphi 0, %s88
    %s92 = sphi 0, %s91
    %s108 = sphi 0, %s92
    %s114 = sphi 0, %s116
    %s117 = sphi 0, %s114
    %s118 = sphi 0, %s117
    %s134 = sphi 0, %s118
  $region4: #{lorat_forward.3} parent=0 // loop_header_branch
    %13 = sbr.rel (%p11) target = $region8
  $region5: #{lorat_forward.3} parent=0 // loop_body
    %s15 = ssub.s32 %s10, 1
    %s16 = ssub.s32 %s10, 2
    %s17 = sadd.s32 %s10, 1
    %s18 = ssub.s32 %s10, %s17
    %p19 = scmp.eq.s32.totalorder %s18, 0
    %s21 = sadd.s32 %s20, 1
    %s22 = scalar_select %p19, %s20, %s21
    %p25 = pneg %p19
    %p26 = scmp.eq.s32.totalorder %s10, 1
    %p27 = por %p25, %p26
    %p28 = scmp.ne.s32.totalorder %s20, %s23
    %p29 = scmp.eq.s32.totalorder %s10, 0
    %p30 = por %p28, %p29
    %p31 = scmp.ne.s32.totalorder %s20, %s23
    %p32 = scmp.eq.s32.totalorder %s15, 1
    %p33 = por %p31, %p32
    %p34 = scmp.ne.s32.totalorder %s23, %s24
    %p35 = scmp.eq.s32.totalorder %s15, 0
    %p36 = por %p34, %p35
    %p37 = scmp.ne.s32.totalorder %s23, %s24
    %p38 = scmp.eq.s32.totalorder %s16, 1
    %p39 = por %p37, %p38
    %p41 = scmp.ne.s32.totalorder %s24, %s40
    %p42 = scmp.eq.s32.totalorder %s16, 0
    %p43 = por %p41, %p42
    %s45 = sadd.s32 %s44, 1
    %p48 = scmp.eq.s32.totalorder %s10, 1
    %p49 = scmp.ne.s32.totalorder %s44, %s46
    %p50 = scmp.eq.s32.totalorder %s10, 0
    %p51 = por %p49, %p50
    %p52 = scmp.ne.s32.totalorder %s44, %s46
    %p53 = scmp.eq.s32.totalorder %s15, 1
    %p54 = por %p52, %p53
    %p55 = scmp.ne.s32.totalorder %s46, %s47
    %p56 = scmp.eq.s32.totalorder %s15, 0
    %p57 = por %p55, %p56
    %p58 = scmp.ne.s32.totalorder %s46, %s47
    %p59 = scmp.eq.s32.totalorder %s16, 1
    %p60 = por %p58, %p59
    %p62 = scmp.ne.s32.totalorder %s47, %s61
    %p63 = scmp.eq.s32.totalorder %s16, 0
    %p64 = por %p62, %p63
    %s66 = sadd.s32 %s65, 1
    %p69 = scmp.eq.s32.totalorder %s10, 1
    %p70 = scmp.ne.s32.totalorder %s65, %s67
    %p71 = scmp.eq.s32.totalorder %s10, 0
    %p72 = por %p70, %p71
    %p73 = scmp.ne.s32.totalorder %s65, %s67
    %p74 = scmp.eq.s32.totalorder %s15, 1
    %p75 = por %p73, %p74
    %p76 = scmp.ne.s32.totalorder %s67, %s68
    %p77 = scmp.eq.s32.totalorder %s15, 0
    %p78 = por %p76, %p77
    %p79 = scmp.ne.s32.totalorder %s67, %s68
    %p80 = scmp.eq.s32.totalorder %s16, 1
    %p81 = por %p79, %p80
    %p83 = scmp.ne.s32.totalorder %s68, %s82
    %p84 = scmp.eq.s32.totalorder %s16, 0
    %p85 = por %p83, %p84
    %s86 = ssub.s32 %s10, %s17
    %p87 = scmp.eq.s32.totalorder %s86, 0
    %s89 = sadd.s32 %s88, 1
    %s90 = scalar_select %p87, %s88, %s89
    %p93 = pneg %p87
    %p94 = scmp.eq.s32.totalorder %s10, 1
    %p95 = por %p93, %p94
    %p96 = scmp.ne.s32.totalorder %s88, %s91
    %p97 = scmp.eq.s32.totalorder %s10, 0
    %p98 = por %p96, %p97
    %p99 = scmp.ne.s32.totalorder %s88, %s91
    %p100 = scmp.eq.s32.totalorder %s15, 1
    %p101 = por %p99, %p100
    %p102 = scmp.ne.s32.totalorder %s91, %s92
    %p103 = scmp.eq.s32.totalorder %s15, 0
    %p104 = por %p102, %p103
    %p105 = scmp.ne.s32.totalorder %s91, %s92
    %p106 = scmp.eq.s32.totalorder %s16, 1
    %p107 = por %p105, %p106
    %p109 = scmp.ne.s32.totalorder %s92, %s108
    %p110 = scmp.eq.s32.totalorder %s16, 0
    %p111 = por %p109, %p110
    %s112 = ssub.s32 %s10, %s17
    %p113 = scmp.eq.s32.totalorder %s112, 0
    %s115 = sadd.s32 %s114, 1
    %s116 = scalar_select %p113, %s114, %s115
    %p119 = pneg %p113
    %p120 = scmp.eq.s32.totalorder %s10, 1
    %p121 = por %p119, %p120
    %p122 = scmp.ne.s32.totalorder %s114, %s117
    %p123 = scmp.eq.s32.totalorder %s10, 0
    %p124 = por %p122, %p123
    %p125 = scmp.ne.s32.totalorder %s114, %s117
    %p126 = scmp.eq.s32.totalorder %s15, 1
    %p127 = por %p125, %p126
    %p128 = scmp.ne.s32.totalorder %s117, %s118
    %p129 = scmp.eq.s32.totalorder %s15, 0
    %p130 = por %p128, %p129
    %p131 = scmp.ne.s32.totalorder %s117, %s118
    %p132 = scmp.eq.s32.totalorder %s16, 1
    %p133 = por %p131, %p132
    %p135 = scmp.ne.s32.totalorder %s118, %s134
    %p136 = scmp.eq.s32.totalorder %s16, 0
    %p137 = por %p135, %p136
    %p138 = scmp.le.s32.totalorder 1, %s10
    %p139 = scmp.lt.s32.totalorder %s10, 3
    %p140 = pnand %p138, %p139
    %p141 = pneg %p140
    // Predicated region
    $region9: #{lorat_forward.3} parent=5 // pred_check
      _
    $region10: #{lorat_forward.3} parent=5 // pred_check_branch
      %143 = sbr.rel (%p140) target = $region12
    $region11: #{lorat_forward.3} parent=5 // pred_region
      %s144 = ssub.s32 %s10, 1
      // Predicated region
      $region13: #{lorat_forward.3} parent=11 // pred_check
        %p145 = pneg %p57
      $region14: #{lorat_forward.3} parent=11 // pred_check_branch
        %147 = sbr.rel (%p145) target = $region16
      $region15: #{lorat_forward.3} parent=11 // pred_region
        _
      $region16: #{lorat_forward.3} parent=11 // pred_fallthru
        _
      // Predicated region
      $region17: #{lorat_forward.3} parent=11 // pred_check
        %p148 = pneg %p78
      $region18: #{lorat_forward.3} parent=11 // pred_check_branch
        %150 = sbr.rel (%p148) target = $region20
      $region19: #{lorat_forward.3} parent=11 // pred_region
        _
      $region20: #{lorat_forward.3} parent=11 // pred_fallthru
        _
    $region12: #{lorat_forward.3} parent=5 // pred_fallthru
      _
    %p151 = scmp.lt.s32.totalorder %s10, 2
    // Predicated region
    $region21: #{lorat_forward.3} parent=5 // pred_check
      %p152 = pneg %p151
    $region22: #{lorat_forward.3} parent=5 // pred_check_branch
      %154 = sbr.rel (%p152) target = $region24
    $region23: #{lorat_forward.3} parent=5 // pred_region
      // Predicated region
      $region25: #{lorat_forward.3} parent=23 // pred_check
        %p155 = pneg %p30
      $region26: #{lorat_forward.3} parent=23 // pred_check_branch
        %157 = sbr.rel (%p155) target = $region28
      $region27: #{lorat_forward.3} parent=23 // pred_region
        %s158 = smul.u32 10, %s10
        %p159 = scmp.lt.s32.totalorder %s158, 19
        %s160 = scalar_select %p159, %s158, 19
        %s161 = smul.addr %s160, 8
        %s162 = scalar_lea.vmem %s0, %s161
        %s163 = smul.u32 10, %s10
      $region28: #{lorat_forward.3} parent=23 // pred_fallthru
        _
      // Predicated region
      $region29: #{lorat_forward.3} parent=23 // pred_check
        %p164 = pneg %p98
      $region30: #{lorat_forward.3} parent=23 // pred_check_branch
        %166 = sbr.rel (%p164) target = $region32
      $region31: #{lorat_forward.3} parent=23 // pred_region
        %s167 = smul.u32 10, %s10
        %p168 = scmp.lt.s32.totalorder %s167, 19
        %s169 = scalar_select %p168, %s167, 19
        %s170 = smul.addr %s169, 8
        %s171 = scalar_lea.vmem %s3, %s170
        %s172 = smul.u32 10, %s10
      $region32: #{lorat_forward.3} parent=23 // pred_fallthru
        _
    $region24: #{lorat_forward.3} parent=5 // pred_fallthru
      _
    %p173 = scmp.le.s32.totalorder 1, %s10
    %p174 = scmp.lt.s32.totalorder %s10, 3
    %p175 = pnand %p173, %p174
    %p176 = pneg %p175
    // Predicated region
    $region33: #{lorat_forward.3} parent=5 // pred_check
      _
    $region34: #{lorat_forward.3} parent=5 // pred_check_branch
      %178 = sbr.rel (%p175) target = $region36
    $region35: #{lorat_forward.3} parent=5 // pred_region
      %s179 = ssub.s32 %s10, 1
      %s180 = smul.u32 10, %s15
      %p181 = scmp.lt.s32.totalorder %s180, 19
      %s182 = scalar_select %p181, %s180, 19
      %s183 = smul.addr %s182, 8
      %s184 = scalar_lea.vmem %s0, %s183
      %p185 = pneg %p36
      %p186 = pneg %p33
      %p187 = pneg %p57
      %p188 = pneg %p54
      %p189 = pneg %p78
      %p190 = pneg %p75
      %s191 = smul.u32 10, %s15
      %p192 = scmp.lt.s32.totalorder %s191, 19
      %s193 = scalar_select %p192, %s191, 19
      %s194 = smul.addr %s193, 8
      %s195 = scalar_lea.vmem %s3, %s194
      %p196 = pneg %p104
      %p197 = pneg %p101
      %p198 = pneg %p130
      %p199 = pneg %p127
      %s200 = smul.u32 10, %s15
      %p201 = scmp.lt.s32.totalorder %s200, 19
      %s202 = scalar_select %p201, %s200, 19
      %s203 = smul.addr %s202, 8
      %s204 = scalar_lea.vmem %s4, %s203
      %s205 = smul.u32 10, %s15
      %p206 = scmp.lt.s32.totalorder %s205, 19
      %s207 = scalar_select %p206, %s205, 19
      %s208 = smul.addr %s207, 8
      %s209 = scalar_lea.vmem %s0, %s208
      %s210 = smul.u32 10, %s15
      %s211 = smul.u32 10, %s15
      %p212 = scmp.lt.s32.totalorder %s211, 19
      %s213 = scalar_select %p212, %s211, 19
      %s214 = smul.addr %s213, 8
      %s215 = scalar_lea.vmem %s3, %s214
      %s216 = smul.u32 10, %s15
      %s217 = smul.u32 10, %s15
      %p218 = scmp.lt.s32.totalorder %s217, 19
      %s219 = scalar_select %p218, %s217, 19
      %s220 = smul.addr %s219, 8
      %s221 = scalar_lea.vmem %s4, %s220
      %s222 = smul.u32 10, %s15
      %v224 = vld [vmem:[%s209] sm:$0xff]
      %v225 = vld [vmem:[%s209 + $0x8] sm:$0xff]
      %v226 = vld [vmem:[%s209 + $0x10] sm:$0xff]
      %v227 = vld [vmem:[%s209 + $0x18] sm:$0xff]
      %v228 = vld [vmem:[%s209 + $0x20] sm:$0xff]
      %v229 = vld [vmem:[%s209 + $0x28] sm:$0xff]
      %v230 = vld [vmem:[%s209 + $0x30] sm:$0xff]
      %v231 = vld [vmem:[%s209 + $0x38] sm:$0xff]
      %v232 = vld [vmem:[%s209 + $0x40] sm:$0xff]
      %v233 = vld [vmem:[%s209 + $0x48] sm:$0xff]
      %v234 = vpack.c.bf16 %v225, %v224
      %v235 = vpack.c.bf16 %v227, %v226
      %v236 = vpack.c.bf16 %v229, %v228
      %v237 = vpack.c.bf16 %v231, %v230
      %v238 = vpack.c.bf16 %v233, %v232
      %v239 = vld [vmem:[%s1] sm:$0xf]
      %v240 = vld [vmem:[%s1 + $0x4] sm:$0xf]
      %v241 = vld [vmem:[%s1 + $0x8] sm:$0xf]
      %v242 = vld [vmem:[%s1 + $0xc] sm:$0xf]
      %v243 = vld [vmem:[%s1 + $0x10] sm:$0xf]
      %v244 = vld [vmem:[%s1 + $0x14] sm:$0xf]
      %v245 = vld [vmem:[%s2] sm:$0x1]
      %v247 = vlaneseq
      %v248 = vshrl.u32 %v247, 7
      %v249 = vsub.s32 0, %v248
      %v250 = vrot.slane %v245, %v249
      %v258 = vunpack.c.l.b16 %v239
      %v259 = vunpack.c.l.b16 %v240
      %v260 = vunpack.c.l.b16 %v241
      %v261 = vunpack.c.l.b16 %v242
      %v262 = vunpack.c.l.b16 %v243
      %v263 = vunpack.c.l.b16 %v244
      %v264 = vpack.c.b16 %v259, %v258
      %v265 = vpack.c.b16 %v261, %v260
      %v266 = vpack.c.b16 %v263, %v262
      %vm270 = vcmask 392192
      %v272 = vsel %vm270, %v234, 0
      %v275 = vsel %vm270, %v235, 0
      %v278 = vsel %vm270, %v236, 0
      %v281 = vsel %vm270, %v237, 0
      %v284 = vsel %vm270, %v238, 0
      %286 = vmatprep.subr.bf16.mxu0 0
      %287 = vmatpush1.bf16.msra.mxu0 0
      %288 = vmatprep.subr.bf16.mxu0 0
      %289 = vmatpush1.bf16.msra.mxu0 0
      %290 = vmatprep.subr.bf16.mxu0 0
      %291 = vmatpush1.bf16.msra.mxu0 0
      %292 = vmatprep.subr.bf16.mxu0 0
      %293 = vmatpush1.bf16.msra.mxu0 0
      %294 = vmatprep.subr.bf16.mxu0 0
      %295 = vmatpush1.bf16.msra.mxu0 0
      %296 = vmatprep.subr.bf16.mxu0 0
      %297 = vmatpush1.bf16.msra.mxu0 %v266
      %298 = vmatprep.subr.bf16.mxu0 0
      %299 = vmatpush1.bf16.msra.mxu0 %v265
      %300 = vmatprep.subr.bf16.mxu0 0
      %301 = vmatpush1.bf16.msra.mxu0 %v264
      %302 = vmatprep.subr.bf16.mxu0 0
      %303 = vmatpush2.bf16.msra.mxu0 0
      %304 = vmatprep.subr.bf16.mxu0 0
      %305 = vmatpush2.bf16.msra.mxu0 0
      %306 = vmatprep.subr.bf16.mxu0 0
      %307 = vmatpush2.bf16.msra.mxu0 0
      %308 = vmatprep.subr.bf16.mxu0 0
      %309 = vmatpush2.bf16.msra.mxu0 0
      %310 = vmatprep.subr.bf16.mxu0 0
      %311 = vmatpush2.bf16.msra.mxu0 0
      %312 = vmatprep.subr.bf16.mxu0 0
      %313 = vmatpush2.bf16.msra.mxu0 0
      %314 = vmatprep.subr.bf16.mxu0 0
      %315 = vmatpush2.bf16.msra.mxu0 0
      %316 = vmatprep.subr.bf16.mxu0 0
      %317 = vmatpush2.bf16.msra.mxu0 0
      %318 = vmatprep.mubr.bf16.mxu0 0
      %319 = vmatmul.mubr.bf16.gmra.mxu0 %v272
      %v320 = vpop.f32.mrf.mxu0
      %v321 = vadd.f32 %v250, %v320
      %v322 = vpop.f32.mrf.mxu0
      %v323 = vpop.f32.mrf.mxu0
      %v324 = vadd.f32 %v250, %v323
      %v325 = vpop.f32.mrf.mxu0
      %326 = vmatprep.mubr.bf16.mxu0 0
      %327 = vmatmul.mubr.bf16.gmra.mxu0 %v275
      %v328 = vpop.f32.mrf.mxu0
      %v329 = vadd.f32 %v250, %v328
      %v330 = vpop.f32.mrf.mxu0
      %v331 = vpop.f32.mrf.mxu0
      %v332 = vadd.f32 %v250, %v331
      %v333 = vpop.f32.mrf.mxu0
      %334 = vmatprep.mubr.bf16.mxu0 0
      %335 = vmatmul.mubr.bf16.gmra.mxu0 %v278
      %v336 = vpop.f32.mrf.mxu0
      %v337 = vadd.f32 %v250, %v336
      %v338 = vpop.f32.mrf.mxu0
      %v339 = vpop.f32.mrf.mxu0
      %v340 = vadd.f32 %v250, %v339
      %v341 = vpop.f32.mrf.mxu0
      %342 = vmatprep.mubr.bf16.mxu0 0
      %343 = vmatmul.mubr.bf16.gmra.mxu0 %v281
      %v344 = vpop.f32.mrf.mxu0
      %v345 = vadd.f32 %v250, %v344
      %v346 = vpop.f32.mrf.mxu0
      %v347 = vpop.f32.mrf.mxu0
      %v348 = vadd.f32 %v250, %v347
      %v349 = vpop.f32.mrf.mxu0
      %350 = vmatprep.mubr.bf16.mxu0 0
      %351 = vmatmul.mubr.bf16.gmra.mxu0 %v284
      %v352 = vpop.f32.mrf.mxu0
      %v353 = vadd.f32 %v250, %v352
      %v354 = vpop.f32.mrf.mxu0
      %v355 = vpop.f32.mrf.mxu0
      %v356 = vadd.f32 %v250, %v355
      %v357 = vpop.f32.mrf.mxu0
      %358 = vdwg.mxu0
      %v359 = vld [vmem:[%s215] sm:$0xff]
      %v360 = vld [vmem:[%s215 + $0x8] sm:$0xff]
      %v361 = vld [vmem:[%s215 + $0x10] sm:$0xff]
      %v362 = vld [vmem:[%s215 + $0x18] sm:$0xff]
      %v363 = vld [vmem:[%s215 + $0x20] sm:$0xff]
      %v364 = vld [vmem:[%s215 + $0x28] sm:$0xff]
      %v365 = vld [vmem:[%s215 + $0x30] sm:$0xff]
      %v366 = vld [vmem:[%s215 + $0x38] sm:$0xff]
      %v367 = vld [vmem:[%s215 + $0x40] sm:$0xff]
      %v368 = vld [vmem:[%s215 + $0x48] sm:$0xff]
      %v369 = vadd.f32 %v321, %v359
      %v370 = vadd.f32 %v324, %v360
      %v371 = vadd.f32 %v329, %v361
      %v372 = vadd.f32 %v332, %v362
      %v373 = vadd.f32 %v337, %v363
      %v374 = vadd.f32 %v340, %v364
      %v375 = vadd.f32 %v345, %v365
      %v376 = vadd.f32 %v348, %v366
      %v377 = vadd.f32 %v353, %v367
      %v378 = vadd.f32 %v356, %v368
      %vm379 = vcmask 261120
      %380 = vst.msk [vmem:[%s221] sm:$0xff] %vm379, %v369
      %381 = vst.msk [vmem:[%s221 + $0x8] sm:$0xff] %vm379, %v370
      %382 = vst.msk [vmem:[%s221 + $0x10] sm:$0xff] %vm379, %v371
      %383 = vst.msk [vmem:[%s221 + $0x18] sm:$0xff] %vm379, %v372
      %384 = vst.msk [vmem:[%s221 + $0x20] sm:$0xff] %vm379, %v373
      %385 = vst.msk [vmem:[%s221 + $0x28] sm:$0xff] %vm379, %v374
      %386 = vst.msk [vmem:[%s221 + $0x30] sm:$0xff] %vm379, %v375
      %387 = vst.msk [vmem:[%s221 + $0x38] sm:$0xff] %vm379, %v376
      %388 = vst.msk [vmem:[%s221 + $0x40] sm:$0xff] %vm379, %v377
      %389 = vst.msk [vmem:[%s221 + $0x48] sm:$0xff] %vm379, %v378
      %s390 = smul.u32 10, %s15
      %p391 = scmp.lt.s32.totalorder %s390, 19
      %s392 = scalar_select %p391, %s390, 19
      %s393 = smul.addr %s392, 8
      %s394 = scalar_lea.vmem %s4, %s393
      // Predicated region
      $region37: #{lorat_forward.3} parent=35 // pred_check
        %p395 = pneg %p127
      $region38: #{lorat_forward.3} parent=35 // pred_check_branch
        %397 = sbr.rel (%p395) target = $region40
      $region39: #{lorat_forward.3} parent=35 // pred_region
        %s398 = smul.u32 10, %s15
      $region40: #{lorat_forward.3} parent=35 // pred_fallthru
        _
    $region36: #{lorat_forward.3} parent=5 // pred_fallthru
      _
    %p399 = scmp.le.s32.totalorder 2, %s10
    // Predicated region
    $region41: #{lorat_forward.3} parent=5 // pred_check
      %p400 = pneg %p399
    $region42: #{lorat_forward.3} parent=5 // pred_check_branch
      %402 = sbr.rel (%p400) target = $region44
    $region43: #{lorat_forward.3} parent=5 // pred_region
      %s403 = ssub.s32 %s10, 2
      // Predicated region
      $region45: #{lorat_forward.3} parent=43 // pred_check
        %p404 = pneg %p133
      $region46: #{lorat_forward.3} parent=43 // pred_check_branch
        %406 = sbr.rel (%p404) target = $region48
      $region47: #{lorat_forward.3} parent=43 // pred_region
        %s407 = smul.u32 10, %s16
        %p408 = scmp.lt.s32.totalorder %s407, 19
        %s409 = scalar_select %p408, %s407, 19
        %s410 = smul.addr %s409, 8
        %s411 = scalar_lea.vmem %s4, %s410
      $region48: #{lorat_forward.3} parent=43 // pred_fallthru
        _
    $region44: #{lorat_forward.3} parent=5 // pred_fallthru
      _
  $region6: #{lorat_forward.3} parent=0 // loop_footer
    %s14 = sadd.s32 1, %s10
  $region7: #{lorat_forward.3} parent=0 // loop_footer_branch
    %9 = sbr.rel target = $region3
  $region8: #{lorat_forward.3} parent=0 // loop_exit
    _

// kernel: lorat_forward.5
$region0: #{lorat_forward.5}
  #allocation0 [shape = 'u32[]', space=smem, size = 0x4, offset = 0x4, fixed_abs, tag = 'smem constant byte address 0x4 - core index']
  #allocation1 [shape = 'u32[144,128]{1,0:T(1,128)}', space=vmem, size = 0x12000, scoped, tag = 'internal scratch']
  %s0 = inlined_call_operand.vmem [shape: f32[128,32], index: 0, kind: input, shape index: {}]
  %s1 = inlined_call_operand.vmem [shape: f32[1,32], index: 1, kind: input, shape index: {}]
  %s2 = inlined_call_operand.vmem [shape: f32[1,32], index: 2, kind: input, shape index: {}]
  %s3 = inlined_call_operand.vmem [shape: bf16[32,64], index: 3, kind: input, shape index: {}]
  %s4 = inlined_call_operand.vmem [shape: f32[1,64], index: 4, kind: input, shape index: {}]
  %s5 = inlined_call_operand.vmem [shape: f32[128,64], index: 5, kind: output, shape index: {}]
  %s6 = sld [smem:[#allocation0]]
  $region53: #{lorat_forward.5} parent=0
    _
  %s8 = ssub.s32 1, %s6
  %s9 = scalar_select 0, %s8, %s6
  loop: start=0, step=1, limit=4
  $region2: #{lorat_forward.5} parent=0 // loop_pre_header
    _
  $region3: #{lorat_forward.5} parent=0 // loop_header
    %s11 = sphi 0, %s15
    %p12 = scmp.ge.s32.totalorder %s11, 4
    %s21 = sphi 0, %s23
    %s24 = sphi 0, %s21
    %s25 = sphi 0, %s24
    %s41 = sphi 0, %s25
    %s45 = sphi 0, %s45
    %s47 = sphi 0, %s45
    %s48 = sphi 0, %s47
    %s62 = sphi 0, %s48
    %s66 = sphi 0, %s66
    %s68 = sphi 0, %s66
    %s69 = sphi 0, %s68
    %s83 = sphi 0, %s69
    %s87 = sphi 0, %s87
    %s89 = sphi 0, %s87
    %s90 = sphi 0, %s89
    %s104 = sphi 0, %s90
    %s108 = sphi 0, %s108
    %s110 = sphi 0, %s108
    %s111 = sphi 0, %s110
    %s125 = sphi 0, %s111
    %s131 = sphi 0, %s133
    %s134 = sphi 0, %s131
    %s135 = sphi 0, %s134
    %s151 = sphi 0, %s135
  $region4: #{lorat_forward.5} parent=0 // loop_header_branch
    %14 = sbr.rel (%p12) target = $region8
  $region5: #{lorat_forward.5} parent=0 // loop_body
    %s16 = ssub.s32 %s11, 1
    %s17 = ssub.s32 %s11, 2
    %s18 = sadd.s32 %s11, 1
    %s19 = ssub.s32 %s11, %s18
    %p20 = scmp.eq.s32.totalorder %s19, 0
    %s22 = sadd.s32 %s21, 1
    %s23 = scalar_select %p20, %s21, %s22
    %p26 = pneg %p20
    %p27 = scmp.eq.s32.totalorder %s11, 1
    %p28 = por %p26, %p27
    %p29 = scmp.ne.s32.totalorder %s21, %s24
    %p30 = scmp.eq.s32.totalorder %s11, 0
    %p31 = por %p29, %p30
    %p32 = scmp.ne.s32.totalorder %s21, %s24
    %p33 = scmp.eq.s32.totalorder %s16, 1
    %p34 = por %p32, %p33
    %p35 = scmp.ne.s32.totalorder %s24, %s25
    %p36 = scmp.eq.s32.totalorder %s16, 0
    %p37 = por %p35, %p36
    %p38 = scmp.ne.s32.totalorder %s24, %s25
    %p39 = scmp.eq.s32.totalorder %s17, 1
    %p40 = por %p38, %p39
    %p42 = scmp.ne.s32.totalorder %s25, %s41
    %p43 = scmp.eq.s32.totalorder %s17, 0
    %p44 = por %p42, %p43
    %s46 = sadd.s32 %s45, 1
    %p49 = scmp.eq.s32.totalorder %s11, 1
    %p50 = scmp.ne.s32.totalorder %s45, %s47
    %p51 = scmp.eq.s32.totalorder %s11, 0
    %p52 = por %p50, %p51
    %p53 = scmp.ne.s32.totalorder %s45, %s47
    %p54 = scmp.eq.s32.totalorder %s16, 1
    %p55 = por %p53, %p54
    %p56 = scmp.ne.s32.totalorder %s47, %s48
    %p57 = scmp.eq.s32.totalorder %s16, 0
    %p58 = por %p56, %p57
    %p59 = scmp.ne.s32.totalorder %s47, %s48
    %p60 = scmp.eq.s32.totalorder %s17, 1
    %p61 = por %p59, %p60
    %p63 = scmp.ne.s32.totalorder %s48, %s62
    %p64 = scmp.eq.s32.totalorder %s17, 0
    %p65 = por %p63, %p64
    %s67 = sadd.s32 %s66, 1
    %p70 = scmp.eq.s32.totalorder %s11, 1
    %p71 = scmp.ne.s32.totalorder %s66, %s68
    %p72 = scmp.eq.s32.totalorder %s11, 0
    %p73 = por %p71, %p72
    %p74 = scmp.ne.s32.totalorder %s66, %s68
    %p75 = scmp.eq.s32.totalorder %s16, 1
    %p76 = por %p74, %p75
    %p77 = scmp.ne.s32.totalorder %s68, %s69
    %p78 = scmp.eq.s32.totalorder %s16, 0
    %p79 = por %p77, %p78
    %p80 = scmp.ne.s32.totalorder %s68, %s69
    %p81 = scmp.eq.s32.totalorder %s17, 1
    %p82 = por %p80, %p81
    %p84 = scmp.ne.s32.totalorder %s69, %s83
    %p85 = scmp.eq.s32.totalorder %s17, 0
    %p86 = por %p84, %p85
    %s88 = sadd.s32 %s87, 1
    %p91 = scmp.eq.s32.totalorder %s11, 1
    %p92 = scmp.ne.s32.totalorder %s87, %s89
    %p93 = scmp.eq.s32.totalorder %s11, 0
    %p94 = por %p92, %p93
    %p95 = scmp.ne.s32.totalorder %s87, %s89
    %p96 = scmp.eq.s32.totalorder %s16, 1
    %p97 = por %p95, %p96
    %p98 = scmp.ne.s32.totalorder %s89, %s90
    %p99 = scmp.eq.s32.totalorder %s16, 0
    %p100 = por %p98, %p99
    %p101 = scmp.ne.s32.totalorder %s89, %s90
    %p102 = scmp.eq.s32.totalorder %s17, 1
    %p103 = por %p101, %p102
    %p105 = scmp.ne.s32.totalorder %s90, %s104
    %p106 = scmp.eq.s32.totalorder %s17, 0
    %p107 = por %p105, %p106
    %s109 = sadd.s32 %s108, 1
    %p112 = scmp.eq.s32.totalorder %s11, 1
    %p113 = scmp.ne.s32.totalorder %s108, %s110
    %p114 = scmp.eq.s32.totalorder %s11, 0
    %p115 = por %p113, %p114
    %p116 = scmp.ne.s32.totalorder %s108, %s110
    %p117 = scmp.eq.s32.totalorder %s16, 1
    %p118 = por %p116, %p117
    %p119 = scmp.ne.s32.totalorder %s110, %s111
    %p120 = scmp.eq.s32.totalorder %s16, 0
    %p121 = por %p119, %p120
    %p122 = scmp.ne.s32.totalorder %s110, %s111
    %p123 = scmp.eq.s32.totalorder %s17, 1
    %p124 = por %p122, %p123
    %p126 = scmp.ne.s32.totalorder %s111, %s125
    %p127 = scmp.eq.s32.totalorder %s17, 0
    %p128 = por %p126, %p127
    %s129 = ssub.s32 %s11, %s18
    %p130 = scmp.eq.s32.totalorder %s129, 0
    %s132 = sadd.s32 %s131, 1
    %s133 = scalar_select %p130, %s131, %s132
    %p136 = pneg %p130
    %p137 = scmp.eq.s32.totalorder %s11, 1
    %p138 = por %p136, %p137
    %p139 = scmp.ne.s32.totalorder %s131, %s134
    %p140 = scmp.eq.s32.totalorder %s11, 0
    %p141 = por %p139, %p140
    %p142 = scmp.ne.s32.totalorder %s131, %s134
    %p143 = scmp.eq.s32.totalorder %s16, 1
    %p144 = por %p142, %p143
    %p145 = scmp.ne.s32.totalorder %s134, %s135
    %p146 = scmp.eq.s32.totalorder %s16, 0
    %p147 = por %p145, %p146
    %p148 = scmp.ne.s32.totalorder %s134, %s135
    %p149 = scmp.eq.s32.totalorder %s17, 1
    %p150 = por %p148, %p149
    %p152 = scmp.ne.s32.totalorder %s135, %s151
    %p153 = scmp.eq.s32.totalorder %s17, 0
    %p154 = por %p152, %p153
    %p155 = scmp.le.s32.totalorder 1, %s11
    %p156 = scmp.lt.s32.totalorder %s11, 3
    %p157 = pnand %p155, %p156
    %p158 = pneg %p157
    // Predicated region
    $region9: #{lorat_forward.5} parent=5 // pred_check
      _
    $region10: #{lorat_forward.5} parent=5 // pred_check_branch
      %160 = sbr.rel (%p157) target = $region12
    $region11: #{lorat_forward.5} parent=5 // pred_region
      %s161 = ssub.s32 %s11, 1
      // Predicated region
      $region13: #{lorat_forward.5} parent=11 // pred_check
        %p162 = pneg %p58
      $region14: #{lorat_forward.5} parent=11 // pred_check_branch
        %164 = sbr.rel (%p162) target = $region16
      $region15: #{lorat_forward.5} parent=11 // pred_region
        _
      $region16: #{lorat_forward.5} parent=11 // pred_fallthru
        _
      // Predicated region
      $region17: #{lorat_forward.5} parent=11 // pred_check
        %p165 = pneg %p79
      $region18: #{lorat_forward.5} parent=11 // pred_check_branch
        %167 = sbr.rel (%p165) target = $region20
      $region19: #{lorat_forward.5} parent=11 // pred_region
        _
      $region20: #{lorat_forward.5} parent=11 // pred_fallthru
        _
      // Predicated region
      $region21: #{lorat_forward.5} parent=11 // pred_check
        %p168 = pneg %p100
      $region22: #{lorat_forward.5} parent=11 // pred_check_branch
        %170 = sbr.rel (%p168) target = $region24
      $region23: #{lorat_forward.5} parent=11 // pred_region
        _
      $region24: #{lorat_forward.5} parent=11 // pred_fallthru
        _
      // Predicated region
      $region25: #{lorat_forward.5} parent=11 // pred_check
        %p171 = pneg %p121
      $region26: #{lorat_forward.5} parent=11 // pred_check_branch
        %173 = sbr.rel (%p171) target = $region28
      $region27: #{lorat_forward.5} parent=11 // pred_region
        _
      $region28: #{lorat_forward.5} parent=11 // pred_fallthru
        _
    $region12: #{lorat_forward.5} parent=5 // pred_fallthru
      _
    %p174 = scmp.lt.s32.totalorder %s11, 2
    // Predicated region
    $region29: #{lorat_forward.5} parent=5 // pred_check
      %p175 = pneg %p174
    $region30: #{lorat_forward.5} parent=5 // pred_check_branch
      %177 = sbr.rel (%p175) target = $region32
    $region31: #{lorat_forward.5} parent=5 // pred_region
      // Predicated region
      $region33: #{lorat_forward.5} parent=31 // pred_check
        %p178 = pneg %p31
      $region34: #{lorat_forward.5} parent=31 // pred_check_branch
        %180 = sbr.rel (%p178) target = $region36
      $region35: #{lorat_forward.5} parent=31 // pred_region
        %s181 = smul.u32 8, %s11
        %p182 = scmp.lt.s32.totalorder %s181, 15
        %s183 = scalar_select %p182, %s181, 15
        %s184 = smul.addr %s183, 8
        %s185 = scalar_lea.vmem %s0, %s184
        %s186 = smul.u32 8, %s11
      $region36: #{lorat_forward.5} parent=31 // pred_fallthru
        _
    $region32: #{lorat_forward.5} parent=5 // pred_fallthru
      _
    %p187 = scmp.le.s32.totalorder 1, %s11
    %p188 = scmp.lt.s32.totalorder %s11, 3
    %p189 = pnand %p187, %p188
    %p190 = pneg %p189
    // Predicated region
    $region37: #{lorat_forward.5} parent=5 // pred_check
      _
    $region38: #{lorat_forward.5} parent=5 // pred_check_branch
      %192 = sbr.rel (%p189) target = $region40
    $region39: #{lorat_forward.5} parent=5 // pred_region
      %s193 = ssub.s32 %s11, 1
      %s194 = smul.u32 8, %s16
      %p195 = scmp.lt.s32.totalorder %s194, 15
      %s196 = scalar_select %p195, %s194, 15
      %s197 = smul.addr %s196, 8
      %s198 = scalar_lea.vmem %s0, %s197
      %p199 = pneg %p37
      %p200 = pneg %p34
      %p201 = pneg %p58
      %p202 = pneg %p55
      %p203 = pneg %p79
      %p204 = pneg %p76
      %p205 = pneg %p100
      %p206 = pneg %p97
      %p207 = pneg %p121
      %p208 = pneg %p118
      %p209 = pneg %p147
      %p210 = pneg %p144
      %s211 = smul.u32 8, %s16
      %p212 = scmp.lt.s32.totalorder %s211, 15
      %s213 = scalar_select %p212, %s211, 15
      %s214 = smul.addr %s213, 8
      %s215 = scalar_lea.vmem %s5, %s214
      %s216 = smul.u32 8, %s16
      %p217 = scmp.lt.s32.totalorder %s216, 15
      %s218 = scalar_select %p217, %s216, 15
      %s219 = smul.addr %s218, 8
      %s220 = scalar_lea.vmem %s0, %s219
      %s221 = smul.u32 8, %s16
      %s222 = smul.u32 8, %s16
      %p223 = scmp.lt.s32.totalorder %s222, 15
      %s224 = scalar_select %p223, %s222, 15
      %s225 = smul.addr %s224, 8
      %s226 = scalar_lea.vmem %s5, %s225
      %s227 = smul.u32 8, %s16
      %v229 = vld [vmem:[%s220] sm:$0xff]
      %v230 = vld [vmem:[%s220 + $0x8] sm:$0xff]
      %v231 = vld [vmem:[%s220 + $0x10] sm:$0xff]
      %v232 = vld [vmem:[%s220 + $0x18] sm:$0xff]
      %v233 = vld [vmem:[%s220 + $0x20] sm:$0xff]
      %v234 = vld [vmem:[%s220 + $0x28] sm:$0xff]
      %v235 = vld [vmem:[%s220 + $0x30] sm:$0xff]
      %v236 = vld [vmem:[%s220 + $0x38] sm:$0xff]
      %v237 = vld [vmem:[%s1] sm:$0x1]
      %v238 = vld [vmem:[%s2] sm:$0x1]
      %vm239 = vcmask 261120
      %v240 = vsel %vm239, %v229, 0.0
      %241 = vadd.xlane.f32.xlu0 %v240
      %v242 = vpop.xlane.xlu0 %241
      %v243 = vsel %vm239, %v230, 0.0
      %244 = vadd.xlane.f32.xlu0 %v243
      %v245 = vpop.xlane.xlu0 %244
      %v246 = vsel %vm239, %v231, 0.0
      %247 = vadd.xlane.f32.xlu0 %v246
      %v248 = vpop.xlane.xlu0 %247
      %v249 = vsel %vm239, %v232, 0.0
      %250 = vadd.xlane.f32.xlu0 %v249
      %v251 = vpop.xlane.xlu0 %250
      %v252 = vsel %vm239, %v233, 0.0
      %253 = vadd.xlane.f32.xlu0 %v252
      %v254 = vpop.xlane.xlu0 %253
      %v255 = vsel %vm239, %v234, 0.0
      %256 = vadd.xlane.f32.xlu0 %v255
      %v257 = vpop.xlane.xlu0 %256
      %v258 = vsel %vm239, %v235, 0.0
      %259 = vadd.xlane.f32.xlu0 %v258
      %v260 = vpop.xlane.xlu0 %259
      %v261 = vsel %vm239, %v236, 0.0
      %262 = vadd.xlane.f32.xlu0 %v261
      %v263 = vpop.xlane.xlu0 %262
      %v264 = vrcp.pop 32.0
      %v265 = vmul.f32 %v242, %v264
      %v266 = vmul.f32 %v245, %v264
      %v267 = vmul.f32 %v248, %v264
      %v268 = vmul.f32 %v251, %v264
      %v269 = vmul.f32 %v254, %v264
      %v270 = vmul.f32 %v257, %v264
      %v271 = vmul.f32 %v260, %v264
      %v272 = vmul.f32 %v263, %v264
      %v273 = vsub.f32 %v229, %v265
      %v274 = vsub.f32 %v230, %v266
      %v275 = vsub.f32 %v231, %v267
      %v276 = vsub.f32 %v232, %v268
      %v277 = vsub.f32 %v233, %v269
      %v278 = vsub.f32 %v234, %v270
      %v279 = vsub.f32 %v235, %v271
      %v280 = vsub.f32 %v236, %v272
      %v281 = vmul.f32 %v273, %v273
      %v282 = vmul.f32 %v274, %v274
      %v283 = vmul.f32 %v275, %v275
      %v284 = vmul.f32 %v276, %v276
      %v285 = vmul.f32 %v277, %v277
      %v286 = vmul.f32 %v278, %v278
      %v287 = vmul.f32 %v279, %v279
      %v288 = vmul.f32 %v280, %v280
      %v289 = vsel %vm239, %v281, 0.0
      %290 = vadd.xlane.f32.xlu0 %v289
      %v291 = vpop.xlane.xlu0 %290
      %v292 = vsel %vm239, %v282, 0.0
      %293 = vadd.xlane.f32.xlu0 %v292
      %v294 = vpop.xlane.xlu0 %293
      %v295 = vsel %vm239, %v283, 0.0
      %296 = vadd.xlane.f32.xlu0 %v295
      %v297 = vpop.xlane.xlu0 %296
      %v298 = vsel %vm239, %v284, 0.0
      %299 = vadd.xlane.f32.xlu0 %v298
      %v300 = vpop.xlane.xlu0 %299
      %v301 = vsel %vm239, %v285, 0.0
      %302 = vadd.xlane.f32.xlu0 %v301
      %v303 = vpop.xlane.xlu0 %302
      %v304 = vsel %vm239, %v286, 0.0
      %305 = vadd.xlane.f32.xlu0 %v304
      %v306 = vpop.xlane.xlu0 %305
      %v307 = vsel %vm239, %v287, 0.0
      %308 = vadd.xlane.f32.xlu0 %v307
      %v309 = vpop.xlane.xlu0 %308
      %v310 = vsel %vm239, %v288, 0.0
      %311 = vadd.xlane.f32.xlu0 %v310
      %v312 = vpop.xlane.xlu0 %311
      %v313 = vmul.f32 %v291, %v264
      %v314 = vmul.f32 %v294, %v264
      %v315 = vmul.f32 %v297, %v264
      %v316 = vmul.f32 %v300, %v264
      %v317 = vmul.f32 %v303, %v264
      %v318 = vmul.f32 %v306, %v264
      %v319 = vmul.f32 %v309, %v264
      %v320 = vmul.f32 %v312, %v264
      %v321 = vadd.f32 %v313, 1e-06
      %v322 = vadd.f32 %v314, 1e-06
      %v323 = vadd.f32 %v315, 1e-06
      %v324 = vadd.f32 %v316, 1e-06
      %v325 = vadd.f32 %v317, 1e-06
      %v326 = vadd.f32 %v318, 1e-06
      %v327 = vadd.f32 %v319, 1e-06
      %v328 = vadd.f32 %v320, 1e-06
      %v329 = vrsqrt.pop %v321
      %v330 = vrsqrt.pop %v322
      %v331 = vrsqrt.pop %v323
      %v332 = vrsqrt.pop %v324
      %v333 = vrsqrt.pop %v325
      %v334 = vrsqrt.pop %v326
      %v335 = vrsqrt.pop %v327
      %v336 = vrsqrt.pop %v328
      %v337 = vmul.f32 %v273, %v329
      %v338 = vmul.f32 %v274, %v330
      %v339 = vmul.f32 %v275, %v331
      %v340 = vmul.f32 %v276, %v332
      %v341 = vmul.f32 %v277, %v333
      %v342 = vmul.f32 %v278, %v334
      %v343 = vmul.f32 %v279, %v335
      %v344 = vmul.f32 %v280, %v336
      %v346 = vlaneseq
      %v347 = vshrl.u32 %v346, 7
      %v348 = vsub.s32 0, %v347
      %v349 = vrot.slane %v237, %v348
      %v351 = vmul.f32 %v337, %v349
      %v352 = vmul.f32 %v338, %v349
      %v353 = vmul.f32 %v339, %v349
      %v354 = vmul.f32 %v340, %v349
      %v355 = vmul.f32 %v341, %v349
      %v356 = vmul.f32 %v342, %v349
      %v357 = vmul.f32 %v343, %v349
      %v358 = vmul.f32 %v344, %v349
      %v360 = vlaneseq
      %v361 = vshrl.u32 %v360, 7
      %v362 = vsub.s32 0, %v361
      %v363 = vrot.slane %v238, %v362
      %v365 = vadd.f32 %v351, %v363
      %v366 = vadd.f32 %v352, %v363
      %v367 = vadd.f32 %v353, %v363
      %v368 = vadd.f32 %v354, %v363
      %v369 = vadd.f32 %v355, %v363
      %v370 = vadd.f32 %v356, %v363
      %v371 = vadd.f32 %v357, %v363
      %v372 = vadd.f32 %v358, %v363
      %v373 = vpack.c.bf16 %v366, %v365
      %v374 = vpack.c.bf16 %v368, %v367
      %v375 = vpack.c.bf16 %v370, %v369
      %v376 = vpack.c.bf16 %v372, %v371
      %v377 = vld [vmem:[%s3] sm:$0xf]
      %v378 = vld [vmem:[%s3 + $0x4] sm:$0xf]
      %v379 = vld [vmem:[%s3 + $0x8] sm:$0xf]
      %v380 = vld [vmem:[%s3 + $0xc] sm:$0xf]
      %v381 = vld [vmem:[%s4] sm:$0x1]
      %v383 = vlaneseq
      %v384 = vshrl.u32 %v383, 7
      %v385 = vsub.s32 0, %v384
      %v386 = vrot.slane %v381, %v385
      %v392 = vunpack.c.l.b16 %v377
      %v393 = vunpack.c.l.b16 %v378
      %v394 = vunpack.c.l.b16 %v379
      %v395 = vunpack.c.l.b16 %v380
      %v396 = vpack.c.b16 %v393, %v392
      %v397 = vpack.c.b16 %v395, %v394
      %v401 = vsel %vm239, %v373, 0
      %v404 = vsel %vm239, %v374, 0
      %v407 = vsel %vm239, %v375, 0
      %v410 = vsel %vm239, %v376, 0
      %412 = vmatprep.subr.bf16.mxu0 0
      %413 = vmatpush1.bf16.msra.mxu0 0
      %414 = vmatprep.subr.bf16.mxu0 0
      %415 = vmatpush1.bf16.msra.mxu0 0
      %416 = vmatprep.subr.bf16.mxu0 0
      %417 = vmatpush1.bf16.msra.mxu0 0
      %418 = vmatprep.subr.bf16.mxu0 0
      %419 = vmatpush1.bf16.msra.mxu0 0
      %420 = vmatprep.subr.bf16.mxu0 0
      %421 = vmatpush1.bf16.msra.mxu0 0
      %422 = vmatprep.subr.bf16.mxu0 0
      %423 = vmatpush1.bf16.msra.mxu0 0
      %424 = vmatprep.subr.bf16.mxu0 0
      %425 = vmatpush1.bf16.msra.mxu0 %v397
      %426 = vmatprep.subr.bf16.mxu0 0
      %427 = vmatpush1.bf16.msra.mxu0 %v396
      %428 = vmatprep.subr.bf16.mxu0 0
      %429 = vmatpush2.bf16.msra.mxu0 0
      %430 = vmatprep.subr.bf16.mxu0 0
      %431 = vmatpush2.bf16.msra.mxu0 0
      %432 = vmatprep.subr.bf16.mxu0 0
      %433 = vmatpush2.bf16.msra.mxu0 0
      %434 = vmatprep.subr.bf16.mxu0 0
      %435 = vmatpush2.bf16.msra.mxu0 0
      %436 = vmatprep.subr.bf16.mxu0 0
      %437 = vmatpush2.bf16.msra.mxu0 0
      %438 = vmatprep.subr.bf16.mxu0 0
      %439 = vmatpush2.bf16.msra.mxu0 0
      %440 = vmatprep.subr.bf16.mxu0 0
      %441 = vmatpush2.bf16.msra.mxu0 0
      %442 = vmatprep.subr.bf16.mxu0 0
      %443 = vmatpush2.bf16.msra.mxu0 0
      %444 = vmatprep.mubr.bf16.mxu0 0
      %445 = vmatmul.mubr.bf16.gmra.mxu0 %v401
      %v446 = vpop.f32.mrf.mxu0
      %v447 = vadd.f32 %v386, %v446
      %v448 = vpop.f32.mrf.mxu0
      %v449 = vpop.f32.mrf.mxu0
      %v450 = vadd.f32 %v386, %v449
      %v451 = vpop.f32.mrf.mxu0
      %452 = vmatprep.mubr.bf16.mxu0 0
      %453 = vmatmul.mubr.bf16.gmra.mxu0 %v404
      %v454 = vpop.f32.mrf.mxu0
      %v455 = vadd.f32 %v386, %v454
      %v456 = vpop.f32.mrf.mxu0
      %v457 = vpop.f32.mrf.mxu0
      %v458 = vadd.f32 %v386, %v457
      %v459 = vpop.f32.mrf.mxu0
      %460 = vmatprep.mubr.bf16.mxu0 0
      %461 = vmatmul.mubr.bf16.gmra.mxu0 %v407
      %v462 = vpop.f32.mrf.mxu0
      %v463 = vadd.f32 %v386, %v462
      %v464 = vpop.f32.mrf.mxu0
      %v465 = vpop.f32.mrf.mxu0
      %v466 = vadd.f32 %v386, %v465
      %v467 = vpop.f32.mrf.mxu0
      %468 = vmatprep.mubr.bf16.mxu0 0
      %469 = vmatmul.mubr.bf16.gmra.mxu0 %v410
      %v470 = vpop.f32.mrf.mxu0
      %v471 = vadd.f32 %v386, %v470
      %v472 = vpop.f32.mrf.mxu0
      %v473 = vpop.f32.mrf.mxu0
      %v474 = vadd.f32 %v386, %v473
      %v475 = vpop.f32.mrf.mxu0
      %476 = vdwg.mxu0
      %v477 = vmul.f32 %v447, 0.5
      %v478 = vmul.f32 %v450, 0.5
      %v479 = vmul.f32 %v455, 0.5
      %v480 = vmul.f32 %v458, 0.5
      %v481 = vmul.f32 %v463, 0.5
      %v482 = vmul.f32 %v466, 0.5
      %v483 = vmul.f32 %v471, 0.5
      %v484 = vmul.f32 %v474, 0.5
      %v485 = vmul.f32 %v447, 0.70710677
      %v486 = vmul.f32 %v450, 0.70710677
      %v487 = vmul.f32 %v455, 0.70710677
      %v488 = vmul.f32 %v458, 0.70710677
      %v489 = vmul.f32 %v463, 0.70710677
      %v490 = vmul.f32 %v466, 0.70710677
      %v491 = vmul.f32 %v471, 0.70710677
      %v492 = vmul.f32 %v474, 0.70710677
      %v493 = vand.u32 2147483647, %v485
      %v494 = vand.u32 2147483647, %v486
      %v495 = vand.u32 2147483647, %v487
      %v496 = vand.u32 2147483647, %v488
      %v497 = vand.u32 2147483647, %v489
      %v498 = vand.u32 2147483647, %v490
      %v499 = vand.u32 2147483647, %v491
      %v500 = vand.u32 2147483647, %v492
      %v501 = vmul.f32 %v493, 0.3275911
      %v502 = vmul.f32 %v494, 0.3275911
      %v503 = vmul.f32 %v495, 0.3275911
      %v504 = vmul.f32 %v496, 0.3275911
      %v505 = vmul.f32 %v497, 0.3275911
      %v506 = vmul.f32 %v498, 0.3275911
      %v507 = vmul.f32 %v499, 0.3275911
      %v508 = vmul.f32 %v500, 0.3275911
      %v509 = vadd.f32 %v501, 1.0
      %v510 = vadd.f32 %v502, 1.0
      %v511 = vadd.f32 %v503, 1.0
      %v512 = vadd.f32 %v504, 1.0
      %v513 = vadd.f32 %v505, 1.0
      %v514 = vadd.f32 %v506, 1.0
      %v515 = vadd.f32 %v507, 1.0
      %v516 = vadd.f32 %v508, 1.0
      %v517 = vrcp.pop %v509
      %v518 = vmul.f32 1.0, %v517
      %v519 = vrcp.pop %v510
      %v520 = vmul.f32 1.0, %v519
      %v521 = vrcp.pop %v511
      %v522 = vmul.f32 1.0, %v521
      %v523 = vrcp.pop %v512
      %v524 = vmul.f32 1.0, %v523
      %v525 = vrcp.pop %v513
      %v526 = vmul.f32 1.0, %v525
      %v527 = vrcp.pop %v514
      %v528 = vmul.f32 1.0, %v527
      %v529 = vrcp.pop %v515
      %v530 = vmul.f32 1.0, %v529
      %v531 = vrcp.pop %v516
      %v532 = vmul.f32 1.0, %v531
      %v533 = vmul.f32 %v518, 1.0614054
      %v534 = vmul.f32 %v520, 1.0614054
      %v535 = vmul.f32 %v522, 1.0614054
      %v536 = vmul.f32 %v524, 1.0614054
      %v537 = vmul.f32 %v526, 1.0614054
      %v538 = vmul.f32 %v528, 1.0614054
      %v539 = vmul.f32 %v530, 1.0614054
      %v540 = vmul.f32 %v532, 1.0614054
      %v541 = vadd.f32 %v533, -1.4531521
      %v542 = vadd.f32 %v534, -1.4531521
      %v543 = vadd.f32 %v535, -1.4531521
      %v544 = vadd.f32 %v536, -1.4531521
      %v545 = vadd.f32 %v537, -1.4531521
      %v546 = vadd.f32 %v538, -1.4531521
      %v547 = vadd.f32 %v539, -1.4531521
      %v548 = vadd.f32 %v540, -1.4531521
      %v549 = vmul.f32 %v541, %v518
      %v550 = vmul.f32 %v542, %v520
      %v551 = vmul.f32 %v543, %v522
      %v552 = vmul.f32 %v544, %v524
      %v553 = vmul.f32 %v545, %v526
      %v554 = vmul.f32 %v546, %v528
      %v555 = vmul.f32 %v547, %v530
      %v556 = vmul.f32 %v548, %v532
      %v557 = vadd.f32 %v549, 1.4214138
      %v558 = vadd.f32 %v550, 1.4214138
      %v559 = vadd.f32 %v551, 1.4214138
      %v560 = vadd.f32 %v552, 1.4214138
      %v561 = vadd.f32 %v553, 1.4214138
      %v562 = vadd.f32 %v554, 1.4214138
      %v563 = vadd.f32 %v555, 1.4214138
      %v564 = vadd.f32 %v556, 1.4214138
      %v565 = vmul.f32 %v557, %v518
      %v566 = vmul.f32 %v558, %v520
      %v567 = vmul.f32 %v559, %v522
      %v568 = vmul.f32 %v560, %v524
      %v569 = vmul.f32 %v561, %v526
      %v570 = vmul.f32 %v562, %v528
      %v571 = vmul.f32 %v563, %v530
      %v572 = vmul.f32 %v564, %v532
      %v573 = vadd.f32 %v565, -0.28449672
      %v574 = vadd.f32 %v566, -0.28449672
      %v575 = vadd.f32 %v567, -0.28449672
      %v576 = vadd.f32 %v568, -0.28449672
      %v577 = vadd.f32 %v569, -0.28449672
      %v578 = vadd.f32 %v570, -0.28449672
      %v579 = vadd.f32 %v571, -0.28449672
      %v580 = vadd.f32 %v572, -0.28449672
      %v581 = vmul.f32 %v573, %v518
      %v582 = vmul.f32 %v574, %v520
      %v583 = vmul.f32 %v575, %v522
      %v584 = vmul.f32 %v576, %v524
      %v585 = vmul.f32 %v577, %v526
      %v586 = vmul.f32 %v578, %v528
      %v587 = vmul.f32 %v579, %v530
      %v588 = vmul.f32 %v580, %v532
      %v589 = vadd.f32 %v581, 0.2548296
      %v590 = vadd.f32 %v582, 0.2548296
      %v591 = vadd.f32 %v583, 0.2548296
      %v592 = vadd.f32 %v584, 0.2548296
      %v593 = vadd.f32 %v585, 0.2548296
      %v594 = vadd.f32 %v586, 0.2548296
      %v595 = vadd.f32 %v587, 0.2548296
      %v596 = vadd.f32 %v588, 0.2548296
      %v597 = vmul.f32 %v589, %v518
      %v598 = vmul.f32 %v590, %v520
      %v599 = vmul.f32 %v591, %v522
      %v600 = vmul.f32 %v592, %v524
      %v601 = vmul.f32 %v593, %v526
      %v602 = vmul.f32 %v594, %v528
      %v603 = vmul.f32 %v595, %v530
      %v604 = vmul.f32 %v596, %v532
      %v605 = vsub.f32 0.0, %v493
      %v606 = vsub.f32 0.0, %v494
      %v607 = vsub.f32 0.0, %v495
      %v608 = vsub.f32 0.0, %v496
      %v609 = vsub.f32 0.0, %v497
      %v610 = vsub.f32 0.0, %v498
      %v611 = vsub.f32 0.0, %v499
      %v612 = vsub.f32 0.0, %v500
      %v613 = vmul.f32 %v605, %v493
      %v614 = vmul.f32 %v606, %v494
      %v615 = vmul.f32 %v607, %v495
      %v616 = vmul.f32 %v608, %v496
      %v617 = vmul.f32 %v609, %v497
      %v618 = vmul.f32 %v610, %v498
      %v619 = vmul.f32 %v611, %v499
      %v620 = vmul.f32 %v612, %v500
      %v621 = vmul.f32 %v613, 1.442695
      %v622 = vpow.pop %v621
      %v623 = vmul.f32 %v614, 1.442695
      %v624 = vpow.pop %v623
      %v625 = vmul.f32 %v615, 1.442695
      %v626 = vpow.pop %v625
      %v627 = vmul.f32 %v616, 1.442695
      %v628 = vpow.pop %v627
      %v629 = vmul.f32 %v617, 1.442695
      %v630 = vpow.pop %v629
      %v631 = vmul.f32 %v618, 1.442695
      %v632 = vpow.pop %v631
      %v633 = vmul.f32 %v619, 1.442695
      %v634 = vpow.pop %v633
      %v635 = vmul.f32 %v620, 1.442695
      %v636 = vpow.pop %v635
      %v637 = vmul.f32 %v597, %v622
      %v638 = vmul.f32 %v598, %v624
      %v639 = vmul.f32 %v599, %v626
      %v640 = vmul.f32 %v600, %v628
      %v641 = vmul.f32 %v601, %v630
      %v642 = vmul.f32 %v602, %v632
      %v643 = vmul.f32 %v603, %v634
      %v644 = vmul.f32 %v604, %v636
      %v645 = vsub.f32 1.0, %v637
      %v646 = vsub.f32 1.0, %v638
      %v647 = vsub.f32 1.0, %v639
      %v648 = vsub.f32 1.0, %v640
      %v649 = vsub.f32 1.0, %v641
      %v650 = vsub.f32 1.0, %v642
      %v651 = vsub.f32 1.0, %v643
      %v652 = vsub.f32 1.0, %v644
      %vm653 = vcmp.ge.f32.partialorder %v485, 0.0
      %vm654 = vcmp.ge.f32.partialorder %v486, 0.0
      %vm655 = vcmp.ge.f32.partialorder %v487, 0.0
      %vm656 = vcmp.ge.f32.partialorder %v488, 0.0
      %vm657 = vcmp.ge.f32.partialorder %v489, 0.0
      %vm658 = vcmp.ge.f32.partialorder %v490, 0.0
      %vm659 = vcmp.ge.f32.partialorder %v491, 0.0
      %vm660 = vcmp.ge.f32.partialorder %v492, 0.0
      %v661 = vsub.f32 0.0, %v645
      %v662 = vsub.f32 0.0, %v646
      %v663 = vsub.f32 0.0, %v647
      %v664 = vsub.f32 0.0, %v648
      %v665 = vsub.f32 0.0, %v649
      %v666 = vsub.f32 0.0, %v650
      %v667 = vsub.f32 0.0, %v651
      %v668 = vsub.f32 0.0, %v652
      %v669 = vsel %vm653, %v645, %v661
      %v670 = vsel %vm654, %v646, %v662
      %v671 = vsel %vm655, %v647, %v663
      %v672 = vsel %vm656, %v648, %v664
      %v673 = vsel %vm657, %v649, %v665
      %v674 = vsel %vm658, %v650, %v666
      %v675 = vsel %vm659, %v651, %v667
      %v676 = vsel %vm660, %v652, %v668
      %v677 = vadd.f32 %v669, 1.0
      %v678 = vadd.f32 %v670, 1.0
      %v679 = vadd.f32 %v671, 1.0
      %v680 = vadd.f32 %v672, 1.0
      %v681 = vadd.f32 %v673, 1.0
      %v682 = vadd.f32 %v674, 1.0
      %v683 = vadd.f32 %v675, 1.0
      %v684 = vadd.f32 %v676, 1.0
      %v685 = vmul.f32 %v477, %v677
      %v686 = vmul.f32 %v478, %v678
      %v687 = vmul.f32 %v479, %v679
      %v688 = vmul.f32 %v480, %v680
      %v689 = vmul.f32 %v481, %v681
      %v690 = vmul.f32 %v482, %v682
      %v691 = vmul.f32 %v483, %v683
      %v692 = vmul.f32 %v484, %v684
      %vm693 = vcmask 523264
      %694 = vst.msk [vmem:[%s226] sm:$0xff] %vm693, %v685
      %695 = vst.msk [vmem:[%s226 + $0x8] sm:$0xff] %vm693, %v686
      %696 = vst.msk [vmem:[%s226 + $0x10] sm:$0xff] %vm693, %v687
      %697 = vst.msk [vmem:[%s226 + $0x18] sm:$0xff] %vm693, %v688
      %698 = vst.msk [vmem:[%s226 + $0x20] sm:$0xff] %vm693, %v689
      %699 = vst.msk [vmem:[%s226 + $0x28] sm:$0xff] %vm693, %v690
      %700 = vst.msk [vmem:[%s226 + $0x30] sm:$0xff] %vm693, %v691
      %701 = vst.msk [vmem:[%s226 + $0x38] sm:$0xff] %vm693, %v692
      %s702 = smul.u32 8, %s16
      %p703 = scmp.lt.s32.totalorder %s702, 15
      %s704 = scalar_select %p703, %s702, 15
      %s705 = smul.addr %s704, 8
      %s706 = scalar_lea.vmem %s5, %s705
      // Predicated region
      $region41: #{lorat_forward.5} parent=39 // pred_check
        %p707 = pneg %p144
      $region42: #{lorat_forward.5} parent=39 // pred_check_branch
        %709 = sbr.rel (%p707) target = $region44
      $region43: #{lorat_forward.5} parent=39 // pred_region
        %s710 = smul.u32 8, %s16
      $region44: #{lorat_forward.5} parent=39 // pred_fallthru
        _
    $region40: #{lorat_forward.5} parent=5 // pred_fallthru
      _
    %p711 = scmp.le.s32.totalorder 2, %s11
    // Predicated region
    $region45: #{lorat_forward.5} parent=5 // pred_check
      %p712 = pneg %p711
    $region46: #{lorat_forward.5} parent=5 // pred_check_branch
      %714 = sbr.rel (%p712) target = $region48
    $region47: #{lorat_forward.5} parent=5 // pred_region
      %s715 = ssub.s32 %s11, 2
      // Predicated region
      $region49: #{lorat_forward.5} parent=47 // pred_check
        %p716 = pneg %p150
      $region50: #{lorat_forward.5} parent=47 // pred_check_branch
        %718 = sbr.rel (%p716) target = $region52
      $region51: #{lorat_forward.5} parent=47 // pred_region
        %s719 = smul.u32 8, %s17
        %p720 = scmp.lt.s32.totalorder %s719, 15
        %s721 = scalar_select %p720, %s719, 15
        %s722 = smul.addr %s721, 8
        %s723 = scalar_lea.vmem %s5, %s722
      $region52: #{lorat_forward.5} parent=47 // pred_fallthru
        _
    $region48: #{lorat_forward.5} parent=5 // pred_fallthru
      _
  $region6: #{lorat_forward.5} parent=0 // loop_footer
    %s15 = sadd.s32 1, %s11
  $region7: #{lorat_forward.5} parent=0 // loop_footer_branch
    %10 = sbr.rel target = $region3
  $region8: #{lorat_forward.5} parent=0 // loop_exit
    _

// kernel: lorat_forward.4
$region0: #{lorat_forward.4}
  #allocation0 [shape = 'u32[]', space=smem, size = 0x4, offset = 0x4, fixed_abs, tag = 'smem constant byte address 0x4 - core index']
  #allocation1 [shape = 'u32[144,128]{1,0:T(1,128)}', space=vmem, size = 0x12000, scoped, tag = 'internal scratch']
  #allocation2 [shape = 'f32[80,32]{1,0:T(8,128)}', space=vmem, size = 0xa000, scoped, tag = 'scratch operand']
  %s0 = inlined_call_operand.vmem [shape: f32[160,32], index: 0, kind: input, shape index: {}]
  %s1 = inlined_call_operand.vmem [shape: f32[80,32], index: 1, kind: input, shape index: {}]
  %s2 = inlined_call_operand.vmem [shape: f32[80,32], index: 2, kind: input, shape index: {}]
  %s3 = inlined_call_operand.vmem [shape: f32[2,1,32], index: 3, kind: input, shape index: {}]
  %s4 = inlined_call_operand.vmem [shape: f32[2,1,32], index: 4, kind: input, shape index: {}]
  %s5 = inlined_call_operand.vmem [shape: bf16[2,32,96], index: 5, kind: input, shape index: {}]
  %s6 = inlined_call_operand.vmem [shape: f32[2,1,96], index: 6, kind: input, shape index: {}]
  %s7 = inlined_call_operand.vmem [shape: bf16[2,32,32], index: 7, kind: input, shape index: {}]
  %s8 = inlined_call_operand.vmem [shape: f32[2,1,32], index: 8, kind: input, shape index: {}]
  %s9 = inlined_call_operand.vmem [shape: f32[2,1,32], index: 9, kind: input, shape index: {}]
  %s10 = inlined_call_operand.vmem [shape: f32[2,1,32], index: 10, kind: input, shape index: {}]
  %s11 = inlined_call_operand.vmem [shape: bf16[2,32,128], index: 11, kind: input, shape index: {}]
  %s12 = inlined_call_operand.vmem [shape: f32[2,1,128], index: 12, kind: input, shape index: {}]
  %s13 = inlined_call_operand.vmem [shape: bf16[2,128,32], index: 13, kind: input, shape index: {}]
  %s14 = inlined_call_operand.vmem [shape: f32[2,1,32], index: 14, kind: input, shape index: {}]
  %s15 = inlined_call_operand.vmem [shape: f32[160,32], index: 15, kind: output, shape index: {}]
  %s16 = sld [smem:[#allocation0]]
  $region101: #{lorat_forward.4} parent=0
    _
  %s18 = ssub.s32 1, %s16
  %s19 = scalar_select 0, %s18, %s16
  loop: start=0, step=1, limit=6
  $region2: #{lorat_forward.4} parent=0 // loop_pre_header
    _
  $region3: #{lorat_forward.4} parent=0 // loop_header
    %s21 = sphi 0, %s25
    %p22 = scmp.ge.s32.totalorder %s21, 6
    %s28 = sphi 0, %s40
    %s29 = sphi 0, %s36
    %s30 = sphi 0, %s28
    %s31 = sphi 0, %s29
    %s32 = sphi 0, %s30
    %s33 = sphi 0, %s31
    %s43 = sphi 0, %s45
    %s46 = sphi 0, %s43
    %s47 = sphi 0, %s46
    %s63 = sphi 0, %s47
    %s67 = sphi 0, %s67
    %s69 = sphi 0, %s67
    %s70 = sphi 0, %s69
    %s84 = sphi 0, %s70
    %s88 = sphi 0, %s88
    %s90 = sphi 0, %s88
    %s91 = sphi 0, %s90
    %s105 = sphi 0, %s91
    %s111 = sphi 0, %s113
    %s114 = sphi 0, %s111
    %s115 = sphi 0, %s114
    %s131 = sphi 0, %s115
    %s137 = sphi 0, %s139
    %s140 = sphi 0, %s137
    %s141 = sphi 0, %s140
    %s157 = sphi 0, %s141
    %s163 = sphi 0, %s165
    %s166 = sphi 0, %s163
    %s167 = sphi 0, %s166
    %s183 = sphi 0, %s167
    %s189 = sphi 0, %s191
    %s192 = sphi 0, %s189
    %s193 = sphi 0, %s192
    %s209 = sphi 0, %s193
    %s215 = sphi 0, %s217
    %s218 = sphi 0, %s215
    %s219 = sphi 0, %s218
    %s235 = sphi 0, %s219
    %s241 = sphi 0, %s243
    %s244 = sphi 0, %s241
    %s245 = sphi 0, %s244
    %s261 = sphi 0, %s245
    %s267 = sphi 0, %s269
    %s270 = sphi 0, %s267
    %s271 = sphi 0, %s270
    %s287 = sphi 0, %s271
    %s293 = sphi 0, %s295
    %s296 = sphi 0, %s293
    %s297 = sphi 0, %s296
    %s313 = sphi 0, %s297
    %s319 = sphi 0, %s321
    %s322 = sphi 0, %s319
    %s323 = sphi 0, %s322
    %s339 = sphi 0, %s323
    %s345 = sphi 0, %s347
    %s348 = sphi 0, %s345
    %s349 = sphi 0, %s348
    %s365 = sphi 0, %s349
    %s371 = sphi 0, %s373
    %s374 = sphi 0, %s371
    %s375 = sphi 0, %s374
    %s391 = sphi 0, %s375
    %s397 = sphi 0, %s399
    %s400 = sphi 0, %s397
    %s401 = sphi 0, %s400
    %s417 = sphi 0, %s401
    %s423 = sphi 0, %s425
    %s426 = sphi 0, %s423
    %s427 = sphi 0, %s426
    %s443 = sphi 0, %s427
  $region4: #{lorat_forward.4} parent=0 // loop_header_branch
    %24 = sbr.rel (%p22) target = $region8
  $region5: #{lorat_forward.4} parent=0 // loop_body
    %s26 = ssub.s32 %s21, 1
    %s27 = ssub.s32 %s21, 2
    %s34 = sadd.s32 1, %s29
    %p35 = scmp.ge.s32.totalorder %s34, 2
    %s36 = scalar_select %p35, 0, %s34
    %s37 = sadd.s32 1, %s28
    %s38 = scalar_select %p35, %s37, %s28
    %p39 = scmp.ge.s32.totalorder %s38, 2
    %s40 = scalar_select %p39, 0, %s38
    %s41 = ssub.s32 %s28, %s40
    %p42 = scmp.eq.s32.totalorder %s41, 0
    %s44 = sadd.s32 %s43, 1
    %s45 = scalar_select %p42, %s43, %s44
    %p48 = pneg %p42
    %p49 = scmp.eq.s32.totalorder %s21, 3
    %p50 = por %p48, %p49
    %p51 = scmp.ne.s32.totalorder %s43, %s46
    %p52 = scmp.eq.s32.totalorder %s21, 0
    %p53 = por %p51, %p52
    %p54 = scmp.ne.s32.totalorder %s43, %s46
    %p55 = scmp.eq.s32.totalorder %s26, 3
    %p56 = por %p54, %p55
    %p57 = scmp.ne.s32.totalorder %s46, %s47
    %p58 = scmp.eq.s32.totalorder %s26, 0
    %p59 = por %p57, %p58
    %p60 = scmp.ne.s32.totalorder %s46, %s47
    %p61 = scmp.eq.s32.totalorder %s27, 3
    %p62 = por %p60, %p61
    %p64 = scmp.ne.s32.totalorder %s47, %s63
    %p65 = scmp.eq.s32.totalorder %s27, 0
    %p66 = por %p64, %p65
    %s68 = sadd.s32 %s67, 1
    %p71 = scmp.eq.s32.totalorder %s21, 3
    %p72 = scmp.ne.s32.totalorder %s67, %s69
    %p73 = scmp.eq.s32.totalorder %s21, 0
    %p74 = por %p72, %p73
    %p75 = scmp.ne.s32.totalorder %s67, %s69
    %p76 = scmp.eq.s32.totalorder %s26, 3
    %p77 = por %p75, %p76
    %p78 = scmp.ne.s32.totalorder %s69, %s70
    %p79 = scmp.eq.s32.totalorder %s26, 0
    %p80 = por %p78, %p79
    %p81 = scmp.ne.s32.totalorder %s69, %s70
    %p82 = scmp.eq.s32.totalorder %s27, 3
    %p83 = por %p81, %p82
    %p85 = scmp.ne.s32.totalorder %s70, %s84
    %p86 = scmp.eq.s32.totalorder %s27, 0
    %p87 = por %p85, %p86
    %s89 = sadd.s32 %s88, 1
    %p92 = scmp.eq.s32.totalorder %s21, 3
    %p93 = scmp.ne.s32.totalorder %s88, %s90
    %p94 = scmp.eq.s32.totalorder %s21, 0
    %p95 = por %p93, %p94
    %p96 = scmp.ne.s32.totalorder %s88, %s90
    %p97 = scmp.eq.s32.totalorder %s26, 3
    %p98 = por %p96, %p97
    %p99 = scmp.ne.s32.totalorder %s90, %s91
    %p100 = scmp.eq.s32.totalorder %s26, 0
    %p101 = por %p99, %p100
    %p102 = scmp.ne.s32.totalorder %s90, %s91
    %p103 = scmp.eq.s32.totalorder %s27, 3
    %p104 = por %p102, %p103
    %p106 = scmp.ne.s32.totalorder %s91, %s105
    %p107 = scmp.eq.s32.totalorder %s27, 0
    %p108 = por %p106, %p107
    %s109 = ssub.s32 %s29, %s36
    %p110 = scmp.eq.s32.totalorder %s109, 0
    %s112 = sadd.s32 %s111, 1
    %s113 = scalar_select %p110, %s111, %s112
    %p116 = pneg %p110
    %p117 = scmp.eq.s32.totalorder %s21, 3
    %p118 = por %p116, %p117
    %p119 = scmp.ne.s32.totalorder %s111, %s114
    %p120 = scmp.eq.s32.totalorder %s21, 0
    %p121 = por %p119, %p120
    %p122 = scmp.ne.s32.totalorder %s111, %s114
    %p123 = scmp.eq.s32.totalorder %s26, 3
    %p124 = por %p122, %p123
    %p125 = scmp.ne.s32.totalorder %s114, %s115
    %p126 = scmp.eq.s32.totalorder %s26, 0
    %p127 = por %p125, %p126
    %p128 = scmp.ne.s32.totalorder %s114, %s115
    %p129 = scmp.eq.s32.totalorder %s27, 3
    %p130 = por %p128, %p129
    %p132 = scmp.ne.s32.totalorder %s115, %s131
    %p133 = scmp.eq.s32.totalorder %s27, 0
    %p134 = por %p132, %p133
    %s135 = ssub.s32 %s29, %s36
    %p136 = scmp.eq.s32.totalorder %s135, 0
    %s138 = sadd.s32 %s137, 1
    %s139 = scalar_select %p136, %s137, %s138
    %p142 = pneg %p136
    %p143 = scmp.eq.s32.totalorder %s21, 3
    %p144 = por %p142, %p143
    %p145 = scmp.ne.s32.totalorder %s137, %s140
    %p146 = scmp.eq.s32.totalorder %s21, 0
    %p147 = por %p145, %p146
    %p148 = scmp.ne.s32.totalorder %s137, %s140
    %p149 = scmp.eq.s32.totalorder %s26, 3
    %p150 = por %p148, %p149
    %p151 = scmp.ne.s32.totalorder %s140, %s141
    %p152 = scmp.eq.s32.totalorder %s26, 0
    %p153 = por %p151, %p152
    %p154 = scmp.ne.s32.totalorder %s140, %s141
    %p155 = scmp.eq.s32.totalorder %s27, 3
    %p156 = por %p154, %p155
    %p158 = scmp.ne.s32.totalorder %s141, %s157
    %p159 = scmp.eq.s32.totalorder %s27, 0
    %p160 = por %p158, %p159
    %s161 = ssub.s32 %s29, %s36
    %p162 = scmp.eq.s32.totalorder %s161, 0
    %s164 = sadd.s32 %s163, 1
    %s165 = scalar_select %p162, %s163, %s164
    %p168 = pneg %p162
    %p169 = scmp.eq.s32.totalorder %s21, 3
    %p170 = por %p168, %p169
    %p171 = scmp.ne.s32.totalorder %s163, %s166
    %p172 = scmp.eq.s32.totalorder %s21, 0
    %p173 = por %p171, %p172
    %p174 = scmp.ne.s32.totalorder %s163, %s166
    %p175 = scmp.eq.s32.totalorder %s26, 3
    %p176 = por %p174, %p175
    %p177 = scmp.ne.s32.totalorder %s166, %s167
    %p178 = scmp.eq.s32.totalorder %s26, 0
    %p179 = por %p177, %p178
    %p180 = scmp.ne.s32.totalorder %s166, %s167
    %p181 = scmp.eq.s32.totalorder %s27, 3
    %p182 = por %p180, %p181
    %p184 = scmp.ne.s32.totalorder %s167, %s183
    %p185 = scmp.eq.s32.totalorder %s27, 0
    %p186 = por %p184, %p185
    %s187 = ssub.s32 %s29, %s36
    %p188 = scmp.eq.s32.totalorder %s187, 0
    %s190 = sadd.s32 %s189, 1
    %s191 = scalar_select %p188, %s189, %s190
    %p194 = pneg %p188
    %p195 = scmp.eq.s32.totalorder %s21, 3
    %p196 = por %p194, %p195
    %p197 = scmp.ne.s32.totalorder %s189, %s192
    %p198 = scmp.eq.s32.totalorder %s21, 0
    %p199 = por %p197, %p198
    %p200 = scmp.ne.s32.totalorder %s189, %s192
    %p201 = scmp.eq.s32.totalorder %s26, 3
    %p202 = por %p200, %p201
    %p203 = scmp.ne.s32.totalorder %s192, %s193
    %p204 = scmp.eq.s32.totalorder %s26, 0
    %p205 = por %p203, %p204
    %p206 = scmp.ne.s32.totalorder %s192, %s193
    %p207 = scmp.eq.s32.totalorder %s27, 3
    %p208 = por %p206, %p207
    %p210 = scmp.ne.s32.totalorder %s193, %s209
    %p211 = scmp.eq.s32.totalorder %s27, 0
    %p212 = por %p210, %p211
    %s213 = ssub.s32 %s29, %s36
    %p214 = scmp.eq.s32.totalorder %s213, 0
    %s216 = sadd.s32 %s215, 1
    %s217 = scalar_select %p214, %s215, %s216
    %p220 = pneg %p214
    %p221 = scmp.eq.s32.totalorder %s21, 3
    %p222 = por %p220, %p221
    %p223 = scmp.ne.s32.totalorder %s215, %s218
    %p224 = scmp.eq.s32.totalorder %s21, 0
    %p225 = por %p223, %p224
    %p226 = scmp.ne.s32.totalorder %s215, %s218
    %p227 = scmp.eq.s32.totalorder %s26, 3
    %p228 = por %p226, %p227
    %p229 = scmp.ne.s32.totalorder %s218, %s219
    %p230 = scmp.eq.s32.totalorder %s26, 0
    %p231 = por %p229, %p230
    %p232 = scmp.ne.s32.totalorder %s218, %s219
    %p233 = scmp.eq.s32.totalorder %s27, 3
    %p234 = por %p232, %p233
    %p236 = scmp.ne.s32.totalorder %s219, %s235
    %p237 = scmp.eq.s32.totalorder %s27, 0
    %p238 = por %p236, %p237
    %s239 = ssub.s32 %s29, %s36
    %p240 = scmp.eq.s32.totalorder %s239, 0
    %s242 = sadd.s32 %s241, 1
    %s243 = scalar_select %p240, %s241, %s242
    %p246 = pneg %p240
    %p247 = scmp.eq.s32.totalorder %s21, 3
    %p248 = por %p246, %p247
    %p249 = scmp.ne.s32.totalorder %s241, %s244
    %p250 = scmp.eq.s32.totalorder %s21, 0
    %p251 = por %p249, %p250
    %p252 = scmp.ne.s32.totalorder %s241, %s244
    %p253 = scmp.eq.s32.totalorder %s26, 3
    %p254 = por %p252, %p253
    %p255 = scmp.ne.s32.totalorder %s244, %s245
    %p256 = scmp.eq.s32.totalorder %s26, 0
    %p257 = por %p255, %p256
    %p258 = scmp.ne.s32.totalorder %s244, %s245
    %p259 = scmp.eq.s32.totalorder %s27, 3
    %p260 = por %p258, %p259
    %p262 = scmp.ne.s32.totalorder %s245, %s261
    %p263 = scmp.eq.s32.totalorder %s27, 0
    %p264 = por %p262, %p263
    %s265 = ssub.s32 %s29, %s36
    %p266 = scmp.eq.s32.totalorder %s265, 0
    %s268 = sadd.s32 %s267, 1
    %s269 = scalar_select %p266, %s267, %s268
    %p272 = pneg %p266
    %p273 = scmp.eq.s32.totalorder %s21, 3
    %p274 = por %p272, %p273
    %p275 = scmp.ne.s32.totalorder %s267, %s270
    %p276 = scmp.eq.s32.totalorder %s21, 0
    %p277 = por %p275, %p276
    %p278 = scmp.ne.s32.totalorder %s267, %s270
    %p279 = scmp.eq.s32.totalorder %s26, 3
    %p280 = por %p278, %p279
    %p281 = scmp.ne.s32.totalorder %s270, %s271
    %p282 = scmp.eq.s32.totalorder %s26, 0
    %p283 = por %p281, %p282
    %p284 = scmp.ne.s32.totalorder %s270, %s271
    %p285 = scmp.eq.s32.totalorder %s27, 3
    %p286 = por %p284, %p285
    %p288 = scmp.ne.s32.totalorder %s271, %s287
    %p289 = scmp.eq.s32.totalorder %s27, 0
    %p290 = por %p288, %p289
    %s291 = ssub.s32 %s29, %s36
    %p292 = scmp.eq.s32.totalorder %s291, 0
    %s294 = sadd.s32 %s293, 1
    %s295 = scalar_select %p292, %s293, %s294
    %p298 = pneg %p292
    %p299 = scmp.eq.s32.totalorder %s21, 3
    %p300 = por %p298, %p299
    %p301 = scmp.ne.s32.totalorder %s293, %s296
    %p302 = scmp.eq.s32.totalorder %s21, 0
    %p303 = por %p301, %p302
    %p304 = scmp.ne.s32.totalorder %s293, %s296
    %p305 = scmp.eq.s32.totalorder %s26, 3
    %p306 = por %p304, %p305
    %p307 = scmp.ne.s32.totalorder %s296, %s297
    %p308 = scmp.eq.s32.totalorder %s26, 0
    %p309 = por %p307, %p308
    %p310 = scmp.ne.s32.totalorder %s296, %s297
    %p311 = scmp.eq.s32.totalorder %s27, 3
    %p312 = por %p310, %p311
    %p314 = scmp.ne.s32.totalorder %s297, %s313
    %p315 = scmp.eq.s32.totalorder %s27, 0
    %p316 = por %p314, %p315
    %s317 = ssub.s32 %s29, %s36
    %p318 = scmp.eq.s32.totalorder %s317, 0
    %s320 = sadd.s32 %s319, 1
    %s321 = scalar_select %p318, %s319, %s320
    %p324 = pneg %p318
    %p325 = scmp.eq.s32.totalorder %s21, 3
    %p326 = por %p324, %p325
    %p327 = scmp.ne.s32.totalorder %s319, %s322
    %p328 = scmp.eq.s32.totalorder %s21, 0
    %p329 = por %p327, %p328
    %p330 = scmp.ne.s32.totalorder %s319, %s322
    %p331 = scmp.eq.s32.totalorder %s26, 3
    %p332 = por %p330, %p331
    %p333 = scmp.ne.s32.totalorder %s322, %s323
    %p334 = scmp.eq.s32.totalorder %s26, 0
    %p335 = por %p333, %p334
    %p336 = scmp.ne.s32.totalorder %s322, %s323
    %p337 = scmp.eq.s32.totalorder %s27, 3
    %p338 = por %p336, %p337
    %p340 = scmp.ne.s32.totalorder %s323, %s339
    %p341 = scmp.eq.s32.totalorder %s27, 0
    %p342 = por %p340, %p341
    %s343 = ssub.s32 %s29, %s36
    %p344 = scmp.eq.s32.totalorder %s343, 0
    %s346 = sadd.s32 %s345, 1
    %s347 = scalar_select %p344, %s345, %s346
    %p350 = pneg %p344
    %p351 = scmp.eq.s32.totalorder %s21, 3
    %p352 = por %p350, %p351
    %p353 = scmp.ne.s32.totalorder %s345, %s348
    %p354 = scmp.eq.s32.totalorder %s21, 0
    %p355 = por %p353, %p354
    %p356 = scmp.ne.s32.totalorder %s345, %s348
    %p357 = scmp.eq.s32.totalorder %s26, 3
    %p358 = por %p356, %p357
    %p359 = scmp.ne.s32.totalorder %s348, %s349
    %p360 = scmp.eq.s32.totalorder %s26, 0
    %p361 = por %p359, %p360
    %p362 = scmp.ne.s32.totalorder %s348, %s349
    %p363 = scmp.eq.s32.totalorder %s27, 3
    %p364 = por %p362, %p363
    %p366 = scmp.ne.s32.totalorder %s349, %s365
    %p367 = scmp.eq.s32.totalorder %s27, 0
    %p368 = por %p366, %p367
    %s369 = ssub.s32 %s29, %s36
    %p370 = scmp.eq.s32.totalorder %s369, 0
    %s372 = sadd.s32 %s371, 1
    %s373 = scalar_select %p370, %s371, %s372
    %p376 = pneg %p370
    %p377 = scmp.eq.s32.totalorder %s21, 3
    %p378 = por %p376, %p377
    %p379 = scmp.ne.s32.totalorder %s371, %s374
    %p380 = scmp.eq.s32.totalorder %s21, 0
    %p381 = por %p379, %p380
    %p382 = scmp.ne.s32.totalorder %s371, %s374
    %p383 = scmp.eq.s32.totalorder %s26, 3
    %p384 = por %p382, %p383
    %p385 = scmp.ne.s32.totalorder %s374, %s375
    %p386 = scmp.eq.s32.totalorder %s26, 0
    %p387 = por %p385, %p386
    %p388 = scmp.ne.s32.totalorder %s374, %s375
    %p389 = scmp.eq.s32.totalorder %s27, 3
    %p390 = por %p388, %p389
    %p392 = scmp.ne.s32.totalorder %s375, %s391
    %p393 = scmp.eq.s32.totalorder %s27, 0
    %p394 = por %p392, %p393
    %s395 = ssub.s32 %s29, %s36
    %p396 = scmp.eq.s32.totalorder %s395, 0
    %s398 = sadd.s32 %s397, 1
    %s399 = scalar_select %p396, %s397, %s398
    %p402 = pneg %p396
    %p403 = scmp.eq.s32.totalorder %s21, 3
    %p404 = por %p402, %p403
    %p405 = scmp.ne.s32.totalorder %s397, %s400
    %p406 = scmp.eq.s32.totalorder %s21, 0
    %p407 = por %p405, %p406
    %p408 = scmp.ne.s32.totalorder %s397, %s400
    %p409 = scmp.eq.s32.totalorder %s26, 3
    %p410 = por %p408, %p409
    %p411 = scmp.ne.s32.totalorder %s400, %s401
    %p412 = scmp.eq.s32.totalorder %s26, 0
    %p413 = por %p411, %p412
    %p414 = scmp.ne.s32.totalorder %s400, %s401
    %p415 = scmp.eq.s32.totalorder %s27, 3
    %p416 = por %p414, %p415
    %p418 = scmp.ne.s32.totalorder %s401, %s417
    %p419 = scmp.eq.s32.totalorder %s27, 0
    %p420 = por %p418, %p419
    %s421 = ssub.s32 %s28, %s40
    %p422 = scmp.eq.s32.totalorder %s421, 0
    %s424 = sadd.s32 %s423, 1
    %s425 = scalar_select %p422, %s423, %s424
    %p428 = pneg %p422
    %p429 = scmp.eq.s32.totalorder %s21, 3
    %p430 = por %p428, %p429
    %p431 = scmp.ne.s32.totalorder %s423, %s426
    %p432 = scmp.eq.s32.totalorder %s21, 0
    %p433 = por %p431, %p432
    %p434 = scmp.ne.s32.totalorder %s423, %s426
    %p435 = scmp.eq.s32.totalorder %s26, 3
    %p436 = por %p434, %p435
    %p437 = scmp.ne.s32.totalorder %s426, %s427
    %p438 = scmp.eq.s32.totalorder %s26, 0
    %p439 = por %p437, %p438
    %p440 = scmp.ne.s32.totalorder %s426, %s427
    %p441 = scmp.eq.s32.totalorder %s27, 3
    %p442 = por %p440, %p441
    %p444 = scmp.ne.s32.totalorder %s427, %s443
    %p445 = scmp.eq.s32.totalorder %s27, 0
    %p446 = por %p444, %p445
    %p447 = scmp.le.s32.totalorder 1, %s21
    %p448 = scmp.lt.s32.totalorder %s21, 5
    %p449 = pnand %p447, %p448
    %p450 = pneg %p449
    // Predicated region
    $region9: #{lorat_forward.4} parent=5 // pred_check
      _
    $region10: #{lorat_forward.4} parent=5 // pred_check_branch
      %452 = sbr.rel (%p449) target = $region12
    $region11: #{lorat_forward.4} parent=5 // pred_region
      %s453 = ssub.s32 %s21, 1
      // Predicated region
      $region13: #{lorat_forward.4} parent=11 // pred_check
        %p454 = pneg %p80
      $region14: #{lorat_forward.4} parent=11 // pred_check_branch
        %456 = sbr.rel (%p454) target = $region16
      $region15: #{lorat_forward.4} parent=11 // pred_region
        _
      $region16: #{lorat_forward.4} parent=11 // pred_fallthru
        _
      // Predicated region
      $region17: #{lorat_forward.4} parent=11 // pred_check
        %p457 = pneg %p101
      $region18: #{lorat_forward.4} parent=11 // pred_check_branch
        %459 = sbr.rel (%p457) target = $region20
      $region19: #{lorat_forward.4} parent=11 // pred_region
        _
      $region20: #{lorat_forward.4} parent=11 // pred_fallthru
        _
    $region12: #{lorat_forward.4} parent=5 // pred_fallthru
      _
    %p460 = scmp.lt.s32.totalorder %s21, 4
    // Predicated region
    $region21: #{lorat_forward.4} parent=5 // pred_check
      %p461 = pneg %p460
    $region22: #{lorat_forward.4} parent=5 // pred_check_branch
      %463 = sbr.rel (%p461) target = $region24
    $region23: #{lorat_forward.4} parent=5 // pred_region
      // Predicated region
      $region25: #{lorat_forward.4} parent=23 // pred_check
        %p464 = pneg %p53
      $region26: #{lorat_forward.4} parent=23 // pred_check_branch
        %466 = sbr.rel (%p464) target = $region28
      $region27: #{lorat_forward.4} parent=23 // pred_region
        %s467 = smul.u32 10, %s28
        %p468 = scmp.lt.s32.totalorder %s467, 19
        %s469 = scalar_select %p468, %s467, 19
        %s470 = smul.addr %s469, 8
        %s471 = scalar_lea.vmem %s0, %s470
        %s472 = smul.u32 10, %s28
      $region28: #{lorat_forward.4} parent=23 // pred_fallthru
        _
      // Predicated region
      $region29: #{lorat_forward.4} parent=23 // pred_check
        %p473 = pneg %p121
      $region30: #{lorat_forward.4} parent=23 // pred_check_branch
        %475 = sbr.rel (%p473) target = $region32
      $region31: #{lorat_forward.4} parent=23 // pred_region
        %p476 = scmp.lt.s32.totalorder %s29, 1
        %s477 = scalar_select %p476, %s29, 1
        %s478 = scalar_lea.vmem %s3, %s477
      $region32: #{lorat_forward.4} parent=23 // pred_fallthru
        _
      // Predicated region
      $region33: #{lorat_forward.4} parent=23 // pred_check
        %p479 = pneg %p147
      $region34: #{lorat_forward.4} parent=23 // pred_check_branch
        %481 = sbr.rel (%p479) target = $region36
      $region35: #{lorat_forward.4} parent=23 // pred_region
        %p482 = scmp.lt.s32.totalorder %s29, 1
        %s483 = scalar_select %p482, %s29, 1
        %s484 = scalar_lea.vmem %s4, %s483
      $region36: #{lorat_forward.4} parent=23 // pred_fallthru
        _
      // Predicated region
      $region37: #{lorat_forward.4} parent=23 // pred_check
        %p485 = pneg %p173
      $region38: #{lorat_forward.4} parent=23 // pred_check_branch
        %487 = sbr.rel (%p485) target = $region40
      $region39: #{lorat_forward.4} parent=23 // pred_region
        %p488 = scmp.lt.s32.totalorder %s29, 1
        %s489 = scalar_select %p488, %s29, 1
        %s490 = smul.addr %s489, 4
        %s491 = smul.addr %s490, 4
        %s492 = scalar_lea.vmem %s5, %s491
      $region40: #{lorat_forward.4} parent=23 // pred_fallthru
        _
      // Predicated region
      $region41: #{lorat_forward.4} parent=23 // pred_check
        %p493 = pneg %p199
      $region42: #{lorat_forward.4} parent=23 // pred_check_branch
        %495 = sbr.rel (%p493) target = $region44
      $region43: #{lorat_forward.4} parent=23 // pred_region
        %p496 = scmp.lt.s32.totalorder %s29, 1
        %s497 = scalar_select %p496, %s29, 1
        %s498 = scalar_lea.vmem %s6, %s497
      $region44: #{lorat_forward.4} parent=23 // pred_fallthru
        _
      // Predicated region
      $region45: #{lorat_forward.4} parent=23 // pred_check
        %p499 = pneg %p225
      $region46: #{lorat_forward.4} parent=23 // pred_check_branch
        %501 = sbr.rel (%p499) target = $region48
      $region47: #{lorat_forward.4} parent=23 // pred_region
        %p502 = scmp.lt.s32.totalorder %s29, 1
        %s503 = scalar_select %p502, %s29, 1
        %s504 = smul.addr %s503, 4
        %s505 = smul.addr %s504, 4
        %s506 = scalar_lea.vmem %s7, %s505
      $region48: #{lorat_forward.4} parent=23 // pred_fallthru
        _
      // Predicated region
      $region49: #{lorat_forward.4} parent=23 // pred_check
        %p507 = pneg %p251
      $region50: #{lorat_forward.4} parent=23 // pred_check_branch
        %509 = sbr.rel (%p507) target = $region52
      $region51: #{lorat_forward.4} parent=23 // pred_region
        %p510 = scmp.lt.s32.totalorder %s29, 1
        %s511 = scalar_select %p510, %s29, 1
        %s512 = scalar_lea.vmem %s8, %s511
      $region52: #{lorat_forward.4} parent=23 // pred_fallthru
        _
      // Predicated region
      $region53: #{lorat_forward.4} parent=23 // pred_check
        %p513 = pneg %p277
      $region54: #{lorat_forward.4} parent=23 // pred_check_branch
        %515 = sbr.rel (%p513) target = $region56
      $region55: #{lorat_forward.4} parent=23 // pred_region
        %p516 = scmp.lt.s32.totalorder %s29, 1
        %s517 = scalar_select %p516, %s29, 1
        %s518 = scalar_lea.vmem %s9, %s517
      $region56: #{lorat_forward.4} parent=23 // pred_fallthru
        _
      // Predicated region
      $region57: #{lorat_forward.4} parent=23 // pred_check
        %p519 = pneg %p303
      $region58: #{lorat_forward.4} parent=23 // pred_check_branch
        %521 = sbr.rel (%p519) target = $region60
      $region59: #{lorat_forward.4} parent=23 // pred_region
        %p522 = scmp.lt.s32.totalorder %s29, 1
        %s523 = scalar_select %p522, %s29, 1
        %s524 = scalar_lea.vmem %s10, %s523
      $region60: #{lorat_forward.4} parent=23 // pred_fallthru
        _
      // Predicated region
      $region61: #{lorat_forward.4} parent=23 // pred_check
        %p525 = pneg %p329
      $region62: #{lorat_forward.4} parent=23 // pred_check_branch
        %527 = sbr.rel (%p525) target = $region64
      $region63: #{lorat_forward.4} parent=23 // pred_region
        %p528 = scmp.lt.s32.totalorder %s29, 1
        %s529 = scalar_select %p528, %s29, 1
        %s530 = smul.addr %s529, 4
        %s531 = smul.addr %s530, 4
        %s532 = scalar_lea.vmem %s11, %s531
      $region64: #{lorat_forward.4} parent=23 // pred_fallthru
        _
      // Predicated region
      $region65: #{lorat_forward.4} parent=23 // pred_check
        %p533 = pneg %p355
      $region66: #{lorat_forward.4} parent=23 // pred_check_branch
        %535 = sbr.rel (%p533) target = $region68
      $region67: #{lorat_forward.4} parent=23 // pred_region
        %p536 = scmp.lt.s32.totalorder %s29, 1
        %s537 = scalar_select %p536, %s29, 1
        %s538 = scalar_lea.vmem %s12, %s537
      $region68: #{lorat_forward.4} parent=23 // pred_fallthru
        _
      // Predicated region
      $region69: #{lorat_forward.4} parent=23 // pred_check
        %p539 = pneg %p381
      $region70: #{lorat_forward.4} parent=23 // pred_check_branch
        %541 = sbr.rel (%p539) target = $region72
      $region71: #{lorat_forward.4} parent=23 // pred_region
        %p542 = scmp.lt.s32.totalorder %s29, 1
        %s543 = scalar_select %p542, %s29, 1
        %s544 = smul.addr %s543, 16
        %s545 = smul.addr %s544, 4
        %s546 = scalar_lea.vmem %s13, %s545
      $region72: #{lorat_forward.4} parent=23 // pred_fallthru
        _
      // Predicated region
      $region73: #{lorat_forward.4} parent=23 // pred_check
        %p547 = pneg %p407
      $region74: #{lorat_forward.4} parent=23 // pred_check_branch
        %549 = sbr.rel (%p547) target = $region76
      $region75: #{lorat_forward.4} parent=23 // pred_region
        %p550 = scmp.lt.s32.totalorder %s29, 1
        %s551 = scalar_select %p550, %s29, 1
        %s552 = scalar_lea.vmem %s14, %s551
      $region76: #{lorat_forward.4} parent=23 // pred_fallthru
        _
    $region24: #{lorat_forward.4} parent=5 // pred_fallthru
      _
    %p553 = scmp.le.s32.totalorder 1, %s21
    %p554 = scmp.lt.s32.totalorder %s21, 5
    %p555 = pnand %p553, %p554
    %p556 = pneg %p555
    // Predicated region
    $region77: #{lorat_forward.4} parent=5 // pred_check
      _
    $region78: #{lorat_forward.4} parent=5 // pred_check_branch
      %558 = sbr.rel (%p555) target = $region80
    $region79: #{lorat_forward.4} parent=5 // pred_region
      %s559 = ssub.s32 %s21, 1
      %s560 = smul.u32 10, %s30
      %p561 = scmp.lt.s32.totalorder %s560, 19
      %s562 = scalar_select %p561, %s560, 19
      %s563 = smul.addr %s562, 8
      %s564 = scalar_lea.vmem %s0, %s563
      %p565 = pneg %p59
      %p566 = pneg %p56
      %p567 = pneg %p80
      %p568 = pneg %p77
      %p569 = pneg %p101
      %p570 = pneg %p98
      %p571 = scmp.lt.s32.totalorder %s31, 1
      %s572 = scalar_select %p571, %s31, 1
      %s573 = scalar_lea.vmem %s3, %s572
      %p574 = pneg %p127
      %p575 = pneg %p124
      %p576 = scmp.lt.s32.totalorder %s31, 1
      %s577 = scalar_select %p576, %s31, 1
      %s578 = scalar_lea.vmem %s4, %s577
      %p579 = pneg %p153
      %p580 = pneg %p150
      %p581 = scmp.lt.s32.totalorder %s31, 1
      %s582 = scalar_select %p581, %s31, 1
      %s583 = smul.addr %s582, 4
      %s584 = smul.addr %s583, 4
      %s585 = scalar_lea.vmem %s5, %s584
      %p586 = pneg %p179
      %p587 = pneg %p176
      %p588 = scmp.lt.s32.totalorder %s31, 1
      %s589 = scalar_select %p588, %s31, 1
      %s590 = scalar_lea.vmem %s6, %s589
      %p591 = pneg %p205
      %p592 = pneg %p202
      %p593 = scmp.lt.s32.totalorder %s31, 1
      %s594 = scalar_select %p593, %s31, 1
      %s595 = smul.addr %s594, 4
      %s596 = smul.addr %s595, 4
      %s597 = scalar_lea.vmem %s7, %s596
      %p598 = pneg %p231
      %p599 = pneg %p228
      %p600 = scmp.lt.s32.totalorder %s31, 1
      %s601 = scalar_select %p600, %s31, 1
      %s602 = scalar_lea.vmem %s8, %s601
      %p603 = pneg %p257
      %p604 = pneg %p254
      %p605 = scmp.lt.s32.totalorder %s31, 1
      %s606 = scalar_select %p605, %s31, 1
      %s607 = scalar_lea.vmem %s9, %s606
      %p608 = pneg %p283
      %p609 = pneg %p280
      %p610 = scmp.lt.s32.totalorder %s31, 1
      %s611 = scalar_select %p610, %s31, 1
      %s612 = scalar_lea.vmem %s10, %s611
      %p613 = pneg %p309
      %p614 = pneg %p306
      %p615 = scmp.lt.s32.totalorder %s31, 1
      %s616 = scalar_select %p615, %s31, 1
      %s617 = smul.addr %s616, 4
      %s618 = smul.addr %s617, 4
      %s619 = scalar_lea.vmem %s11, %s618
      %p620 = pneg %p335
      %p621 = pneg %p332
      %p622 = scmp.lt.s32.totalorder %s31, 1
      %s623 = scalar_select %p622, %s31, 1
      %s624 = scalar_lea.vmem %s12, %s623
      %p625 = pneg %p361
      %p626 = pneg %p358
      %p627 = scmp.lt.s32.totalorder %s31, 1
      %s628 = scalar_select %p627, %s31, 1
      %s629 = smul.addr %s628, 16
      %s630 = smul.addr %s629, 4
      %s631 = scalar_lea.vmem %s13, %s630
      %p632 = pneg %p387
      %p633 = pneg %p384
      %p634 = scmp.lt.s32.totalorder %s31, 1
      %s635 = scalar_select %p634, %s31, 1
      %s636 = scalar_lea.vmem %s14, %s635
      %p637 = pneg %p413
      %p638 = pneg %p410
      %p639 = pneg %p439
      %p640 = pneg %p436
      %s641 = smul.u32 10, %s30
      %p642 = scmp.lt.s32.totalorder %s641, 19
      %s643 = scalar_select %p642, %s641, 19
      %s644 = smul.addr %s643, 8
      %s645 = scalar_lea.vmem %s15, %s644
      %s646 = smul.u32 10, %s30
      %p647 = scmp.lt.s32.totalorder %s646, 19
      %s648 = scalar_select %p647, %s646, 19
      %s649 = smul.addr %s648, 8
      %s650 = scalar_lea.vmem %s0, %s649
      %s651 = smul.u32 10, %s30
      %p652 = scmp.lt.s32.totalorder %s31, 1
      %s653 = scalar_select %p652, %s31, 1
      %s654 = scalar_lea.vmem %s3, %s653
      %p655 = scmp.lt.s32.totalorder %s31, 1
      %s656 = scalar_select %p655, %s31, 1
      %s657 = scalar_lea.vmem %s4, %s656
      %p658 = scmp.lt.s32.totalorder %s31, 1
      %s659 = scalar_select %p658, %s31, 1
      %s660 = smul.addr %s659, 4
      %s661 = smul.addr %s660, 4
      %s662 = scalar_lea.vmem %s5, %s661
      %p663 = scmp.lt.s32.totalorder %s31, 1
      %s664 = scalar_select %p663, %s31, 1
      %s665 = scalar_lea.vmem %s6, %s664
      %p666 = scmp.lt.s32.totalorder %s31, 1
      %s667 = scalar_select %p666, %s31, 1
      %s668 = smul.addr %s667, 4
      %s669 = smul.addr %s668, 4
      %s670 = scalar_lea.vmem %s7, %s669
      %p671 = scmp.lt.s32.totalorder %s31, 1
      %s672 = scalar_select %p671, %s31, 1
      %s673 = scalar_lea.vmem %s8, %s672
      %p674 = scmp.lt.s32.totalorder %s31, 1
      %s675 = scalar_select %p674, %s31, 1
      %s676 = scalar_lea.vmem %s9, %s675
      %p677 = scmp.lt.s32.totalorder %s31, 1
      %s678 = scalar_select %p677, %s31, 1
      %s679 = scalar_lea.vmem %s10, %s678
      %p680 = scmp.lt.s32.totalorder %s31, 1
      %s681 = scalar_select %p680, %s31, 1
      %s682 = smul.addr %s681, 4
      %s683 = smul.addr %s682, 4
      %s684 = scalar_lea.vmem %s11, %s683
      %p685 = scmp.lt.s32.totalorder %s31, 1
      %s686 = scalar_select %p685, %s31, 1
      %s687 = scalar_lea.vmem %s12, %s686
      %p688 = scmp.lt.s32.totalorder %s31, 1
      %s689 = scalar_select %p688, %s31, 1
      %s690 = smul.addr %s689, 16
      %s691 = smul.addr %s690, 4
      %s692 = scalar_lea.vmem %s13, %s691
      %p693 = scmp.lt.s32.totalorder %s31, 1
      %s694 = scalar_select %p693, %s31, 1
      %s695 = scalar_lea.vmem %s14, %s694
      %s696 = smul.u32 10, %s30
      %p697 = scmp.lt.s32.totalorder %s696, 19
      %s698 = scalar_select %p697, %s696, 19
      %s699 = smul.addr %s698, 8
      %s700 = scalar_lea.vmem %s15, %s699
      %s701 = smul.u32 10, %s30
      %p703 = scmp.eq.s32.totalorder %s31, 0
      // Predicated region
      $region81: #{lorat_forward.4} parent=79 // pred_check
        %p704 = pneg %p703
      $region82: #{lorat_forward.4} parent=79 // pred_check_branch
        %706 = sbr.rel (%p704) target = $region84
      $region83: #{lorat_forward.4} parent=79 // pred_region
        %v707 = vld [vmem:[%s650] sm:$0xff]
        %v708 = vld [vmem:[%s650 + $0x8] sm:$0xff]
        %v709 = vld [vmem:[%s650 + $0x10] sm:$0xff]
        %v710 = vld [vmem:[%s650 + $0x18] sm:$0xff]
        %v711 = vld [vmem:[%s650 + $0x20] sm:$0xff]
        %v712 = vld [vmem:[%s650 + $0x28] sm:$0xff]
        %v713 = vld [vmem:[%s650 + $0x30] sm:$0xff]
        %v714 = vld [vmem:[%s650 + $0x38] sm:$0xff]
        %v715 = vld [vmem:[%s650 + $0x40] sm:$0xff]
        %v716 = vld [vmem:[%s650 + $0x48] sm:$0xff]
        %vm717 = vcmask 261120
        %718 = vst.msk [vmem:[#allocation2] sm:$0xff] %vm717, %v707
        %719 = vst.msk [vmem:[#allocation2 + $0x8] sm:$0xff] %vm717, %v708
        %720 = vst.msk [vmem:[#allocation2 + $0x10] sm:$0xff] %vm717, %v709
        %721 = vst.msk [vmem:[#allocation2 + $0x18] sm:$0xff] %vm717, %v710
        %722 = vst.msk [vmem:[#allocation2 + $0x20] sm:$0xff] %vm717, %v711
        %723 = vst.msk [vmem:[#allocation2 + $0x28] sm:$0xff] %vm717, %v712
        %724 = vst.msk [vmem:[#allocation2 + $0x30] sm:$0xff] %vm717, %v713
        %725 = vst.msk [vmem:[#allocation2 + $0x38] sm:$0xff] %vm717, %v714
        %726 = vst.msk [vmem:[#allocation2 + $0x40] sm:$0xff] %vm717, %v715
        %727 = vst.msk [vmem:[#allocation2 + $0x48] sm:$0xff] %vm717, %v716
      $region84: #{lorat_forward.4} parent=79 // pred_fallthru
        _
      %v728 = vld [vmem:[#allocation2] sm:$0xff]
      %v729 = vld [vmem:[#allocation2 + $0x8] sm:$0xff]
      %v730 = vld [vmem:[#allocation2 + $0x10] sm:$0xff]
      %v731 = vld [vmem:[#allocation2 + $0x18] sm:$0xff]
      %v732 = vld [vmem:[#allocation2 + $0x20] sm:$0xff]
      %v733 = vld [vmem:[#allocation2 + $0x28] sm:$0xff]
      %v734 = vld [vmem:[#allocation2 + $0x30] sm:$0xff]
      %v735 = vld [vmem:[#allocation2 + $0x38] sm:$0xff]
      %v736 = vld [vmem:[#allocation2 + $0x40] sm:$0xff]
      %v737 = vld [vmem:[#allocation2 + $0x48] sm:$0xff]
      %v738 = vld [vmem:[%s1] sm:$0xff]
      %v739 = vld [vmem:[%s1 + $0x8] sm:$0xff]
      %v740 = vld [vmem:[%s1 + $0x10] sm:$0xff]
      %v741 = vld [vmem:[%s1 + $0x18] sm:$0xff]
      %v742 = vld [vmem:[%s1 + $0x20] sm:$0xff]
      %v743 = vld [vmem:[%s1 + $0x28] sm:$0xff]
      %v744 = vld [vmem:[%s1 + $0x30] sm:$0xff]
      %v745 = vld [vmem:[%s1 + $0x38] sm:$0xff]
      %v746 = vld [vmem:[%s1 + $0x40] sm:$0xff]
      %v747 = vld [vmem:[%s1 + $0x48] sm:$0xff]
      %v748 = vld [vmem:[%s2] sm:$0xff]
      %v749 = vld [vmem:[%s2 + $0x8] sm:$0xff]
      %v750 = vld [vmem:[%s2 + $0x10] sm:$0xff]
      %v751 = vld [vmem:[%s2 + $0x18] sm:$0xff]
      %v752 = vld [vmem:[%s2 + $0x20] sm:$0xff]
      %v753 = vld [vmem:[%s2 + $0x28] sm:$0xff]
      %v754 = vld [vmem:[%s2 + $0x30] sm:$0xff]
      %v755 = vld [vmem:[%s2 + $0x38] sm:$0xff]
      %v756 = vld [vmem:[%s2 + $0x40] sm:$0xff]
      %v757 = vld [vmem:[%s2 + $0x48] sm:$0xff]
      %v758 = vld [vmem:[%s654] sm:$0x1]
      %v759 = vld [vmem:[%s657] sm:$0x1]
      %vm760 = vcmask 261120
      %v761 = vsel %vm760, %v728, 0.0
      %762 = vadd.xlane.f32.xlu0 %v761
      %v763 = vpop.xlane.xlu0 %762
      %v764 = vsel %vm760, %v729, 0.0
      %765 = vadd.xlane.f32.xlu0 %v764
      %v766 = vpop.xlane.xlu0 %765
      %v767 = vsel %vm760, %v730, 0.0
      %768 = vadd.xlane.f32.xlu0 %v767
      %v769 = vpop.xlane.xlu0 %768
      %v770 = vsel %vm760, %v731, 0.0
      %771 = vadd.xlane.f32.xlu0 %v770
      %v772 = vpop.xlane.xlu0 %771
      %v773 = vsel %vm760, %v732, 0.0
      %774 = vadd.xlane.f32.xlu0 %v773
      %v775 = vpop.xlane.xlu0 %774
      %v776 = vsel %vm760, %v733, 0.0
      %777 = vadd.xlane.f32.xlu0 %v776
      %v778 = vpop.xlane.xlu0 %777
      %v779 = vsel %vm760, %v734, 0.0
      %780 = vadd.xlane.f32.xlu0 %v779
      %v781 = vpop.xlane.xlu0 %780
      %v782 = vsel %vm760, %v735, 0.0
      %783 = vadd.xlane.f32.xlu0 %v782
      %v784 = vpop.xlane.xlu0 %783
      %v785 = vsel %vm760, %v736, 0.0
      %786 = vadd.xlane.f32.xlu0 %v785
      %v787 = vpop.xlane.xlu0 %786
      %v788 = vsel %vm760, %v737, 0.0
      %789 = vadd.xlane.f32.xlu0 %v788
      %v790 = vpop.xlane.xlu0 %789
      %v791 = vrcp.pop 32.0
      %v792 = vmul.f32 %v763, %v791
      %v793 = vmul.f32 %v766, %v791
      %v794 = vmul.f32 %v769, %v791
      %v795 = vmul.f32 %v772, %v791
      %v796 = vmul.f32 %v775, %v791
      %v797 = vmul.f32 %v778, %v791
      %v798 = vmul.f32 %v781, %v791
      %v799 = vmul.f32 %v784, %v791
      %v800 = vmul.f32 %v787, %v791
      %v801 = vmul.f32 %v790, %v791
      %v802 = vsub.f32 %v728, %v792
      %v803 = vsub.f32 %v729, %v793
      %v804 = vsub.f32 %v730, %v794
      %v805 = vsub.f32 %v731, %v795
      %v806 = vsub.f32 %v732, %v796
      %v807 = vsub.f32 %v733, %v797
      %v808 = vsub.f32 %v734, %v798
      %v809 = vsub.f32 %v735, %v799
      %v810 = vsub.f32 %v736, %v800
      %v811 = vsub.f32 %v737, %v801
      %v812 = vmul.f32 %v802, %v802
      %v813 = vmul.f32 %v803, %v803
      %v814 = vmul.f32 %v804, %v804
      %v815 = vmul.f32 %v805, %v805
      %v816 = vmul.f32 %v806, %v806
      %v817 = vmul.f32 %v807, %v807
      %v818 = vmul.f32 %v808, %v808
      %v819 = vmul.f32 %v809, %v809
      %v820 = vmul.f32 %v810, %v810
      %v821 = vmul.f32 %v811, %v811
      %v822 = vsel %vm760, %v812, 0.0
      %823 = vadd.xlane.f32.xlu0 %v822
      %v824 = vpop.xlane.xlu0 %823
      %v825 = vsel %vm760, %v813, 0.0
      %826 = vadd.xlane.f32.xlu0 %v825
      %v827 = vpop.xlane.xlu0 %826
      %v828 = vsel %vm760, %v814, 0.0
      %829 = vadd.xlane.f32.xlu0 %v828
      %v830 = vpop.xlane.xlu0 %829
      %v831 = vsel %vm760, %v815, 0.0
      %832 = vadd.xlane.f32.xlu0 %v831
      %v833 = vpop.xlane.xlu0 %832
      %v834 = vsel %vm760, %v816, 0.0
      %835 = vadd.xlane.f32.xlu0 %v834
      %v836 = vpop.xlane.xlu0 %835
      %v837 = vsel %vm760, %v817, 0.0
      %838 = vadd.xlane.f32.xlu0 %v837
      %v839 = vpop.xlane.xlu0 %838
      %v840 = vsel %vm760, %v818, 0.0
      %841 = vadd.xlane.f32.xlu0 %v840
      %v842 = vpop.xlane.xlu0 %841
      %v843 = vsel %vm760, %v819, 0.0
      %844 = vadd.xlane.f32.xlu0 %v843
      %v845 = vpop.xlane.xlu0 %844
      %v846 = vsel %vm760, %v820, 0.0
      %847 = vadd.xlane.f32.xlu0 %v846
      %v848 = vpop.xlane.xlu0 %847
      %v849 = vsel %vm760, %v821, 0.0
      %850 = vadd.xlane.f32.xlu0 %v849
      %v851 = vpop.xlane.xlu0 %850
      %v852 = vmul.f32 %v824, %v791
      %v853 = vmul.f32 %v827, %v791
      %v854 = vmul.f32 %v830, %v791
      %v855 = vmul.f32 %v833, %v791
      %v856 = vmul.f32 %v836, %v791
      %v857 = vmul.f32 %v839, %v791
      %v858 = vmul.f32 %v842, %v791
      %v859 = vmul.f32 %v845, %v791
      %v860 = vmul.f32 %v848, %v791
      %v861 = vmul.f32 %v851, %v791
      %v862 = vadd.f32 %v852, 1e-06
      %v863 = vadd.f32 %v853, 1e-06
      %v864 = vadd.f32 %v854, 1e-06
      %v865 = vadd.f32 %v855, 1e-06
      %v866 = vadd.f32 %v856, 1e-06
      %v867 = vadd.f32 %v857, 1e-06
      %v868 = vadd.f32 %v858, 1e-06
      %v869 = vadd.f32 %v859, 1e-06
      %v870 = vadd.f32 %v860, 1e-06
      %v871 = vadd.f32 %v861, 1e-06
      %v872 = vrsqrt.pop %v862
      %v873 = vrsqrt.pop %v863
      %v874 = vrsqrt.pop %v864
      %v875 = vrsqrt.pop %v865
      %v876 = vrsqrt.pop %v866
      %v877 = vrsqrt.pop %v867
      %v878 = vrsqrt.pop %v868
      %v879 = vrsqrt.pop %v869
      %v880 = vrsqrt.pop %v870
      %v881 = vrsqrt.pop %v871
      %v882 = vmul.f32 %v802, %v872
      %v883 = vmul.f32 %v803, %v873
      %v884 = vmul.f32 %v804, %v874
      %v885 = vmul.f32 %v805, %v875
      %v886 = vmul.f32 %v806, %v876
      %v887 = vmul.f32 %v807, %v877
      %v888 = vmul.f32 %v808, %v878
      %v889 = vmul.f32 %v809, %v879
      %v890 = vmul.f32 %v810, %v880
      %v891 = vmul.f32 %v811, %v881
      %v893 = vlaneseq
      %v894 = vshrl.u32 %v893, 7
      %v895 = vsub.s32 0, %v894
      %v896 = vrot.slane %v758, %v895
      %v898 = vmul.f32 %v882, %v896
      %v899 = vmul.f32 %v883, %v896
      %v900 = vmul.f32 %v884, %v896
      %v901 = vmul.f32 %v885, %v896
      %v902 = vmul.f32 %v886, %v896
      %v903 = vmul.f32 %v887, %v896
      %v904 = vmul.f32 %v888, %v896
      %v905 = vmul.f32 %v889, %v896
      %v906 = vmul.f32 %v890, %v896
      %v907 = vmul.f32 %v891, %v896
      %v909 = vlaneseq
      %v910 = vshrl.u32 %v909, 7
      %v911 = vsub.s32 0, %v910
      %v912 = vrot.slane %v759, %v911
      %v914 = vadd.f32 %v898, %v912
      %v915 = vadd.f32 %v899, %v912
      %v916 = vadd.f32 %v900, %v912
      %v917 = vadd.f32 %v901, %v912
      %v918 = vadd.f32 %v902, %v912
      %v919 = vadd.f32 %v903, %v912
      %v920 = vadd.f32 %v904, %v912
      %v921 = vadd.f32 %v905, %v912
      %v922 = vadd.f32 %v906, %v912
      %v923 = vadd.f32 %v907, %v912
      %v924 = vpack.c.bf16 %v915, %v914
      %v925 = vpack.c.bf16 %v917, %v916
      %v926 = vpack.c.bf16 %v919, %v918
      %v927 = vpack.c.bf16 %v921, %v920
      %v928 = vpack.c.bf16 %v923, %v922
      %v929 = vld [vmem:[%s662] sm:$0xf]
      %v930 = vld [vmem:[%s662 + $0x4] sm:$0xf]
      %v931 = vld [vmem:[%s662 + $0x8] sm:$0xf]
      %v932 = vld [vmem:[%s662 + $0xc] sm:$0xf]
      %v933 = vld [vmem:[%s665] sm:$0x1]
      %v935 = vlaneseq
      %v936 = vshrl.u32 %v935, 7
      %v937 = vsub.s32 0, %v936
      %v938 = vrot.slane %v933, %v937
      %v944 = vunpack.c.l.b16 %v929
      %v945 = vunpack.c.l.b16 %v930
      %v946 = vunpack.c.l.b16 %v931
      %v947 = vunpack.c.l.b16 %v932
      %v948 = vpack.c.b16 %v945, %v944
      %v949 = vpack.c.b16 %v947, %v946
      %v953 = vsel %vm760, %v924, 0
      %v956 = vsel %vm760, %v925, 0
      %v959 = vsel %vm760, %v926, 0
      %v962 = vsel %vm760, %v927, 0
      %v965 = vsel %vm760, %v928, 0
      %967 = vmatprep.subr.bf16.mxu0 0
      %968 = vmatpush1.bf16.msra.mxu0 0
      %969 = vmatprep.subr.bf16.mxu0 0
      %970 = vmatpush1.bf16.msra.mxu0 0
      %971 = vmatprep.subr.bf16.mxu0 0
      %972 = vmatpush1.bf16.msra.mxu0 0
      %973 = vmatprep.subr.bf16.mxu0 0
      %974 = vmatpush1.bf16.msra.mxu0 0
      %975 = vmatprep.subr.bf16.mxu0 0
      %976 = vmatpush1.bf16.msra.mxu0 0
      %977 = vmatprep.subr.bf16.mxu0 0
      %978 = vmatpush1.bf16.msra.mxu0 0
      %979 = vmatprep.subr.bf16.mxu0 0
      %980 = vmatpush1.bf16.msra.mxu0 %v949
      %981 = vmatprep.subr.bf16.mxu0 0
      %982 = vmatpush1.bf16.msra.mxu0 %v948
      %983 = vmatprep.subr.bf16.mxu0 0
      %984 = vmatpush2.bf16.msra.mxu0 0
      %985 = vmatprep.subr.bf16.mxu0 0
      %986 = vmatpush2.bf16.msra.mxu0 0
      %987 = vmatprep.subr.bf16.mxu0 0
      %988 = vmatpush2.bf16.msra.mxu0 0
      %989 = vmatprep.subr.bf16.mxu0 0
      %990 = vmatpush2.bf16.msra.mxu0 0
      %991 = vmatprep.subr.bf16.mxu0 0
      %992 = vmatpush2.bf16.msra.mxu0 0
      %993 = vmatprep.subr.bf16.mxu0 0
      %994 = vmatpush2.bf16.msra.mxu0 0
      %995 = vmatprep.subr.bf16.mxu0 0
      %996 = vmatpush2.bf16.msra.mxu0 0
      %997 = vmatprep.subr.bf16.mxu0 0
      %998 = vmatpush2.bf16.msra.mxu0 0
      %999 = vmatprep.mubr.bf16.mxu0 0
      %1000 = vmatmul.mubr.bf16.gmra.mxu0 %v953
      %v1001 = vpop.f32.mrf.mxu0
      %v1002 = vadd.f32 %v938, %v1001
      %v1003 = vpop.f32.mrf.mxu0
      %v1004 = vpop.f32.mrf.mxu0
      %v1005 = vadd.f32 %v938, %v1004
      %v1006 = vpop.f32.mrf.mxu0
      %1007 = vmatprep.mubr.bf16.mxu0 0
      %1008 = vmatmul.mubr.bf16.gmra.mxu0 %v956
      %v1009 = vpop.f32.mrf.mxu0
      %v1010 = vadd.f32 %v938, %v1009
      %v1011 = vpop.f32.mrf.mxu0
      %v1012 = vpop.f32.mrf.mxu0
      %v1013 = vadd.f32 %v938, %v1012
      %v1014 = vpop.f32.mrf.mxu0
      %1015 = vmatprep.mubr.bf16.mxu0 0
      %1016 = vmatmul.mubr.bf16.gmra.mxu0 %v959
      %v1017 = vpop.f32.mrf.mxu0
      %v1018 = vadd.f32 %v938, %v1017
      %v1019 = vpop.f32.mrf.mxu0
      %v1020 = vpop.f32.mrf.mxu0
      %v1021 = vadd.f32 %v938, %v1020
      %v1022 = vpop.f32.mrf.mxu0
      %1023 = vmatprep.mubr.bf16.mxu0 0
      %1024 = vmatmul.mubr.bf16.gmra.mxu0 %v962
      %v1025 = vpop.f32.mrf.mxu0
      %v1026 = vadd.f32 %v938, %v1025
      %v1027 = vpop.f32.mrf.mxu0
      %v1028 = vpop.f32.mrf.mxu0
      %v1029 = vadd.f32 %v938, %v1028
      %v1030 = vpop.f32.mrf.mxu0
      %1031 = vmatprep.mubr.bf16.mxu0 0
      %1032 = vmatmul.mubr.bf16.gmra.mxu0 %v965
      %v1033 = vpop.f32.mrf.mxu0
      %v1034 = vadd.f32 %v938, %v1033
      %v1035 = vpop.f32.mrf.mxu0
      %v1036 = vpop.f32.mrf.mxu0
      %v1037 = vadd.f32 %v938, %v1036
      %v1038 = vpop.f32.mrf.mxu0
      %1039 = vdwg.mxu0
      %v1040 = vpack.c.bf16 %v1005, %v1002
      %v1041 = vpack.c.bf16 %v1013, %v1010
      %v1042 = vpack.c.bf16 %v1021, %v1018
      %v1043 = vpack.c.bf16 %v1029, %v1026
      %v1044 = vpack.c.bf16 %v1037, %v1034
      %1055 = vrot.lane.b32.xlu0 %v1002, 120
      %v1056 = vpop.permute.xlu0 %1055
      %1057 = vrot.lane.b32.xlu0 %v1005, 120
      %v1058 = vpop.permute.xlu0 %1057
      %1059 = vrot.lane.b32.xlu0 %v1010, 120
      %v1060 = vpop.permute.xlu0 %1059
      %1061 = vrot.lane.b32.xlu0 %v1013, 120
      %v1062 = vpop.permute.xlu0 %1061
      %1063 = vrot.lane.b32.xlu0 %v1018, 120
      %v1064 = vpop.permute.xlu0 %1063
      %1065 = vrot.lane.b32.xlu0 %v1021, 120
      %v1066 = vpop.permute.xlu0 %1065
      %1067 = vrot.lane.b32.xlu0 %v1026, 120
      %v1068 = vpop.permute.xlu0 %1067
      %1069 = vrot.lane.b32.xlu0 %v1029, 120
      %v1070 = vpop.permute.xlu0 %1069
      %1071 = vrot.lane.b32.xlu0 %v1034, 120
      %v1072 = vpop.permute.xlu0 %1071
      %1073 = vrot.lane.b32.xlu0 %v1037, 120
      %v1074 = vpop.permute.xlu0 %1073
      %1085 = vrot.lane.b32.xlu0 %v1002, 8
      %v1086 = vpop.permute.xlu0 %1085
      %1087 = vrot.lane.b32.xlu0 %v1005, 8
      %v1088 = vpop.permute.xlu0 %1087
      %1089 = vrot.lane.b32.xlu0 %v1010, 8
      %v1090 = vpop.permute.xlu0 %1089
      %1091 = vrot.lane.b32.xlu0 %v1013, 8
      %v1092 = vpop.permute.xlu0 %1091
      %1093 = vrot.lane.b32.xlu0 %v1018, 8
      %v1094 = vpop.permute.xlu0 %1093
      %1095 = vrot.lane.b32.xlu0 %v1021, 8
      %v1096 = vpop.permute.xlu0 %1095
      %1097 = vrot.lane.b32.xlu0 %v1026, 8
      %v1098 = vpop.permute.xlu0 %1097
      %1099 = vrot.lane.b32.xlu0 %v1029, 8
      %v1100 = vpop.permute.xlu0 %1099
      %1101 = vrot.lane.b32.xlu0 %v1034, 8
      %v1102 = vpop.permute.xlu0 %1101
      %1103 = vrot.lane.b32.xlu0 %v1037, 8
      %v1104 = vpop.permute.xlu0 %1103
      %vm1115 = vcmask 64512
      %v1116 = vsel %vm1115, %v1056, %v1086
      %v1117 = vsel %vm1115, %v1058, %v1088
      %v1118 = vsel %vm1115, %v1060, %v1090
      %v1119 = vsel %vm1115, %v1062, %v1092
      %v1120 = vsel %vm1115, %v1064, %v1094
      %v1121 = vsel %vm1115, %v1066, %v1096
      %v1122 = vsel %vm1115, %v1068, %v1098
      %v1123 = vsel %vm1115, %v1070, %v1100
      %v1124 = vsel %vm1115, %v1072, %v1102
      %v1125 = vsel %vm1115, %v1074, %v1104
      %1126 = vrot.lane.b32.xlu0 %v1002, 104
      %v1127 = vpop.permute.xlu0 %1126
      %1128 = vrot.lane.b32.xlu0 %v1005, 104
      %v1129 = vpop.permute.xlu0 %1128
      %1130 = vrot.lane.b32.xlu0 %v1010, 104
      %v1131 = vpop.permute.xlu0 %1130
      %1132 = vrot.lane.b32.xlu0 %v1013, 104
      %v1133 = vpop.permute.xlu0 %1132
      %1134 = vrot.lane.b32.xlu0 %v1018, 104
      %v1135 = vpop.permute.xlu0 %1134
      %1136 = vrot.lane.b32.xlu0 %v1021, 104
      %v1137 = vpop.permute.xlu0 %1136
      %1138 = vrot.lane.b32.xlu0 %v1026, 104
      %v1139 = vpop.permute.xlu0 %1138
      %1140 = vrot.lane.b32.xlu0 %v1029, 104
      %v1141 = vpop.permute.xlu0 %1140
      %1142 = vrot.lane.b32.xlu0 %v1034, 104
      %v1143 = vpop.permute.xlu0 %1142
      %1144 = vrot.lane.b32.xlu0 %v1037, 104
      %v1145 = vpop.permute.xlu0 %1144
      %v1156 = vsel %vm1115, %v1127, %v1056
      %v1157 = vsel %vm1115, %v1129, %v1058
      %v1158 = vsel %vm1115, %v1131, %v1060
      %v1159 = vsel %vm1115, %v1133, %v1062
      %v1160 = vsel %vm1115, %v1135, %v1064
      %v1161 = vsel %vm1115, %v1137, %v1066
      %v1162 = vsel %vm1115, %v1139, %v1068
      %v1163 = vsel %vm1115, %v1141, %v1070
      %v1164 = vsel %vm1115, %v1143, %v1072
      %v1165 = vsel %vm1115, %v1145, %v1074
      %1176 = vrot.lane.b32.xlu0 %v1156, 16
      %v1177 = vpop.permute.xlu0 %1176
      %1178 = vrot.lane.b32.xlu0 %v1157, 16
      %v1179 = vpop.permute.xlu0 %1178
      %1180 = vrot.lane.b32.xlu0 %v1158, 16
      %v1181 = vpop.permute.xlu0 %1180
      %1182 = vrot.lane.b32.xlu0 %v1159, 16
      %v1183 = vpop.permute.xlu0 %1182
      %1184 = vrot.lane.b32.xlu0 %v1160, 16
      %v1185 = vpop.permute.xlu0 %1184
      %1186 = vrot.lane.b32.xlu0 %v1161, 16
      %v1187 = vpop.permute.xlu0 %1186
      %1188 = vrot.lane.b32.xlu0 %v1162, 16
      %v1189 = vpop.permute.xlu0 %1188
      %1190 = vrot.lane.b32.xlu0 %v1163, 16
      %v1191 = vpop.permute.xlu0 %1190
      %1192 = vrot.lane.b32.xlu0 %v1164, 16
      %v1193 = vpop.permute.xlu0 %1192
      %1194 = vrot.lane.b32.xlu0 %v1165, 16
      %v1195 = vpop.permute.xlu0 %1194
      %vm1206 = vcmask 130048
      %v1207 = vsel %vm1206, %v1116, %v1177
      %v1208 = vsel %vm1206, %v1117, %v1179
      %v1209 = vsel %vm1206, %v1118, %v1181
      %v1210 = vsel %vm1206, %v1119, %v1183
      %v1211 = vsel %vm1206, %v1120, %v1185
      %v1212 = vsel %vm1206, %v1121, %v1187
      %v1213 = vsel %vm1206, %v1122, %v1189
      %v1214 = vsel %vm1206, %v1123, %v1191
      %v1215 = vsel %vm1206, %v1124, %v1193
      %v1216 = vsel %vm1206, %v1125, %v1195
      %v1217 = vmul.f32 %v1002, %v738
      %v1218 = vmul.f32 %v1005, %v739
      %v1219 = vmul.f32 %v1010, %v740
      %v1220 = vmul.f32 %v1013, %v741
      %v1221 = vmul.f32 %v1018, %v742
      %v1222 = vmul.f32 %v1021, %v743
      %v1223 = vmul.f32 %v1026, %v744
      %v1224 = vmul.f32 %v1029, %v745
      %v1225 = vmul.f32 %v1034, %v746
      %v1226 = vmul.f32 %v1037, %v747
      %v1227 = vmul.f32 %v1207, %v748
      %v1228 = vmul.f32 %v1208, %v749
      %v1229 = vmul.f32 %v1209, %v750
      %v1230 = vmul.f32 %v1210, %v751
      %v1231 = vmul.f32 %v1211, %v752
      %v1232 = vmul.f32 %v1212, %v753
      %v1233 = vmul.f32 %v1213, %v754
      %v1234 = vmul.f32 %v1214, %v755
      %v1235 = vmul.f32 %v1215, %v756
      %v1236 = vmul.f32 %v1216, %v757
      %v1237 = vadd.f32 %v1217, %v1227
      %v1238 = vadd.f32 %v1218, %v1228
      %v1239 = vadd.f32 %v1219, %v1229
      %v1240 = vadd.f32 %v1220, %v1230
      %v1241 = vadd.f32 %v1221, %v1231
      %v1242 = vadd.f32 %v1222, %v1232
      %v1243 = vadd.f32 %v1223, %v1233
      %v1244 = vadd.f32 %v1224, %v1234
      %v1245 = vadd.f32 %v1225, %v1235
      %v1246 = vadd.f32 %v1226, %v1236
      %v1247 = vpack.c.bf16 %v1238, %v1237
      %v1248 = vpack.c.bf16 %v1240, %v1239
      %v1249 = vpack.c.bf16 %v1242, %v1241
      %v1250 = vpack.c.bf16 %v1244, %v1243
      %v1251 = vpack.c.bf16 %v1246, %v1245
      %1252 = vrot.lane.b32.xlu0 %v1002, 88
      %v1253 = vpop.permute.xlu0 %1252
      %1254 = vrot.lane.b32.xlu0 %v1005, 88
      %v1255 = vpop.permute.xlu0 %1254
      %1256 = vrot.lane.b32.xlu0 %v1010, 88
      %v1257 = vpop.permute.xlu0 %1256
      %1258 = vrot.lane.b32.xlu0 %v1013, 88
      %v1259 = vpop.permute.xlu0 %1258
      %1260 = vrot.lane.b32.xlu0 %v1018, 88
      %v1261 = vpop.permute.xlu0 %1260
      %1262 = vrot.lane.b32.xlu0 %v1021, 88
      %v1263 = vpop.permute.xlu0 %1262
      %1264 = vrot.lane.b32.xlu0 %v1026, 88
      %v1265 = vpop.permute.xlu0 %1264
      %1266 = vrot.lane.b32.xlu0 %v1029, 88
      %v1267 = vpop.permute.xlu0 %1266
      %1268 = vrot.lane.b32.xlu0 %v1034, 88
      %v1269 = vpop.permute.xlu0 %1268
      %1270 = vrot.lane.b32.xlu0 %v1037, 88
      %v1271 = vpop.permute.xlu0 %1270
      %v1282 = vsel %vm1115, %v1253, %v1127
      %v1283 = vsel %vm1115, %v1255, %v1129
      %v1284 = vsel %vm1115, %v1257, %v1131
      %v1285 = vsel %vm1115, %v1259, %v1133
      %v1286 = vsel %vm1115, %v1261, %v1135
      %v1287 = vsel %vm1115, %v1263, %v1137
      %v1288 = vsel %vm1115, %v1265, %v1139
      %v1289 = vsel %vm1115, %v1267, %v1141
      %v1290 = vsel %vm1115, %v1269, %v1143
      %v1291 = vsel %vm1115, %v1271, %v1145
      %1292 = vrot.lane.b32.xlu0 %v1002, 72
      %v1293 = vpop.permute.xlu0 %1292
      %1294 = vrot.lane.b32.xlu0 %v1005, 72
      %v1295 = vpop.permute.xlu0 %1294
      %1296 = vrot.lane.b32.xlu0 %v1010, 72
      %v1297 = vpop.permute.xlu0 %1296
      %1298 = vrot.lane.b32.xlu0 %v1013, 72
      %v1299 = vpop.permute.xlu0 %1298
      %1300 = vrot.lane.b32.xlu0 %v1018, 72
      %v1301 = vpop.permute.xlu0 %1300
      %1302 = vrot.lane.b32.xlu0 %v1021, 72
      %v1303 = vpop.permute.xlu0 %1302
      %1304 = vrot.lane.b32.xlu0 %v1026, 72
      %v1305 = vpop.permute.xlu0 %1304
      %1306 = vrot.lane.b32.xlu0 %v1029, 72
      %v1307 = vpop.permute.xlu0 %1306
      %1308 = vrot.lane.b32.xlu0 %v1034, 72
      %v1309 = vpop.permute.xlu0 %1308
      %1310 = vrot.lane.b32.xlu0 %v1037, 72
      %v1311 = vpop.permute.xlu0 %1310
      %v1322 = vsel %vm1115, %v1293, %v1253
      %v1323 = vsel %vm1115, %v1295, %v1255
      %v1324 = vsel %vm1115, %v1297, %v1257
      %v1325 = vsel %vm1115, %v1299, %v1259
      %v1326 = vsel %vm1115, %v1301, %v1261
      %v1327 = vsel %vm1115, %v1303, %v1263
      %v1328 = vsel %vm1115, %v1305, %v1265
      %v1329 = vsel %vm1115, %v1307, %v1267
      %v1330 = vsel %vm1115, %v1309, %v1269
      %v1331 = vsel %vm1115, %v1311, %v1271
      %1342 = vrot.lane.b32.xlu0 %v1322, 16
      %v1343 = vpop.permute.xlu0 %1342
      %1344 = vrot.lane.b32.xlu0 %v1323, 16
      %v1345 = vpop.permute.xlu0 %1344
      %1346 = vrot.lane.b32.xlu0 %v1324, 16
      %v1347 = vpop.permute.xlu0 %1346
      %1348 = vrot.lane.b32.xlu0 %v1325, 16
      %v1349 = vpop.permute.xlu0 %1348
      %1350 = vrot.lane.b32.xlu0 %v1326, 16
      %v1351 = vpop.permute.xlu0 %1350
      %1352 = vrot.lane.b32.xlu0 %v1327, 16
      %v1353 = vpop.permute.xlu0 %1352
      %1354 = vrot.lane.b32.xlu0 %v1328, 16
      %v1355 = vpop.permute.xlu0 %1354
      %1356 = vrot.lane.b32.xlu0 %v1329, 16
      %v1357 = vpop.permute.xlu0 %1356
      %1358 = vrot.lane.b32.xlu0 %v1330, 16
      %v1359 = vpop.permute.xlu0 %1358
      %1360 = vrot.lane.b32.xlu0 %v1331, 16
      %v1361 = vpop.permute.xlu0 %1360
      %v1372 = vsel %vm1206, %v1282, %v1343
      %v1373 = vsel %vm1206, %v1283, %v1345
      %v1374 = vsel %vm1206, %v1284, %v1347
      %v1375 = vsel %vm1206, %v1285, %v1349
      %v1376 = vsel %vm1206, %v1286, %v1351
      %v1377 = vsel %vm1206, %v1287, %v1353
      %v1378 = vsel %vm1206, %v1288, %v1355
      %v1379 = vsel %vm1206, %v1289, %v1357
      %v1380 = vsel %vm1206, %v1290, %v1359
      %v1381 = vsel %vm1206, %v1291, %v1361
      %1392 = vrot.lane.b32.xlu0 %v738, 32
      %v1393 = vpop.permute.xlu0 %1392
      %1394 = vrot.lane.b32.xlu0 %v739, 32
      %v1395 = vpop.permute.xlu0 %1394
      %1396 = vrot.lane.b32.xlu0 %v740, 32
      %v1397 = vpop.permute.xlu0 %1396
      %1398 = vrot.lane.b32.xlu0 %v741, 32
      %v1399 = vpop.permute.xlu0 %1398
      %1400 = vrot.lane.b32.xlu0 %v742, 32
      %v1401 = vpop.permute.xlu0 %1400
      %1402 = vrot.lane.b32.xlu0 %v743, 32
      %v1403 = vpop.permute.xlu0 %1402
      %1404 = vrot.lane.b32.xlu0 %v744, 32
      %v1405 = vpop.permute.xlu0 %1404
      %1406 = vrot.lane.b32.xlu0 %v745, 32
      %v1407 = vpop.permute.xlu0 %1406
      %1408 = vrot.lane.b32.xlu0 %v746, 32
      %v1409 = vpop.permute.xlu0 %1408
      %1410 = vrot.lane.b32.xlu0 %v747, 32
      %v1411 = vpop.permute.xlu0 %1410
      %v1422 = vmul.f32 %v1002, %v1393
      %v1423 = vmul.f32 %v1005, %v1395
      %v1424 = vmul.f32 %v1010, %v1397
      %v1425 = vmul.f32 %v1013, %v1399
      %v1426 = vmul.f32 %v1018, %v1401
      %v1427 = vmul.f32 %v1021, %v1403
      %v1428 = vmul.f32 %v1026, %v1405
      %v1429 = vmul.f32 %v1029, %v1407
      %v1430 = vmul.f32 %v1034, %v1409
      %v1431 = vmul.f32 %v1037, %v1411
      %v1432 = vmul.f32 %v1372, %v748
      %v1433 = vmul.f32 %v1373, %v749
      %v1434 = vmul.f32 %v1374, %v750
      %v1435 = vmul.f32 %v1375, %v751
      %v1436 = vmul.f32 %v1376, %v752
      %v1437 = vmul.f32 %v1377, %v753
      %v1438 = vmul.f32 %v1378, %v754
      %v1439 = vmul.f32 %v1379, %v755
      %v1440 = vmul.f32 %v1380, %v756
      %v1441 = vmul.f32 %v1381, %v757
      %1452 = vrot.lane.b32.xlu0 %v1432, 32
      %v1453 = vpop.permute.xlu0 %1452
      %1454 = vrot.lane.b32.xlu0 %v1433, 32
      %v1455 = vpop.permute.xlu0 %1454
      %1456 = vrot.lane.b32.xlu0 %v1434, 32
      %v1457 = vpop.permute.xlu0 %1456
      %1458 = vrot.lane.b32.xlu0 %v1435, 32
      %v1459 = vpop.permute.xlu0 %1458
      %1460 = vrot.lane.b32.xlu0 %v1436, 32
      %v1461 = vpop.permute.xlu0 %1460
      %1462 = vrot.lane.b32.xlu0 %v1437, 32
      %v1463 = vpop.permute.xlu0 %1462
      %1464 = vrot.lane.b32.xlu0 %v1438, 32
      %v1465 = vpop.permute.xlu0 %1464
      %1466 = vrot.lane.b32.xlu0 %v1439, 32
      %v1467 = vpop.permute.xlu0 %1466
      %1468 = vrot.lane.b32.xlu0 %v1440, 32
      %v1469 = vpop.permute.xlu0 %1468
      %1470 = vrot.lane.b32.xlu0 %v1441, 32
      %v1471 = vpop.permute.xlu0 %1470
      %v1482 = vadd.f32 %v1422, %v1453
      %v1483 = vadd.f32 %v1423, %v1455
      %v1484 = vadd.f32 %v1424, %v1457
      %v1485 = vadd.f32 %v1425, %v1459
      %v1486 = vadd.f32 %v1426, %v1461
      %v1487 = vadd.f32 %v1427, %v1463
      %v1488 = vadd.f32 %v1428, %v1465
      %v1489 = vadd.f32 %v1429, %v1467
      %v1490 = vadd.f32 %v1430, %v1469
      %v1491 = vadd.f32 %v1431, %v1471
      %v1492 = vpack.c.bf16 %v1483, %v1482
      %v1493 = vpack.c.bf16 %v1485, %v1484
      %v1494 = vpack.c.bf16 %v1487, %v1486
      %v1495 = vpack.c.bf16 %v1489, %v1488
      %v1496 = vpack.c.bf16 %v1491, %v1490
      %1502 = vrot.lane.b32.xlu0 %v1492, 96
      %v1503 = vpop.permute.xlu0 %1502
      %1504 = vrot.lane.b32.xlu0 %v1493, 96
      %v1505 = vpop.permute.xlu0 %1504
      %1506 = vrot.lane.b32.xlu0 %v1494, 96
      %v1507 = vpop.permute.xlu0 %1506
      %1508 = vrot.lane.b32.xlu0 %v1495, 96
      %v1509 = vpop.permute.xlu0 %1508
      %1510 = vrot.lane.b32.xlu0 %v1496, 96
      %v1511 = vpop.permute.xlu0 %1510
      %v1513 = vsel %vm1206, %v1247, 0
      %v1516 = vsel %vm1206, %v1248, 0
      %v1519 = vsel %vm1206, %v1249, 0
      %v1522 = vsel %vm1206, %v1250, 0
      %v1525 = vsel %vm1206, %v1251, 0
      %v1528 = vsel %vm1206, %v1503, 0
      %v1531 = vsel %vm1206, %v1505, 0
      %v1534 = vsel %vm1206, %v1507, 0
      %v1537 = vsel %vm1206, %v1509, 0
      %v1540 = vsel %vm1206, %v1511, 0
      %1542 = vmatprep.subr.bf16.mxu0 0
      %1543 = vmatpush1.bf16.xpose.msra.mxu0 0
      %1544 = vmatprep.subr.bf16.mxu0 0
      %1545 = vmatpush1.bf16.xpose.msra.mxu0 0
      %1546 = vmatprep.subr.bf16.mxu0 0
      %1547 = vmatpush1.bf16.xpose.msra.mxu0 0
      %1548 = vmatprep.subr.bf16.mxu0 0
      %1549 = vmatpush1.bf16.xpose.msra.mxu0 %v1540
      %1550 = vmatprep.subr.bf16.mxu0 0
      %1551 = vmatpush1.bf16.xpose.msra.mxu0 %v1537
      %1552 = vmatprep.subr.bf16.mxu0 0
      %1553 = vmatpush1.bf16.xpose.msra.mxu0 %v1534
      %1554 = vmatprep.subr.bf16.mxu0 0
      %1555 = vmatpush1.bf16.xpose.msra.mxu0 %v1531
      %1556 = vmatprep.subr.bf16.mxu0 0
      %1557 = vmatpush1.bf16.xpose.msra.mxu0 %v1528
      %1558 = vmatprep.subr.bf16.mxu0 0
      %1559 = vmatpush2.bf16.xpose.msra.mxu0 0
      %1560 = vmatprep.subr.bf16.mxu0 0
      %1561 = vmatpush2.bf16.xpose.msra.mxu0 0
      %1562 = vmatprep.subr.bf16.mxu0 0
      %1563 = vmatpush2.bf16.xpose.msra.mxu0 0
      %1564 = vmatprep.subr.bf16.mxu0 0
      %1565 = vmatpush2.bf16.xpose.msra.mxu0 0
      %1566 = vmatprep.subr.bf16.mxu0 0
      %1567 = vmatpush2.bf16.xpose.msra.mxu0 0
      %1568 = vmatprep.subr.bf16.mxu0 0
      %1569 = vmatpush2.bf16.xpose.msra.mxu0 0
      %1570 = vmatprep.subr.bf16.mxu0 0
      %1571 = vmatpush2.bf16.xpose.msra.mxu0 0
      %1572 = vmatprep.subr.bf16.mxu0 0
      %1573 = vmatpush2.bf16.xpose.msra.mxu0 0
      %1574 = vmatprep.mubr.bf16.mxu0 0
      %1575 = vmatmul.mubr.bf16.gmra.mxu0 %v1513
      %v1576 = vpop.f32.mrf.mxu0
      %v1577 = vadd.f32 0.0, %v1576
      %v1578 = vpop.f32.mrf.mxu0
      %v1579 = vpop.f32.mrf.mxu0
      %v1580 = vadd.f32 0.0, %v1579
      %v1581 = vpop.f32.mrf.mxu0
      %1582 = vmatprep.mubr.bf16.mxu0 0
      %1583 = vmatmul.mubr.bf16.gmra.mxu0 %v1516
      %v1584 = vpop.f32.mrf.mxu0
      %v1585 = vadd.f32 0.0, %v1584
      %v1586 = vpop.f32.mrf.mxu0
      %v1587 = vpop.f32.mrf.mxu0
      %v1588 = vadd.f32 0.0, %v1587
      %v1589 = vpop.f32.mrf.mxu0
      %1590 = vmatprep.mubr.bf16.mxu0 0
      %1591 = vmatmul.mubr.bf16.gmra.mxu0 %v1519
      %v1592 = vpop.f32.mrf.mxu0
      %v1593 = vadd.f32 0.0, %v1592
      %v1594 = vpop.f32.mrf.mxu0
      %v1595 = vpop.f32.mrf.mxu0
      %v1596 = vadd.f32 0.0, %v1595
      %v1597 = vpop.f32.mrf.mxu0
      %1598 = vmatprep.mubr.bf16.mxu0 0
      %1599 = vmatmul.mubr.bf16.gmra.mxu0 %v1522
      %v1600 = vpop.f32.mrf.mxu0
      %v1601 = vadd.f32 0.0, %v1600
      %v1602 = vpop.f32.mrf.mxu0
      %v1603 = vpop.f32.mrf.mxu0
      %v1604 = vadd.f32 0.0, %v1603
      %v1605 = vpop.f32.mrf.mxu0
      %1606 = vmatprep.mubr.bf16.mxu0 0
      %1607 = vmatmul.mubr.bf16.gmra.mxu0 %v1525
      %v1608 = vpop.f32.mrf.mxu0
      %v1609 = vadd.f32 0.0, %v1608
      %v1610 = vpop.f32.mrf.mxu0
      %v1611 = vpop.f32.mrf.mxu0
      %v1612 = vadd.f32 0.0, %v1611
      %v1613 = vpop.f32.mrf.mxu0
      %1614 = vdwg.mxu0
      %vm1615 = vcmask 654336
      %v1616 = vsel %vm1615, %v1577, -inf
      %1617 = vmax.xlane.f32.xlu0 %v1616
      %v1618 = vpop.xlane.xlu0 %1617
      %v1619 = vsel %vm1615, %v1580, -inf
      %1620 = vmax.xlane.f32.xlu0 %v1619
      %v1621 = vpop.xlane.xlu0 %1620
      %v1622 = vsel %vm1615, %v1585, -inf
      %1623 = vmax.xlane.f32.xlu0 %v1622
      %v1624 = vpop.xlane.xlu0 %1623
      %v1625 = vsel %vm1615, %v1588, -inf
      %1626 = vmax.xlane.f32.xlu0 %v1625
      %v1627 = vpop.xlane.xlu0 %1626
      %v1628 = vsel %vm1615, %v1593, -inf
      %1629 = vmax.xlane.f32.xlu0 %v1628
      %v1630 = vpop.xlane.xlu0 %1629
      %v1631 = vsel %vm1615, %v1596, -inf
      %1632 = vmax.xlane.f32.xlu0 %v1631
      %v1633 = vpop.xlane.xlu0 %1632
      %v1634 = vsel %vm1615, %v1601, -inf
      %1635 = vmax.xlane.f32.xlu0 %v1634
      %v1636 = vpop.xlane.xlu0 %1635
      %v1637 = vsel %vm1615, %v1604, -inf
      %1638 = vmax.xlane.f32.xlu0 %v1637
      %v1639 = vpop.xlane.xlu0 %1638
      %v1640 = vsel %vm1615, %v1609, -inf
      %1641 = vmax.xlane.f32.xlu0 %v1640
      %v1642 = vpop.xlane.xlu0 %1641
      %v1643 = vsel %vm1615, %v1612, -inf
      %1644 = vmax.xlane.f32.xlu0 %v1643
      %v1645 = vpop.xlane.xlu0 %1644
      %v1646 = vsub.f32 %v1577, %v1618
      %v1647 = vsub.f32 %v1580, %v1621
      %v1648 = vsub.f32 %v1585, %v1624
      %v1649 = vsub.f32 %v1588, %v1627
      %v1650 = vsub.f32 %v1593, %v1630
      %v1651 = vsub.f32 %v1596, %v1633
      %v1652 = vsub.f32 %v1601, %v1636
      %v1653 = vsub.f32 %v1604, %v1639
      %v1654 = vsub.f32 %v1609, %v1642
      %v1655 = vsub.f32 %v1612, %v1645
      %v1656 = vmul.f32 %v1646, 1.442695
      %v1657 = vpow.pop %v1656
      %v1658 = vmul.f32 %v1647, 1.442695
      %v1659 = vpow.pop %v1658
      %v1660 = vmul.f32 %v1648, 1.442695
      %v1661 = vpow.pop %v1660
      %v1662 = vmul.f32 %v1649, 1.442695
      %v1663 = vpow.pop %v1662
      %v1664 = vmul.f32 %v1650, 1.442695
      %v1665 = vpow.pop %v1664
      %v1666 = vmul.f32 %v1651, 1.442695
      %v1667 = vpow.pop %v1666
      %v1668 = vmul.f32 %v1652, 1.442695
      %v1669 = vpow.pop %v1668
      %v1670 = vmul.f32 %v1653, 1.442695
      %v1671 = vpow.pop %v1670
      %v1672 = vmul.f32 %v1654, 1.442695
      %v1673 = vpow.pop %v1672
      %v1674 = vmul.f32 %v1655, 1.442695
      %v1675 = vpow.pop %v1674
      %v1676 = vsel %vm1615, %v1657, 0.0
      %1677 = vadd.xlane.f32.xlu0 %v1676
      %v1678 = vpop.xlane.xlu0 %1677
      %v1679 = vsel %vm1615, %v1659, 0.0
      %1680 = vadd.xlane.f32.xlu0 %v1679
      %v1681 = vpop.xlane.xlu0 %1680
      %v1682 = vsel %vm1615, %v1661, 0.0
      %1683 = vadd.xlane.f32.xlu0 %v1682
      %v1684 = vpop.xlane.xlu0 %1683
      %v1685 = vsel %vm1615, %v1663, 0.0
      %1686 = vadd.xlane.f32.xlu0 %v1685
      %v1687 = vpop.xlane.xlu0 %1686
      %v1688 = vsel %vm1615, %v1665, 0.0
      %1689 = vadd.xlane.f32.xlu0 %v1688
      %v1690 = vpop.xlane.xlu0 %1689
      %v1691 = vsel %vm1615, %v1667, 0.0
      %1692 = vadd.xlane.f32.xlu0 %v1691
      %v1693 = vpop.xlane.xlu0 %1692
      %v1694 = vsel %vm1615, %v1669, 0.0
      %1695 = vadd.xlane.f32.xlu0 %v1694
      %v1696 = vpop.xlane.xlu0 %1695
      %v1697 = vsel %vm1615, %v1671, 0.0
      %1698 = vadd.xlane.f32.xlu0 %v1697
      %v1699 = vpop.xlane.xlu0 %1698
      %v1700 = vsel %vm1615, %v1673, 0.0
      %1701 = vadd.xlane.f32.xlu0 %v1700
      %v1702 = vpop.xlane.xlu0 %1701
      %v1703 = vsel %vm1615, %v1675, 0.0
      %1704 = vadd.xlane.f32.xlu0 %v1703
      %v1705 = vpop.xlane.xlu0 %1704
      %v1706 = vpack.c.bf16 %v1659, %v1657
      %v1707 = vpack.c.bf16 %v1663, %v1661
      %v1708 = vpack.c.bf16 %v1667, %v1665
      %v1709 = vpack.c.bf16 %v1671, %v1669
      %v1710 = vpack.c.bf16 %v1675, %v1673
      %1716 = vrot.lane.b32.xlu0 %v1040, 64
      %v1717 = vpop.permute.xlu0 %1716
      %1718 = vrot.lane.b32.xlu0 %v1041, 64
      %v1719 = vpop.permute.xlu0 %1718
      %1720 = vrot.lane.b32.xlu0 %v1042, 64
      %v1721 = vpop.permute.xlu0 %1720
      %1722 = vrot.lane.b32.xlu0 %v1043, 64
      %v1723 = vpop.permute.xlu0 %1722
      %1724 = vrot.lane.b32.xlu0 %v1044, 64
      %v1725 = vpop.permute.xlu0 %1724
      %v1732 = vsel %vm1615, %v1706, 0
      %v1735 = vsel %vm1615, %v1707, 0
      %v1738 = vsel %vm1615, %v1708, 0
      %v1741 = vsel %vm1615, %v1709, 0
      %v1744 = vsel %vm1615, %v1710, 0
      %1746 = vmatprep.subr.bf16.mxu0 0
      %1747 = vmatpush1.bf16.msra.mxu0 0
      %1748 = vmatprep.subr.bf16.mxu0 0
      %1749 = vmatpush1.bf16.msra.mxu0 0
      %1750 = vmatprep.subr.bf16.mxu0 0
      %1751 = vmatpush1.bf16.msra.mxu0 0
      %1752 = vmatprep.subr.bf16.mxu0 0
      %1753 = vmatpush1.bf16.msra.mxu0 %v1725
      %1754 = vmatprep.subr.bf16.mxu0 0
      %1755 = vmatpush1.bf16.msra.mxu0 %v1723
      %1756 = vmatprep.subr.bf16.mxu0 0
      %1757 = vmatpush1.bf16.msra.mxu0 %v1721
      %1758 = vmatprep.subr.bf16.mxu0 0
      %1759 = vmatpush1.bf16.msra.mxu0 %v1719
      %1760 = vmatprep.subr.bf16.mxu0 0
      %1761 = vmatpush1.bf16.msra.mxu0 %v1717
      %1762 = vmatprep.subr.bf16.mxu0 0
      %1763 = vmatpush2.bf16.msra.mxu0 0
      %1764 = vmatprep.subr.bf16.mxu0 0
      %1765 = vmatpush2.bf16.msra.mxu0 0
      %1766 = vmatprep.subr.bf16.mxu0 0
      %1767 = vmatpush2.bf16.msra.mxu0 0
      %1768 = vmatprep.subr.bf16.mxu0 0
      %1769 = vmatpush2.bf16.msra.mxu0 0
      %1770 = vmatprep.subr.bf16.mxu0 0
      %1771 = vmatpush2.bf16.msra.mxu0 0
      %1772 = vmatprep.subr.bf16.mxu0 0
      %1773 = vmatpush2.bf16.msra.mxu0 0
      %1774 = vmatprep.subr.bf16.mxu0 0
      %1775 = vmatpush2.bf16.msra.mxu0 0
      %1776 = vmatprep.subr.bf16.mxu0 0
      %1777 = vmatpush2.bf16.msra.mxu0 0
      %1778 = vmatprep.mubr.bf16.mxu0 0
      %1779 = vmatmul.mubr.bf16.gmra.mxu0 %v1732
      %v1780 = vpop.f32.mrf.mxu0
      %v1781 = vadd.f32 0.0, %v1780
      %v1782 = vpop.f32.mrf.mxu0
      %v1783 = vpop.f32.mrf.mxu0
      %v1784 = vadd.f32 0.0, %v1783
      %v1785 = vpop.f32.mrf.mxu0
      %1786 = vmatprep.mubr.bf16.mxu0 0
      %1787 = vmatmul.mubr.bf16.gmra.mxu0 %v1735
      %v1788 = vpop.f32.mrf.mxu0
      %v1789 = vadd.f32 0.0, %v1788
      %v1790 = vpop.f32.mrf.mxu0
      %v1791 = vpop.f32.mrf.mxu0
      %v1792 = vadd.f32 0.0, %v1791
      %v1793 = vpop.f32.mrf.mxu0
      %1794 = vmatprep.mubr.bf16.mxu0 0
      %1795 = vmatmul.mubr.bf16.gmra.mxu0 %v1738
      %v1796 = vpop.f32.mrf.mxu0
      %v1797 = vadd.f32 0.0, %v1796
      %v1798 = vpop.f32.mrf.mxu0
      %v1799 = vpop.f32.mrf.mxu0
      %v1800 = vadd.f32 0.0, %v1799
      %v1801 = vpop.f32.mrf.mxu0
      %1802 = vmatprep.mubr.bf16.mxu0 0
      %1803 = vmatmul.mubr.bf16.gmra.mxu0 %v1741
      %v1804 = vpop.f32.mrf.mxu0
      %v1805 = vadd.f32 0.0, %v1804
      %v1806 = vpop.f32.mrf.mxu0
      %v1807 = vpop.f32.mrf.mxu0
      %v1808 = vadd.f32 0.0, %v1807
      %v1809 = vpop.f32.mrf.mxu0
      %1810 = vmatprep.mubr.bf16.mxu0 0
      %1811 = vmatmul.mubr.bf16.gmra.mxu0 %v1744
      %v1812 = vpop.f32.mrf.mxu0
      %v1813 = vadd.f32 0.0, %v1812
      %v1814 = vpop.f32.mrf.mxu0
      %v1815 = vpop.f32.mrf.mxu0
      %v1816 = vadd.f32 0.0, %v1815
      %v1817 = vpop.f32.mrf.mxu0
      %1818 = vdwg.mxu0
      %v1819 = vrcp.pop %v1678
      %v1820 = vrcp.pop %v1681
      %v1821 = vrcp.pop %v1684
      %v1822 = vrcp.pop %v1687
      %v1823 = vrcp.pop %v1690
      %v1824 = vrcp.pop %v1693
      %v1825 = vrcp.pop %v1696
      %v1826 = vrcp.pop %v1699
      %v1827 = vrcp.pop %v1702
      %v1828 = vrcp.pop %v1705
      %v1829 = vmul.f32 %v1781, %v1819
      %v1830 = vmul.f32 %v1784, %v1820
      %v1831 = vmul.f32 %v1789, %v1821
      %v1832 = vmul.f32 %v1792, %v1822
      %v1833 = vmul.f32 %v1797, %v1823
      %v1834 = vmul.f32 %v1800, %v1824
      %v1835 = vmul.f32 %v1805, %v1825
      %v1836 = vmul.f32 %v1808, %v1826
      %v1837 = vmul.f32 %v1813, %v1827
      %v1838 = vmul.f32 %v1816, %v1828
      %v1839 = vpack.c.bf16 %v1830, %v1829
      %v1840 = vpack.c.bf16 %v1832, %v1831
      %v1841 = vpack.c.bf16 %v1834, %v1833
      %v1842 = vpack.c.bf16 %v1836, %v1835
      %v1843 = vpack.c.bf16 %v1838, %v1837
      %v1844 = vld [vmem:[%s670] sm:$0xf]
      %v1845 = vld [vmem:[%s670 + $0x4] sm:$0xf]
      %1851 = vrot.lane.b32.xlu0 %v1247, 112
      %v1852 = vpop.permute.xlu0 %1851
      %1853 = vrot.lane.b32.xlu0 %v1248, 112
      %v1854 = vpop.permute.xlu0 %1853
      %1855 = vrot.lane.b32.xlu0 %v1249, 112
      %v1856 = vpop.permute.xlu0 %1855
      %1857 = vrot.lane.b32.xlu0 %v1250, 112
      %v1858 = vpop.permute.xlu0 %1857
      %1859 = vrot.lane.b32.xlu0 %v1251, 112
      %v1860 = vpop.permute.xlu0 %1859
      %1861 = vrot.lane.b32.xlu0 %v1492, 80
      %v1862 = vpop.permute.xlu0 %1861
      %1863 = vrot.lane.b32.xlu0 %v1493, 80
      %v1864 = vpop.permute.xlu0 %1863
      %1865 = vrot.lane.b32.xlu0 %v1494, 80
      %v1866 = vpop.permute.xlu0 %1865
      %1867 = vrot.lane.b32.xlu0 %v1495, 80
      %v1868 = vpop.permute.xlu0 %1867
      %1869 = vrot.lane.b32.xlu0 %v1496, 80
      %v1870 = vpop.permute.xlu0 %1869
      %v1872 = vsel %vm1206, %v1852, 0
      %v1875 = vsel %vm1206, %v1854, 0
      %v1878 = vsel %vm1206, %v1856, 0
      %v1881 = vsel %vm1206, %v1858, 0
      %v1884 = vsel %vm1206, %v1860, 0
      %v1887 = vsel %vm1206, %v1862, 0
      %v1890 = vsel %vm1206, %v1864, 0
      %v1893 = vsel %vm1206, %v1866, 0
      %v1896 = vsel %vm1206, %v1868, 0
      %v1899 = vsel %vm1206, %v1870, 0
      %1901 = vmatprep.subr.bf16.mxu0 0
      %1902 = vmatpush1.bf16.xpose.msra.mxu0 0
      %1903 = vmatprep.subr.bf16.mxu0 0
      %1904 = vmatpush1.bf16.xpose.msra.mxu0 0
      %1905 = vmatprep.subr.bf16.mxu0 0
      %1906 = vmatpush1.bf16.xpose.msra.mxu0 0
      %1907 = vmatprep.subr.bf16.mxu0 0
      %1908 = vmatpush1.bf16.xpose.msra.mxu0 %v1899
      %1909 = vmatprep.subr.bf16.mxu0 0
      %1910 = vmatpush1.bf16.xpose.msra.mxu0 %v1896
      %1911 = vmatprep.subr.bf16.mxu0 0
      %1912 = vmatpush1.bf16.xpose.msra.mxu0 %v1893
      %1913 = vmatprep.subr.bf16.mxu0 0
      %1914 = vmatpush1.bf16.xpose.msra.mxu0 %v1890
      %1915 = vmatprep.subr.bf16.mxu0 0
      %1916 = vmatpush1.bf16.xpose.msra.mxu0 %v1887
      %1917 = vmatprep.subr.bf16.mxu0 0
      %1918 = vmatpush2.bf16.xpose.msra.mxu0 0
      %1919 = vmatprep.subr.bf16.mxu0 0
      %1920 = vmatpush2.bf16.xpose.msra.mxu0 0
      %1921 = vmatprep.subr.bf16.mxu0 0
      %1922 = vmatpush2.bf16.xpose.msra.mxu0 0
      %1923 = vmatprep.subr.bf16.mxu0 0
      %1924 = vmatpush2.bf16.xpose.msra.mxu0 0
      %1925 = vmatprep.subr.bf16.mxu0 0
      %1926 = vmatpush2.bf16.xpose.msra.mxu0 0
      %1927 = vmatprep.subr.bf16.mxu0 0
      %1928 = vmatpush2.bf16.xpose.msra.mxu0 0
      %1929 = vmatprep.subr.bf16.mxu0 0
      %1930 = vmatpush2.bf16.xpose.msra.mxu0 0
      %1931 = vmatprep.subr.bf16.mxu0 0
      %1932 = vmatpush2.bf16.xpose.msra.mxu0 0
      %1933 = vmatprep.mubr.bf16.mxu0 0
      %1934 = vmatmul.mubr.bf16.gmra.mxu0 %v1872
      %v1935 = vpop.f32.mrf.mxu0
      %v1936 = vadd.f32 0.0, %v1935
      %v1937 = vpop.f32.mrf.mxu0
      %v1938 = vpop.f32.mrf.mxu0
      %v1939 = vadd.f32 0.0, %v1938
      %v1940 = vpop.f32.mrf.mxu0
      %1941 = vmatprep.mubr.bf16.mxu0 0
      %1942 = vmatmul.mubr.bf16.gmra.mxu0 %v1875
      %v1943 = vpop.f32.mrf.mxu0
      %v1944 = vadd.f32 0.0, %v1943
      %v1945 = vpop.f32.mrf.mxu0
      %v1946 = vpop.f32.mrf.mxu0
      %v1947 = vadd.f32 0.0, %v1946
      %v1948 = vpop.f32.mrf.mxu0
      %1949 = vmatprep.mubr.bf16.mxu0 0
      %1950 = vmatmul.mubr.bf16.gmra.mxu0 %v1878
      %v1951 = vpop.f32.mrf.mxu0
      %v1952 = vadd.f32 0.0, %v1951
      %v1953 = vpop.f32.mrf.mxu0
      %v1954 = vpop.f32.mrf.mxu0
      %v1955 = vadd.f32 0.0, %v1954
      %v1956 = vpop.f32.mrf.mxu0
      %1957 = vmatprep.mubr.bf16.mxu0 0
      %1958 = vmatmul.mubr.bf16.gmra.mxu0 %v1881
      %v1959 = vpop.f32.mrf.mxu0
      %v1960 = vadd.f32 0.0, %v1959
      %v1961 = vpop.f32.mrf.mxu0
      %v1962 = vpop.f32.mrf.mxu0
      %v1963 = vadd.f32 0.0, %v1962
      %v1964 = vpop.f32.mrf.mxu0
      %1965 = vmatprep.mubr.bf16.mxu0 0
      %1966 = vmatmul.mubr.bf16.gmra.mxu0 %v1884
      %v1967 = vpop.f32.mrf.mxu0
      %v1968 = vadd.f32 0.0, %v1967
      %v1969 = vpop.f32.mrf.mxu0
      %v1970 = vpop.f32.mrf.mxu0
      %v1971 = vadd.f32 0.0, %v1970
      %v1972 = vpop.f32.mrf.mxu0
      %1973 = vdwg.mxu0
      %v1974 = vsel %vm1615, %v1936, -inf
      %1975 = vmax.xlane.f32.xlu0 %v1974
      %v1976 = vpop.xlane.xlu0 %1975
      %v1977 = vsel %vm1615, %v1939, -inf
      %1978 = vmax.xlane.f32.xlu0 %v1977
      %v1979 = vpop.xlane.xlu0 %1978
      %v1980 = vsel %vm1615, %v1944, -inf
      %1981 = vmax.xlane.f32.xlu0 %v1980
      %v1982 = vpop.xlane.xlu0 %1981
      %v1983 = vsel %vm1615, %v1947, -inf
      %1984 = vmax.xlane.f32.xlu0 %v1983
      %v1985 = vpop.xlane.xlu0 %1984
      %v1986 = vsel %vm1615, %v1952, -inf
      %1987 = vmax.xlane.f32.xlu0 %v1986
      %v1988 = vpop.xlane.xlu0 %1987
      %v1989 = vsel %vm1615, %v1955, -inf
      %1990 = vmax.xlane.f32.xlu0 %v1989
      %v1991 = vpop.xlane.xlu0 %1990
      %v1992 = vsel %vm1615, %v1960, -inf
      %1993 = vmax.xlane.f32.xlu0 %v1992
      %v1994 = vpop.xlane.xlu0 %1993
      %v1995 = vsel %vm1615, %v1963, -inf
      %1996 = vmax.xlane.f32.xlu0 %v1995
      %v1997 = vpop.xlane.xlu0 %1996
      %v1998 = vsel %vm1615, %v1968, -inf
      %1999 = vmax.xlane.f32.xlu0 %v1998
      %v2000 = vpop.xlane.xlu0 %1999
      %v2001 = vsel %vm1615, %v1971, -inf
      %2002 = vmax.xlane.f32.xlu0 %v2001
      %v2003 = vpop.xlane.xlu0 %2002
      %v2004 = vsub.f32 %v1936, %v1976
      %v2005 = vsub.f32 %v1939, %v1979
      %v2006 = vsub.f32 %v1944, %v1982
      %v2007 = vsub.f32 %v1947, %v1985
      %v2008 = vsub.f32 %v1952, %v1988
      %v2009 = vsub.f32 %v1955, %v1991
      %v2010 = vsub.f32 %v1960, %v1994
      %v2011 = vsub.f32 %v1963, %v1997
      %v2012 = vsub.f32 %v1968, %v2000
      %v2013 = vsub.f32 %v1971, %v2003
      %v2014 = vmul.f32 %v2004, 1.442695
      %v2015 = vpow.pop %v2014
      %v2016 = vmul.f32 %v2005, 1.442695
      %v2017 = vpow.pop %v2016
      %v2018 = vmul.f32 %v2006, 1.442695
      %v2019 = vpow.pop %v2018
      %v2020 = vmul.f32 %v2007, 1.442695
      %v2021 = vpow.pop %v2020
      %v2022 = vmul.f32 %v2008, 1.442695
      %v2023 = vpow.pop %v2022
      %v2024 = vmul.f32 %v2009, 1.442695
      %v2025 = vpow.pop %v2024
      %v2026 = vmul.f32 %v2010, 1.442695
      %v2027 = vpow.pop %v2026
      %v2028 = vmul.f32 %v2011, 1.442695
      %v2029 = vpow.pop %v2028
      %v2030 = vmul.f32 %v2012, 1.442695
      %v2031 = vpow.pop %v2030
      %v2032 = vmul.f32 %v2013, 1.442695
      %v2033 = vpow.pop %v2032
      %v2034 = vsel %vm1615, %v2015, 0.0
      %2035 = vadd.xlane.f32.xlu0 %v2034
      %v2036 = vpop.xlane.xlu0 %2035
      %v2037 = vsel %vm1615, %v2017, 0.0
      %2038 = vadd.xlane.f32.xlu0 %v2037
      %v2039 = vpop.xlane.xlu0 %2038
      %v2040 = vsel %vm1615, %v2019, 0.0
      %2041 = vadd.xlane.f32.xlu0 %v2040
      %v2042 = vpop.xlane.xlu0 %2041
      %v2043 = vsel %vm1615, %v2021, 0.0
      %2044 = vadd.xlane.f32.xlu0 %v2043
      %v2045 = vpop.xlane.xlu0 %2044
      %v2046 = vsel %vm1615, %v2023, 0.0
      %2047 = vadd.xlane.f32.xlu0 %v2046
      %v2048 = vpop.xlane.xlu0 %2047
      %v2049 = vsel %vm1615, %v2025, 0.0
      %2050 = vadd.xlane.f32.xlu0 %v2049
      %v2051 = vpop.xlane.xlu0 %2050
      %v2052 = vsel %vm1615, %v2027, 0.0
      %2053 = vadd.xlane.f32.xlu0 %v2052
      %v2054 = vpop.xlane.xlu0 %2053
      %v2055 = vsel %vm1615, %v2029, 0.0
      %2056 = vadd.xlane.f32.xlu0 %v2055
      %v2057 = vpop.xlane.xlu0 %2056
      %v2058 = vsel %vm1615, %v2031, 0.0
      %2059 = vadd.xlane.f32.xlu0 %v2058
      %v2060 = vpop.xlane.xlu0 %2059
      %v2061 = vsel %vm1615, %v2033, 0.0
      %2062 = vadd.xlane.f32.xlu0 %v2061
      %v2063 = vpop.xlane.xlu0 %2062
      %v2064 = vpack.c.bf16 %v2017, %v2015
      %v2065 = vpack.c.bf16 %v2021, %v2019
      %v2066 = vpack.c.bf16 %v2025, %v2023
      %v2067 = vpack.c.bf16 %v2029, %v2027
      %v2068 = vpack.c.bf16 %v2033, %v2031
      %2069 = vrot.lane.b32.xlu0 %v1040, 48
      %v2070 = vpop.permute.xlu0 %2069
      %2071 = vrot.lane.b32.xlu0 %v1041, 48
      %v2072 = vpop.permute.xlu0 %2071
      %2073 = vrot.lane.b32.xlu0 %v1042, 48
      %v2074 = vpop.permute.xlu0 %2073
      %2075 = vrot.lane.b32.xlu0 %v1043, 48
      %v2076 = vpop.permute.xlu0 %2075
      %2077 = vrot.lane.b32.xlu0 %v1044, 48
      %v2078 = vpop.permute.xlu0 %2077
      %v2085 = vsel %vm1615, %v2064, 0
      %v2088 = vsel %vm1615, %v2065, 0
      %v2091 = vsel %vm1615, %v2066, 0
      %v2094 = vsel %vm1615, %v2067, 0
      %v2097 = vsel %vm1615, %v2068, 0
      %2099 = vmatprep.subr.bf16.mxu0 0
      %2100 = vmatpush1.bf16.msra.mxu0 0
      %2101 = vmatprep.subr.bf16.mxu0 0
      %2102 = vmatpush1.bf16.msra.mxu0 0
      %2103 = vmatprep.subr.bf16.mxu0 0
      %2104 = vmatpush1.bf16.msra.mxu0 0
      %2105 = vmatprep.subr.bf16.mxu0 0
      %2106 = vmatpush1.bf16.msra.mxu0 %v2078
      %2107 = vmatprep.subr.bf16.mxu0 0
      %2108 = vmatpush1.bf16.msra.mxu0 %v2076
      %2109 = vmatprep.subr.bf16.mxu0 0
      %2110 = vmatpush1.bf16.msra.mxu0 %v2074
      %2111 = vmatprep.subr.bf16.mxu0 0
      %2112 = vmatpush1.bf16.msra.mxu0 %v2072
      %2113 = vmatprep.subr.bf16.mxu0 0
      %2114 = vmatpush1.bf16.msra.mxu0 %v2070
      %2115 = vmatprep.subr.bf16.mxu0 0
      %2116 = vmatpush2.bf16.msra.mxu0 0
      %2117 = vmatprep.subr.bf16.mxu0 0
      %2118 = vmatpush2.bf16.msra.mxu0 0
      %2119 = vmatprep.subr.bf16.mxu0 0
      %2120 = vmatpush2.bf16.msra.mxu0 0
      %2121 = vmatprep.subr.bf16.mxu0 0
      %2122 = vmatpush2.bf16.msra.mxu0 0
      %2123 = vmatprep.subr.bf16.mxu0 0
      %2124 = vmatpush2.bf16.msra.mxu0 0
      %2125 = vmatprep.subr.bf16.mxu0 0
      %2126 = vmatpush2.bf16.msra.mxu0 0
      %2127 = vmatprep.subr.bf16.mxu0 0
      %2128 = vmatpush2.bf16.msra.mxu0 0
      %2129 = vmatprep.subr.bf16.mxu0 0
      %2130 = vmatpush2.bf16.msra.mxu0 0
      %2131 = vmatprep.mubr.bf16.mxu0 0
      %2132 = vmatmul.mubr.bf16.gmra.mxu0 %v2085
      %v2133 = vpop.f32.mrf.mxu0
      %v2134 = vadd.f32 0.0, %v2133
      %v2135 = vpop.f32.mrf.mxu0
      %v2136 = vpop.f32.mrf.mxu0
      %v2137 = vadd.f32 0.0, %v2136
      %v2138 = vpop.f32.mrf.mxu0
      %2139 = vmatprep.mubr.bf16.mxu0 0
      %2140 = vmatmul.mubr.bf16.gmra.mxu0 %v2088
      %v2141 = vpop.f32.mrf.mxu0
      %v2142 = vadd.f32 0.0, %v2141
      %v2143 = vpop.f32.mrf.mxu0
      %v2144 = vpop.f32.mrf.mxu0
      %v2145 = vadd.f32 0.0, %v2144
      %v2146 = vpop.f32.mrf.mxu0
      %2147 = vmatprep.mubr.bf16.mxu0 0
      %2148 = vmatmul.mubr.bf16.gmra.mxu0 %v2091
      %v2149 = vpop.f32.mrf.mxu0
      %v2150 = vadd.f32 0.0, %v2149
      %v2151 = vpop.f32.mrf.mxu0
      %v2152 = vpop.f32.mrf.mxu0
      %v2153 = vadd.f32 0.0, %v2152
      %v2154 = vpop.f32.mrf.mxu0
      %2155 = vmatprep.mubr.bf16.mxu0 0
      %2156 = vmatmul.mubr.bf16.gmra.mxu0 %v2094
      %v2157 = vpop.f32.mrf.mxu0
      %v2158 = vadd.f32 0.0, %v2157
      %v2159 = vpop.f32.mrf.mxu0
      %v2160 = vpop.f32.mrf.mxu0
      %v2161 = vadd.f32 0.0, %v2160
      %v2162 = vpop.f32.mrf.mxu0
      %2163 = vmatprep.mubr.bf16.mxu0 0
      %2164 = vmatmul.mubr.bf16.gmra.mxu0 %v2097
      %v2165 = vpop.f32.mrf.mxu0
      %v2166 = vadd.f32 0.0, %v2165
      %v2167 = vpop.f32.mrf.mxu0
      %v2168 = vpop.f32.mrf.mxu0
      %v2169 = vadd.f32 0.0, %v2168
      %v2170 = vpop.f32.mrf.mxu0
      %2171 = vdwg.mxu0
      %v2172 = vrcp.pop %v2036
      %v2173 = vrcp.pop %v2039
      %v2174 = vrcp.pop %v2042
      %v2175 = vrcp.pop %v2045
      %v2176 = vrcp.pop %v2048
      %v2177 = vrcp.pop %v2051
      %v2178 = vrcp.pop %v2054
      %v2179 = vrcp.pop %v2057
      %v2180 = vrcp.pop %v2060
      %v2181 = vrcp.pop %v2063
      %v2182 = vmul.f32 %v2134, %v2172
      %v2183 = vmul.f32 %v2137, %v2173
      %v2184 = vmul.f32 %v2142, %v2174
      %v2185 = vmul.f32 %v2145, %v2175
      %v2186 = vmul.f32 %v2150, %v2176
      %v2187 = vmul.f32 %v2153, %v2177
      %v2188 = vmul.f32 %v2158, %v2178
      %v2189 = vmul.f32 %v2161, %v2179
      %v2190 = vmul.f32 %v2166, %v2180
      %v2191 = vmul.f32 %v2169, %v2181
      %v2192 = vpack.c.bf16 %v2183, %v2182
      %v2193 = vpack.c.bf16 %v2185, %v2184
      %v2194 = vpack.c.bf16 %v2187, %v2186
      %v2195 = vpack.c.bf16 %v2189, %v2188
      %v2196 = vpack.c.bf16 %v2191, %v2190
      %v2197 = vld [vmem:[%s670 + $0x8] sm:$0xf]
      %v2198 = vld [vmem:[%s670 + $0xc] sm:$0xf]
      %v2201 = vunpack.c.l.b16 %v2197
      %v2202 = vunpack.c.l.b16 %v2198
      %v2203 = vpack.c.b16 %v2202, %v2201
      %v2206 = vsel %vm1206, %v2192, 0
      %v2209 = vsel %vm1206, %v2193, 0
      %v2212 = vsel %vm1206, %v2194, 0
      %v2215 = vsel %vm1206, %v2195, 0
      %v2218 = vsel %vm1206, %v2196, 0
      %2220 = vmatprep.subr.bf16.mxu0 0
      %2221 = vmatpush1.bf16.msra.mxu0 0
      %2222 = vmatprep.subr.bf16.mxu0 0
      %2223 = vmatpush1.bf16.msra.mxu0 0
      %2224 = vmatprep.subr.bf16.mxu0 0
      %2225 = vmatpush1.bf16.msra.mxu0 0
      %2226 = vmatprep.subr.bf16.mxu0 0
      %2227 = vmatpush1.bf16.msra.mxu0 0
      %2228 = vmatprep.subr.bf16.mxu0 0
      %2229 = vmatpush1.bf16.msra.mxu0 0
      %2230 = vmatprep.subr.bf16.mxu0 0
      %2231 = vmatpush1.bf16.msra.mxu0 0
      %2232 = vmatprep.subr.bf16.mxu0 0
      %2233 = vmatpush1.bf16.msra.mxu0 0
      %2234 = vmatprep.subr.bf16.mxu0 0
      %2235 = vmatpush1.bf16.msra.mxu0 %v2203
      %2236 = vmatprep.subr.bf16.mxu0 0
      %2237 = vmatpush2.bf16.msra.mxu0 0
      %2238 = vmatprep.subr.bf16.mxu0 0
      %2239 = vmatpush2.bf16.msra.mxu0 0
      %2240 = vmatprep.subr.bf16.mxu0 0
      %2241 = vmatpush2.bf16.msra.mxu0 0
      %2242 = vmatprep.subr.bf16.mxu0 0
      %2243 = vmatpush2.bf16.msra.mxu0 0
      %2244 = vmatprep.subr.bf16.mxu0 0
      %2245 = vmatpush2.bf16.msra.mxu0 0
      %2246 = vmatprep.subr.bf16.mxu0 0
      %2247 = vmatpush2.bf16.msra.mxu0 0
      %2248 = vmatprep.subr.bf16.mxu0 0
      %2249 = vmatpush2.bf16.msra.mxu0 0
      %2250 = vmatprep.subr.bf16.mxu0 0
      %2251 = vmatpush2.bf16.msra.mxu0 0
      %2252 = vmatprep.mubr.bf16.mxu0 0
      %2253 = vmatmul.mubr.bf16.gmra.mxu0 %v2206
      %v2254 = vpop.f32.mrf.mxu0
      %v2255 = vadd.f32 0.0, %v2254
      %v2256 = vpop.f32.mrf.mxu0
      %v2257 = vpop.f32.mrf.mxu0
      %v2258 = vadd.f32 0.0, %v2257
      %v2259 = vpop.f32.mrf.mxu0
      %2260 = vmatprep.mubr.bf16.mxu0 0
      %2261 = vmatmul.mubr.bf16.gmra.mxu0 %v2209
      %v2262 = vpop.f32.mrf.mxu0
      %v2263 = vadd.f32 0.0, %v2262
      %v2264 = vpop.f32.mrf.mxu0
      %v2265 = vpop.f32.mrf.mxu0
      %v2266 = vadd.f32 0.0, %v2265
      %v2267 = vpop.f32.mrf.mxu0
      %2268 = vmatprep.mubr.bf16.mxu0 0
      %2269 = vmatmul.mubr.bf16.gmra.mxu0 %v2212
      %v2270 = vpop.f32.mrf.mxu0
      %v2271 = vadd.f32 0.0, %v2270
      %v2272 = vpop.f32.mrf.mxu0
      %v2273 = vpop.f32.mrf.mxu0
      %v2274 = vadd.f32 0.0, %v2273
      %v2275 = vpop.f32.mrf.mxu0
      %2276 = vmatprep.mubr.bf16.mxu0 0
      %2277 = vmatmul.mubr.bf16.gmra.mxu0 %v2215
      %v2278 = vpop.f32.mrf.mxu0
      %v2279 = vadd.f32 0.0, %v2278
      %v2280 = vpop.f32.mrf.mxu0
      %v2281 = vpop.f32.mrf.mxu0
      %v2282 = vadd.f32 0.0, %v2281
      %v2283 = vpop.f32.mrf.mxu0
      %2284 = vmatprep.mubr.bf16.mxu0 0
      %2285 = vmatmul.mubr.bf16.gmra.mxu0 %v2218
      %v2286 = vpop.f32.mrf.mxu0
      %v2287 = vadd.f32 0.0, %v2286
      %v2288 = vpop.f32.mrf.mxu0
      %v2289 = vpop.f32.mrf.mxu0
      %v2290 = vadd.f32 0.0, %v2289
      %v2291 = vpop.f32.mrf.mxu0
      %2292 = vdwg.mxu0
      %v2295 = vunpack.c.l.b16 %v1844
      %v2296 = vunpack.c.l.b16 %v1845
      %v2297 = vpack.c.b16 %v2296, %v2295
      %v2300 = vsel %vm1206, %v1839, 0
      %v2303 = vsel %vm1206, %v1840, 0
      %v2306 = vsel %vm1206, %v1841, 0
      %v2309 = vsel %vm1206, %v1842, 0
      %v2312 = vsel %vm1206, %v1843, 0
      %2314 = vmatprep.subr.bf16.mxu0 0
      %2315 = vmatpush1.bf16.msra.mxu0 0
      %2316 = vmatprep.subr.bf16.mxu0 0
      %2317 = vmatpush1.bf16.msra.mxu0 0
      %2318 = vmatprep.subr.bf16.mxu0 0
      %2319 = vmatpush1.bf16.msra.mxu0 0
      %2320 = vmatprep.subr.bf16.mxu0 0
      %2321 = vmatpush1.bf16.msra.mxu0 0
      %2322 = vmatprep.subr.bf16.mxu0 0
      %2323 = vmatpush1.bf16.msra.mxu0 0
      %2324 = vmatprep.subr.bf16.mxu0 0
      %2325 = vmatpush1.bf16.msra.mxu0 0
      %2326 = vmatprep.subr.bf16.mxu0 0
      %2327 = vmatpush1.bf16.msra.mxu0 0
      %2328 = vmatprep.subr.bf16.mxu0 0
      %2329 = vmatpush1.bf16.msra.mxu0 %v2297
      %2330 = vmatprep.subr.bf16.mxu0 0
      %2331 = vmatpush2.bf16.msra.mxu0 0
      %2332 = vmatprep.subr.bf16.mxu0 0
      %2333 = vmatpush2.bf16.msra.mxu0 0
      %2334 = vmatprep.subr.bf16.mxu0 0
      %2335 = vmatpush2.bf16.msra.mxu0 0
      %2336 = vmatprep.subr.bf16.mxu0 0
      %2337 = vmatpush2.bf16.msra.mxu0 0
      %2338 = vmatprep.subr.bf16.mxu0 0
      %2339 = vmatpush2.bf16.msra.mxu0 0
      %2340 = vmatprep.subr.bf16.mxu0 0
      %2341 = vmatpush2.bf16.msra.mxu0 0
      %2342 = vmatprep.subr.bf16.mxu0 0
      %2343 = vmatpush2.bf16.msra.mxu0 0
      %2344 = vmatprep.subr.bf16.mxu0 0
      %2345 = vmatpush2.bf16.msra.mxu0 0
      %2346 = vmatprep.mubr.bf16.mxu0 0
      %2347 = vmatmul.mubr.bf16.gmra.mxu0 %v2300
      %v2348 = vpop.f32.mrf.mxu0
      %v2349 = vadd.f32 %v2255, %v2348
      %v2350 = vpop.f32.mrf.mxu0
      %v2351 = vpop.f32.mrf.mxu0
      %v2352 = vadd.f32 %v2258, %v2351
      %v2353 = vpop.f32.mrf.mxu0
      %2354 = vmatprep.mubr.bf16.mxu0 0
      %2355 = vmatmul.mubr.bf16.gmra.mxu0 %v2303
      %v2356 = vpop.f32.mrf.mxu0
      %v2357 = vadd.f32 %v2263, %v2356
      %v2358 = vpop.f32.mrf.mxu0
      %v2359 = vpop.f32.mrf.mxu0
      %v2360 = vadd.f32 %v2266, %v2359
      %v2361 = vpop.f32.mrf.mxu0
      %2362 = vmatprep.mubr.bf16.mxu0 0
      %2363 = vmatmul.mubr.bf16.gmra.mxu0 %v2306
      %v2364 = vpop.f32.mrf.mxu0
      %v2365 = vadd.f32 %v2271, %v2364
      %v2366 = vpop.f32.mrf.mxu0
      %v2367 = vpop.f32.mrf.mxu0
      %v2368 = vadd.f32 %v2274, %v2367
      %v2369 = vpop.f32.mrf.mxu0
      %2370 = vmatprep.mubr.bf16.mxu0 0
      %2371 = vmatmul.mubr.bf16.gmra.mxu0 %v2309
      %v2372 = vpop.f32.mrf.mxu0
      %v2373 = vadd.f32 %v2279, %v2372
      %v2374 = vpop.f32.mrf.mxu0
      %v2375 = vpop.f32.mrf.mxu0
      %v2376 = vadd.f32 %v2282, %v2375
      %v2377 = vpop.f32.mrf.mxu0
      %2378 = vmatprep.mubr.bf16.mxu0 0
      %2379 = vmatmul.mubr.bf16.gmra.mxu0 %v2312
      %v2380 = vpop.f32.mrf.mxu0
      %v2381 = vadd.f32 %v2287, %v2380
      %v2382 = vpop.f32.mrf.mxu0
      %v2383 = vpop.f32.mrf.mxu0
      %v2384 = vadd.f32 %v2290, %v2383
      %v2385 = vpop.f32.mrf.mxu0
      %2386 = vdwg.mxu0
      %v2387 = vadd.f32 %v728, %v2349
      %v2388 = vadd.f32 %v729, %v2352
      %v2389 = vadd.f32 %v730, %v2357
      %v2390 = vadd.f32 %v731, %v2360
      %v2391 = vadd.f32 %v732, %v2365
      %v2392 = vadd.f32 %v733, %v2368
      %v2393 = vadd.f32 %v734, %v2373
      %v2394 = vadd.f32 %v735, %v2376
      %v2395 = vadd.f32 %v736, %v2381
      %v2396 = vadd.f32 %v737, %v2384
      %v2397 = vld [vmem:[%s673] sm:$0x1]
      %v2399 = vlaneseq
      %v2400 = vshrl.u32 %v2399, 7
      %v2401 = vsub.s32 0, %v2400
      %v2402 = vrot.slane %v2397, %v2401
      %v2404 = vadd.f32 %v2387, %v2402
      %v2405 = vadd.f32 %v2388, %v2402
      %v2406 = vadd.f32 %v2389, %v2402
      %v2407 = vadd.f32 %v2390, %v2402
      %v2408 = vadd.f32 %v2391, %v2402
      %v2409 = vadd.f32 %v2392, %v2402
      %v2410 = vadd.f32 %v2393, %v2402
      %v2411 = vadd.f32 %v2394, %v2402
      %v2412 = vadd.f32 %v2395, %v2402
      %v2413 = vadd.f32 %v2396, %v2402
      %v2414 = vld [vmem:[%s676] sm:$0x1]
      %v2415 = vld [vmem:[%s679] sm:$0x1]
      %v2416 = vsel %vm760, %v2404, 0.0
      %2417 = vadd.xlane.f32.xlu0 %v2416
      %v2418 = vpop.xlane.xlu0 %2417
      %v2419 = vsel %vm760, %v2405, 0.0
      %2420 = vadd.xlane.f32.xlu0 %v2419
      %v2421 = vpop.xlane.xlu0 %2420
      %v2422 = vsel %vm760, %v2406, 0.0
      %2423 = vadd.xlane.f32.xlu0 %v2422
      %v2424 = vpop.xlane.xlu0 %2423
      %v2425 = vsel %vm760, %v2407, 0.0
      %2426 = vadd.xlane.f32.xlu0 %v2425
      %v2427 = vpop.xlane.xlu0 %2426
      %v2428 = vsel %vm760, %v2408, 0.0
      %2429 = vadd.xlane.f32.xlu0 %v2428
      %v2430 = vpop.xlane.xlu0 %2429
      %v2431 = vsel %vm760, %v2409, 0.0
      %2432 = vadd.xlane.f32.xlu0 %v2431
      %v2433 = vpop.xlane.xlu0 %2432
      %v2434 = vsel %vm760, %v2410, 0.0
      %2435 = vadd.xlane.f32.xlu0 %v2434
      %v2436 = vpop.xlane.xlu0 %2435
      %v2437 = vsel %vm760, %v2411, 0.0
      %2438 = vadd.xlane.f32.xlu0 %v2437
      %v2439 = vpop.xlane.xlu0 %2438
      %v2440 = vsel %vm760, %v2412, 0.0
      %2441 = vadd.xlane.f32.xlu0 %v2440
      %v2442 = vpop.xlane.xlu0 %2441
      %v2443 = vsel %vm760, %v2413, 0.0
      %2444 = vadd.xlane.f32.xlu0 %v2443
      %v2445 = vpop.xlane.xlu0 %2444
      %v2446 = vmul.f32 %v2418, %v791
      %v2447 = vmul.f32 %v2421, %v791
      %v2448 = vmul.f32 %v2424, %v791
      %v2449 = vmul.f32 %v2427, %v791
      %v2450 = vmul.f32 %v2430, %v791
      %v2451 = vmul.f32 %v2433, %v791
      %v2452 = vmul.f32 %v2436, %v791
      %v2453 = vmul.f32 %v2439, %v791
      %v2454 = vmul.f32 %v2442, %v791
      %v2455 = vmul.f32 %v2445, %v791
      %v2456 = vsub.f32 %v2404, %v2446
      %v2457 = vsub.f32 %v2405, %v2447
      %v2458 = vsub.f32 %v2406, %v2448
      %v2459 = vsub.f32 %v2407, %v2449
      %v2460 = vsub.f32 %v2408, %v2450
      %v2461 = vsub.f32 %v2409, %v2451
      %v2462 = vsub.f32 %v2410, %v2452
      %v2463 = vsub.f32 %v2411, %v2453
      %v2464 = vsub.f32 %v2412, %v2454
      %v2465 = vsub.f32 %v2413, %v2455
      %v2466 = vmul.f32 %v2456, %v2456
      %v2467 = vmul.f32 %v2457, %v2457
      %v2468 = vmul.f32 %v2458, %v2458
      %v2469 = vmul.f32 %v2459, %v2459
      %v2470 = vmul.f32 %v2460, %v2460
      %v2471 = vmul.f32 %v2461, %v2461
      %v2472 = vmul.f32 %v2462, %v2462
      %v2473 = vmul.f32 %v2463, %v2463
      %v2474 = vmul.f32 %v2464, %v2464
      %v2475 = vmul.f32 %v2465, %v2465
      %v2476 = vsel %vm760, %v2466, 0.0
      %2477 = vadd.xlane.f32.xlu0 %v2476
      %v2478 = vpop.xlane.xlu0 %2477
      %v2479 = vsel %vm760, %v2467, 0.0
      %2480 = vadd.xlane.f32.xlu0 %v2479
      %v2481 = vpop.xlane.xlu0 %2480
      %v2482 = vsel %vm760, %v2468, 0.0
      %2483 = vadd.xlane.f32.xlu0 %v2482
      %v2484 = vpop.xlane.xlu0 %2483
      %v2485 = vsel %vm760, %v2469, 0.0
      %2486 = vadd.xlane.f32.xlu0 %v2485
      %v2487 = vpop.xlane.xlu0 %2486
      %v2488 = vsel %vm760, %v2470, 0.0
      %2489 = vadd.xlane.f32.xlu0 %v2488
      %v2490 = vpop.xlane.xlu0 %2489
      %v2491 = vsel %vm760, %v2471, 0.0
      %2492 = vadd.xlane.f32.xlu0 %v2491
      %v2493 = vpop.xlane.xlu0 %2492
      %v2494 = vsel %vm760, %v2472, 0.0
      %2495 = vadd.xlane.f32.xlu0 %v2494
      %v2496 = vpop.xlane.xlu0 %2495
      %v2497 = vsel %vm760, %v2473, 0.0
      %2498 = vadd.xlane.f32.xlu0 %v2497
      %v2499 = vpop.xlane.xlu0 %2498
      %v2500 = vsel %vm760, %v2474, 0.0
      %2501 = vadd.xlane.f32.xlu0 %v2500
      %v2502 = vpop.xlane.xlu0 %2501
      %v2503 = vsel %vm760, %v2475, 0.0
      %2504 = vadd.xlane.f32.xlu0 %v2503
      %v2505 = vpop.xlane.xlu0 %2504
      %v2506 = vmul.f32 %v2478, %v791
      %v2507 = vmul.f32 %v2481, %v791
      %v2508 = vmul.f32 %v2484, %v791
      %v2509 = vmul.f32 %v2487, %v791
      %v2510 = vmul.f32 %v2490, %v791
      %v2511 = vmul.f32 %v2493, %v791
      %v2512 = vmul.f32 %v2496, %v791
      %v2513 = vmul.f32 %v2499, %v791
      %v2514 = vmul.f32 %v2502, %v791
      %v2515 = vmul.f32 %v2505, %v791
      %v2516 = vadd.f32 %v2506, 1e-06
      %v2517 = vadd.f32 %v2507, 1e-06
      %v2518 = vadd.f32 %v2508, 1e-06
      %v2519 = vadd.f32 %v2509, 1e-06
      %v2520 = vadd.f32 %v2510, 1e-06
      %v2521 = vadd.f32 %v2511, 1e-06
      %v2522 = vadd.f32 %v2512, 1e-06
      %v2523 = vadd.f32 %v2513, 1e-06
      %v2524 = vadd.f32 %v2514, 1e-06
      %v2525 = vadd.f32 %v2515, 1e-06
      %v2526 = vrsqrt.pop %v2516
      %v2527 = vrsqrt.pop %v2517
      %v2528 = vrsqrt.pop %v2518
      %v2529 = vrsqrt.pop %v2519
      %v2530 = vrsqrt.pop %v2520
      %v2531 = vrsqrt.pop %v2521
      %v2532 = vrsqrt.pop %v2522
      %v2533 = vrsqrt.pop %v2523
      %v2534 = vrsqrt.pop %v2524
      %v2535 = vrsqrt.pop %v2525
      %v2536 = vmul.f32 %v2456, %v2526
      %v2537 = vmul.f32 %v2457, %v2527
      %v2538 = vmul.f32 %v2458, %v2528
      %v2539 = vmul.f32 %v2459, %v2529
      %v2540 = vmul.f32 %v2460, %v2530
      %v2541 = vmul.f32 %v2461, %v2531
      %v2542 = vmul.f32 %v2462, %v2532
      %v2543 = vmul.f32 %v2463, %v2533
      %v2544 = vmul.f32 %v2464, %v2534
      %v2545 = vmul.f32 %v2465, %v2535
      %v2547 = vlaneseq
      %v2548 = vshrl.u32 %v2547, 7
      %v2549 = vsub.s32 0, %v2548
      %v2550 = vrot.slane %v2414, %v2549
      %v2552 = vmul.f32 %v2536, %v2550
      %v2553 = vmul.f32 %v2537, %v2550
      %v2554 = vmul.f32 %v2538, %v2550
      %v2555 = vmul.f32 %v2539, %v2550
      %v2556 = vmul.f32 %v2540, %v2550
      %v2557 = vmul.f32 %v2541, %v2550
      %v2558 = vmul.f32 %v2542, %v2550
      %v2559 = vmul.f32 %v2543, %v2550
      %v2560 = vmul.f32 %v2544, %v2550
      %v2561 = vmul.f32 %v2545, %v2550
      %v2563 = vlaneseq
      %v2564 = vshrl.u32 %v2563, 7
      %v2565 = vsub.s32 0, %v2564
      %v2566 = vrot.slane %v2415, %v2565
      %v2568 = vadd.f32 %v2552, %v2566
      %v2569 = vadd.f32 %v2553, %v2566
      %v2570 = vadd.f32 %v2554, %v2566
      %v2571 = vadd.f32 %v2555, %v2566
      %v2572 = vadd.f32 %v2556, %v2566
      %v2573 = vadd.f32 %v2557, %v2566
      %v2574 = vadd.f32 %v2558, %v2566
      %v2575 = vadd.f32 %v2559, %v2566
      %v2576 = vadd.f32 %v2560, %v2566
      %v2577 = vadd.f32 %v2561, %v2566
      %v2578 = vpack.c.bf16 %v2569, %v2568
      %v2579 = vpack.c.bf16 %v2571, %v2570
      %v2580 = vpack.c.bf16 %v2573, %v2572
      %v2581 = vpack.c.bf16 %v2575, %v2574
      %v2582 = vpack.c.bf16 %v2577, %v2576
      %v2583 = vld [vmem:[%s684] sm:$0xf]
      %v2584 = vld [vmem:[%s684 + $0x4] sm:$0xf]
      %v2585 = vld [vmem:[%s684 + $0x8] sm:$0xf]
      %v2586 = vld [vmem:[%s684 + $0xc] sm:$0xf]
      %v2587 = vld [vmem:[%s687] sm:$0x1]
      %v2589 = vlaneseq
      %v2590 = vshrl.u32 %v2589, 7
      %v2591 = vsub.s32 0, %v2590
      %v2592 = vrot.slane %v2587, %v2591
      %v2598 = vunpack.c.l.b16 %v2583
      %v2599 = vunpack.c.l.b16 %v2584
      %v2600 = vunpack.c.l.b16 %v2585
      %v2601 = vunpack.c.l.b16 %v2586
      %v2602 = vpack.c.b16 %v2599, %v2598
      %v2603 = vpack.c.b16 %v2601, %v2600
      %v2607 = vsel %vm760, %v2578, 0
      %v2610 = vsel %vm760, %v2579, 0
      %v2613 = vsel %vm760, %v2580, 0
      %v2616 = vsel %vm760, %v2581, 0
      %v2619 = vsel %vm760, %v2582, 0
      %2621 = vmatprep.subr.bf16.mxu0 0
      %2622 = vmatpush1.bf16.msra.mxu0 0
      %2623 = vmatprep.subr.bf16.mxu0 0
      %2624 = vmatpush1.bf16.msra.mxu0 0
      %2625 = vmatprep.subr.bf16.mxu0 0
      %2626 = vmatpush1.bf16.msra.mxu0 0
      %2627 = vmatprep.subr.bf16.mxu0 0
      %2628 = vmatpush1.bf16.msra.mxu0 0
      %2629 = vmatprep.subr.bf16.mxu0 0
      %2630 = vmatpush1.bf16.msra.mxu0 0
      %2631 = vmatprep.subr.bf16.mxu0 0
      %2632 = vmatpush1.bf16.msra.mxu0 0
      %2633 = vmatprep.subr.bf16.mxu0 0
      %2634 = vmatpush1.bf16.msra.mxu0 %v2603
      %2635 = vmatprep.subr.bf16.mxu0 0
      %2636 = vmatpush1.bf16.msra.mxu0 %v2602
      %2637 = vmatprep.subr.bf16.mxu0 0
      %2638 = vmatpush2.bf16.msra.mxu0 0
      %2639 = vmatprep.subr.bf16.mxu0 0
      %2640 = vmatpush2.bf16.msra.mxu0 0
      %2641 = vmatprep.subr.bf16.mxu0 0
      %2642 = vmatpush2.bf16.msra.mxu0 0
      %2643 = vmatprep.subr.bf16.mxu0 0
      %2644 = vmatpush2.bf16.msra.mxu0 0
      %2645 = vmatprep.subr.bf16.mxu0 0
      %2646 = vmatpush2.bf16.msra.mxu0 0
      %2647 = vmatprep.subr.bf16.mxu0 0
      %2648 = vmatpush2.bf16.msra.mxu0 0
      %2649 = vmatprep.subr.bf16.mxu0 0
      %2650 = vmatpush2.bf16.msra.mxu0 0
      %2651 = vmatprep.subr.bf16.mxu0 0
      %2652 = vmatpush2.bf16.msra.mxu0 0
      %2653 = vmatprep.mubr.bf16.mxu0 0
      %2654 = vmatmul.mubr.bf16.gmra.mxu0 %v2607
      %v2655 = vpop.f32.mrf.mxu0
      %v2656 = vadd.f32 %v2592, %v2655
      %v2657 = vpop.f32.mrf.mxu0
      %v2658 = vpop.f32.mrf.mxu0
      %v2659 = vadd.f32 %v2592, %v2658
      %v2660 = vpop.f32.mrf.mxu0
      %2661 = vmatprep.mubr.bf16.mxu0 0
      %2662 = vmatmul.mubr.bf16.gmra.mxu0 %v2610
      %v2663 = vpop.f32.mrf.mxu0
      %v2664 = vadd.f32 %v2592, %v2663
      %v2665 = vpop.f32.mrf.mxu0
      %v2666 = vpop.f32.mrf.mxu0
      %v2667 = vadd.f32 %v2592, %v2666
      %v2668 = vpop.f32.mrf.mxu0
      %2669 = vmatprep.mubr.bf16.mxu0 0
      %2670 = vmatmul.mubr.bf16.gmra.mxu0 %v2613
      %v2671 = vpop.f32.mrf.mxu0
      %v2672 = vadd.f32 %v2592, %v2671
      %v2673 = vpop.f32.mrf.mxu0
      %v2674 = vpop.f32.mrf.mxu0
      %v2675 = vadd.f32 %v2592, %v2674
      %v2676 = vpop.f32.mrf.mxu0
      %2677 = vmatprep.mubr.bf16.mxu0 0
      %2678 = vmatmul.mubr.bf16.gmra.mxu0 %v2616
      %v2679 = vpop.f32.mrf.mxu0
      %v2680 = vadd.f32 %v2592, %v2679
      %v2681 = vpop.f32.mrf.mxu0
      %v2682 = vpop.f32.mrf.mxu0
      %v2683 = vadd.f32 %v2592, %v2682
      %v2684 = vpop.f32.mrf.mxu0
      %2685 = vmatprep.mubr.bf16.mxu0 0
      %2686 = vmatmul.mubr.bf16.gmra.mxu0 %v2619
      %v2687 = vpop.f32.mrf.mxu0
      %v2688 = vadd.f32 %v2592, %v2687
      %v2689 = vpop.f32.mrf.mxu0
      %v2690 = vpop.f32.mrf.mxu0
      %v2691 = vadd.f32 %v2592, %v2690
      %v2692 = vpop.f32.mrf.mxu0
      %2693 = vdwg.mxu0
      %v2694 = vmul.f32 %v2656, 0.5
      %v2695 = vmul.f32 %v2659, 0.5
      %v2696 = vmul.f32 %v2664, 0.5
      %v2697 = vmul.f32 %v2667, 0.5
      %v2698 = vmul.f32 %v2672, 0.5
      %v2699 = vmul.f32 %v2675, 0.5
      %v2700 = vmul.f32 %v2680, 0.5
      %v2701 = vmul.f32 %v2683, 0.5
      %v2702 = vmul.f32 %v2688, 0.5
      %v2703 = vmul.f32 %v2691, 0.5
      %v2704 = vmul.f32 %v2656, 0.70710677
      %v2705 = vmul.f32 %v2659, 0.70710677
      %v2706 = vmul.f32 %v2664, 0.70710677
      %v2707 = vmul.f32 %v2667, 0.70710677
      %v2708 = vmul.f32 %v2672, 0.70710677
      %v2709 = vmul.f32 %v2675, 0.70710677
      %v2710 = vmul.f32 %v2680, 0.70710677
      %v2711 = vmul.f32 %v2683, 0.70710677
      %v2712 = vmul.f32 %v2688, 0.70710677
      %v2713 = vmul.f32 %v2691, 0.70710677
      %v2714 = vand.u32 2147483647, %v2704
      %v2715 = vand.u32 2147483647, %v2705
      %v2716 = vand.u32 2147483647, %v2706
      %v2717 = vand.u32 2147483647, %v2707
      %v2718 = vand.u32 2147483647, %v2708
      %v2719 = vand.u32 2147483647, %v2709
      %v2720 = vand.u32 2147483647, %v2710
      %v2721 = vand.u32 2147483647, %v2711
      %v2722 = vand.u32 2147483647, %v2712
      %v2723 = vand.u32 2147483647, %v2713
      %v2724 = vmul.f32 %v2714, 0.3275911
      %v2725 = vmul.f32 %v2715, 0.3275911
      %v2726 = vmul.f32 %v2716, 0.3275911
      %v2727 = vmul.f32 %v2717, 0.3275911
      %v2728 = vmul.f32 %v2718, 0.3275911
      %v2729 = vmul.f32 %v2719, 0.3275911
      %v2730 = vmul.f32 %v2720, 0.3275911
      %v2731 = vmul.f32 %v2721, 0.3275911
      %v2732 = vmul.f32 %v2722, 0.3275911
      %v2733 = vmul.f32 %v2723, 0.3275911
      %v2734 = vadd.f32 %v2724, 1.0
      %v2735 = vadd.f32 %v2725, 1.0
      %v2736 = vadd.f32 %v2726, 1.0
      %v2737 = vadd.f32 %v2727, 1.0
      %v2738 = vadd.f32 %v2728, 1.0
      %v2739 = vadd.f32 %v2729, 1.0
      %v2740 = vadd.f32 %v2730, 1.0
      %v2741 = vadd.f32 %v2731, 1.0
      %v2742 = vadd.f32 %v2732, 1.0
      %v2743 = vadd.f32 %v2733, 1.0
      %v2744 = vrcp.pop %v2734
      %v2745 = vmul.f32 1.0, %v2744
      %v2746 = vrcp.pop %v2735
      %v2747 = vmul.f32 1.0, %v2746
      %v2748 = vrcp.pop %v2736
      %v2749 = vmul.f32 1.0, %v2748
      %v2750 = vrcp.pop %v2737
      %v2751 = vmul.f32 1.0, %v2750
      %v2752 = vrcp.pop %v2738
      %v2753 = vmul.f32 1.0, %v2752
      %v2754 = vrcp.pop %v2739
      %v2755 = vmul.f32 1.0, %v2754
      %v2756 = vrcp.pop %v2740
      %v2757 = vmul.f32 1.0, %v2756
      %v2758 = vrcp.pop %v2741
      %v2759 = vmul.f32 1.0, %v2758
      %v2760 = vrcp.pop %v2742
      %v2761 = vmul.f32 1.0, %v2760
      %v2762 = vrcp.pop %v2743
      %v2763 = vmul.f32 1.0, %v2762
      %v2764 = vmul.f32 %v2745, 1.0614054
      %v2765 = vmul.f32 %v2747, 1.0614054
      %v2766 = vmul.f32 %v2749, 1.0614054
      %v2767 = vmul.f32 %v2751, 1.0614054
      %v2768 = vmul.f32 %v2753, 1.0614054
      %v2769 = vmul.f32 %v2755, 1.0614054
      %v2770 = vmul.f32 %v2757, 1.0614054
      %v2771 = vmul.f32 %v2759, 1.0614054
      %v2772 = vmul.f32 %v2761, 1.0614054
      %v2773 = vmul.f32 %v2763, 1.0614054
      %v2774 = vadd.f32 %v2764, -1.4531521
      %v2775 = vadd.f32 %v2765, -1.4531521
      %v2776 = vadd.f32 %v2766, -1.4531521
      %v2777 = vadd.f32 %v2767, -1.4531521
      %v2778 = vadd.f32 %v2768, -1.4531521
      %v2779 = vadd.f32 %v2769, -1.4531521
      %v2780 = vadd.f32 %v2770, -1.4531521
      %v2781 = vadd.f32 %v2771, -1.4531521
      %v2782 = vadd.f32 %v2772, -1.4531521
      %v2783 = vadd.f32 %v2773, -1.4531521
      %v2784 = vmul.f32 %v2774, %v2745
      %v2785 = vmul.f32 %v2775, %v2747
      %v2786 = vmul.f32 %v2776, %v2749
      %v2787 = vmul.f32 %v2777, %v2751
      %v2788 = vmul.f32 %v2778, %v2753
      %v2789 = vmul.f32 %v2779, %v2755
      %v2790 = vmul.f32 %v2780, %v2757
      %v2791 = vmul.f32 %v2781, %v2759
      %v2792 = vmul.f32 %v2782, %v2761
      %v2793 = vmul.f32 %v2783, %v2763
      %v2794 = vadd.f32 %v2784, 1.4214138
      %v2795 = vadd.f32 %v2785, 1.4214138
      %v2796 = vadd.f32 %v2786, 1.4214138
      %v2797 = vadd.f32 %v2787, 1.4214138
      %v2798 = vadd.f32 %v2788, 1.4214138
      %v2799 = vadd.f32 %v2789, 1.4214138
      %v2800 = vadd.f32 %v2790, 1.4214138
      %v2801 = vadd.f32 %v2791, 1.4214138
      %v2802 = vadd.f32 %v2792, 1.4214138
      %v2803 = vadd.f32 %v2793, 1.4214138
      %v2804 = vmul.f32 %v2794, %v2745
      %v2805 = vmul.f32 %v2795, %v2747
      %v2806 = vmul.f32 %v2796, %v2749
      %v2807 = vmul.f32 %v2797, %v2751
      %v2808 = vmul.f32 %v2798, %v2753
      %v2809 = vmul.f32 %v2799, %v2755
      %v2810 = vmul.f32 %v2800, %v2757
      %v2811 = vmul.f32 %v2801, %v2759
      %v2812 = vmul.f32 %v2802, %v2761
      %v2813 = vmul.f32 %v2803, %v2763
      %v2814 = vadd.f32 %v2804, -0.28449672
      %v2815 = vadd.f32 %v2805, -0.28449672
      %v2816 = vadd.f32 %v2806, -0.28449672
      %v2817 = vadd.f32 %v2807, -0.28449672
      %v2818 = vadd.f32 %v2808, -0.28449672
      %v2819 = vadd.f32 %v2809, -0.28449672
      %v2820 = vadd.f32 %v2810, -0.28449672
      %v2821 = vadd.f32 %v2811, -0.28449672
      %v2822 = vadd.f32 %v2812, -0.28449672
      %v2823 = vadd.f32 %v2813, -0.28449672
      %v2824 = vmul.f32 %v2814, %v2745
      %v2825 = vmul.f32 %v2815, %v2747
      %v2826 = vmul.f32 %v2816, %v2749
      %v2827 = vmul.f32 %v2817, %v2751
      %v2828 = vmul.f32 %v2818, %v2753
      %v2829 = vmul.f32 %v2819, %v2755
      %v2830 = vmul.f32 %v2820, %v2757
      %v2831 = vmul.f32 %v2821, %v2759
      %v2832 = vmul.f32 %v2822, %v2761
      %v2833 = vmul.f32 %v2823, %v2763
      %v2834 = vadd.f32 %v2824, 0.2548296
      %v2835 = vadd.f32 %v2825, 0.2548296
      %v2836 = vadd.f32 %v2826, 0.2548296
      %v2837 = vadd.f32 %v2827, 0.2548296
      %v2838 = vadd.f32 %v2828, 0.2548296
      %v2839 = vadd.f32 %v2829, 0.2548296
      %v2840 = vadd.f32 %v2830, 0.2548296
      %v2841 = vadd.f32 %v2831, 0.2548296
      %v2842 = vadd.f32 %v2832, 0.2548296
      %v2843 = vadd.f32 %v2833, 0.2548296
      %v2844 = vmul.f32 %v2834, %v2745
      %v2845 = vmul.f32 %v2835, %v2747
      %v2846 = vmul.f32 %v2836, %v2749
      %v2847 = vmul.f32 %v2837, %v2751
      %v2848 = vmul.f32 %v2838, %v2753
      %v2849 = vmul.f32 %v2839, %v2755
      %v2850 = vmul.f32 %v2840, %v2757
      %v2851 = vmul.f32 %v2841, %v2759
      %v2852 = vmul.f32 %v2842, %v2761
      %v2853 = vmul.f32 %v2843, %v2763
      %v2854 = vsub.f32 0.0, %v2714
      %v2855 = vsub.f32 0.0, %v2715
      %v2856 = vsub.f32 0.0, %v2716
      %v2857 = vsub.f32 0.0, %v2717
      %v2858 = vsub.f32 0.0, %v2718
      %v2859 = vsub.f32 0.0, %v2719
      %v2860 = vsub.f32 0.0, %v2720
      %v2861 = vsub.f32 0.0, %v2721
      %v2862 = vsub.f32 0.0, %v2722
      %v2863 = vsub.f32 0.0, %v2723
      %v2864 = vmul.f32 %v2854, %v2714
      %v2865 = vmul.f32 %v2855, %v2715
      %v2866 = vmul.f32 %v2856, %v2716
      %v2867 = vmul.f32 %v2857, %v2717
      %v2868 = vmul.f32 %v2858, %v2718
      %v2869 = vmul.f32 %v2859, %v2719
      %v2870 = vmul.f32 %v2860, %v2720
      %v2871 = vmul.f32 %v2861, %v2721
      %v2872 = vmul.f32 %v2862, %v2722
      %v2873 = vmul.f32 %v2863, %v2723
      %v2874 = vmul.f32 %v2864, 1.442695
      %v2875 = vpow.pop %v2874
      %v2876 = vmul.f32 %v2865, 1.442695
      %v2877 = vpow.pop %v2876
      %v2878 = vmul.f32 %v2866, 1.442695
      %v2879 = vpow.pop %v2878
      %v2880 = vmul.f32 %v2867, 1.442695
      %v2881 = vpow.pop %v2880
      %v2882 = vmul.f32 %v2868, 1.442695
      %v2883 = vpow.pop %v2882
      %v2884 = vmul.f32 %v2869, 1.442695
      %v2885 = vpow.pop %v2884
      %v2886 = vmul.f32 %v2870, 1.442695
      %v2887 = vpow.pop %v2886
      %v2888 = vmul.f32 %v2871, 1.442695
      %v2889 = vpow.pop %v2888
      %v2890 = vmul.f32 %v2872, 1.442695
      %v2891 = vpow.pop %v2890
      %v2892 = vmul.f32 %v2873, 1.442695
      %v2893 = vpow.pop %v2892
      %v2894 = vmul.f32 %v2844, %v2875
      %v2895 = vmul.f32 %v2845, %v2877
      %v2896 = vmul.f32 %v2846, %v2879
      %v2897 = vmul.f32 %v2847, %v2881
      %v2898 = vmul.f32 %v2848, %v2883
      %v2899 = vmul.f32 %v2849, %v2885
      %v2900 = vmul.f32 %v2850, %v2887
      %v2901 = vmul.f32 %v2851, %v2889
      %v2902 = vmul.f32 %v2852, %v2891
      %v2903 = vmul.f32 %v2853, %v2893
      %v2904 = vsub.f32 1.0, %v2894
      %v2905 = vsub.f32 1.0, %v2895
      %v2906 = vsub.f32 1.0, %v2896
      %v2907 = vsub.f32 1.0, %v2897
      %v2908 = vsub.f32 1.0, %v2898
      %v2909 = vsub.f32 1.0, %v2899
      %v2910 = vsub.f32 1.0, %v2900
      %v2911 = vsub.f32 1.0, %v2901
      %v2912 = vsub.f32 1.0, %v2902
      %v2913 = vsub.f32 1.0, %v2903
      %vm2914 = vcmp.ge.f32.partialorder %v2704, 0.0
      %vm2915 = vcmp.ge.f32.partialorder %v2705, 0.0
      %vm2916 = vcmp.ge.f32.partialorder %v2706, 0.0
      %vm2917 = vcmp.ge.f32.partialorder %v2707, 0.0
      %vm2918 = vcmp.ge.f32.partialorder %v2708, 0.0
      %vm2919 = vcmp.ge.f32.partialorder %v2709, 0.0
      %vm2920 = vcmp.ge.f32.partialorder %v2710, 0.0
      %vm2921 = vcmp.ge.f32.partialorder %v2711, 0.0
      %vm2922 = vcmp.ge.f32.partialorder %v2712, 0.0
      %vm2923 = vcmp.ge.f32.partialorder %v2713, 0.0
      %v2924 = vsub.f32 0.0, %v2904
      %v2925 = vsub.f32 0.0, %v2905
      %v2926 = vsub.f32 0.0, %v2906
      %v2927 = vsub.f32 0.0, %v2907
      %v2928 = vsub.f32 0.0, %v2908
      %v2929 = vsub.f32 0.0, %v2909
      %v2930 = vsub.f32 0.0, %v2910
      %v2931 = vsub.f32 0.0, %v2911
      %v2932 = vsub.f32 0.0, %v2912
      %v2933 = vsub.f32 0.0, %v2913
      %v2934 = vsel %vm2914, %v2904, %v2924
      %v2935 = vsel %vm2915, %v2905, %v2925
      %v2936 = vsel %vm2916, %v2906, %v2926
      %v2937 = vsel %vm2917, %v2907, %v2927
      %v2938 = vsel %vm2918, %v2908, %v2928
      %v2939 = vsel %vm2919, %v2909, %v2929
      %v2940 = vsel %vm2920, %v2910, %v2930
      %v2941 = vsel %vm2921, %v2911, %v2931
      %v2942 = vsel %vm2922, %v2912, %v2932
      %v2943 = vsel %vm2923, %v2913, %v2933
      %v2944 = vadd.f32 %v2934, 1.0
      %v2945 = vadd.f32 %v2935, 1.0
      %v2946 = vadd.f32 %v2936, 1.0
      %v2947 = vadd.f32 %v2937, 1.0
      %v2948 = vadd.f32 %v2938, 1.0
      %v2949 = vadd.f32 %v2939, 1.0
      %v2950 = vadd.f32 %v2940, 1.0
      %v2951 = vadd.f32 %v2941, 1.0
      %v2952 = vadd.f32 %v2942, 1.0
      %v2953 = vadd.f32 %v2943, 1.0
      %v2954 = vmul.f32 %v2694, %v2944
      %v2955 = vmul.f32 %v2695, %v2945
      %v2956 = vmul.f32 %v2696, %v2946
      %v2957 = vmul.f32 %v2697, %v2947
      %v2958 = vmul.f32 %v2698, %v2948
      %v2959 = vmul.f32 %v2699, %v2949
      %v2960 = vmul.f32 %v2700, %v2950
      %v2961 = vmul.f32 %v2701, %v2951
      %v2962 = vmul.f32 %v2702, %v2952
      %v2963 = vmul.f32 %v2703, %v2953
      %v2964 = vpack.c.bf16 %v2955, %v2954
      %v2965 = vpack.c.bf16 %v2957, %v2956
      %v2966 = vpack.c.bf16 %v2959, %v2958
      %v2967 = vpack.c.bf16 %v2961, %v2960
      %v2968 = vpack.c.bf16 %v2963, %v2962
      %v2969 = vld [vmem:[%s692] sm:$0xf]
      %v2970 = vld [vmem:[%s692 + $0x4] sm:$0xf]
      %v2971 = vld [vmem:[%s692 + $0x8] sm:$0xf]
      %v2972 = vld [vmem:[%s692 + $0xc] sm:$0xf]
      %v2973 = vld [vmem:[%s692 + $0x10] sm:$0xf]
      %v2974 = vld [vmem:[%s692 + $0x14] sm:$0xf]
      %v2975 = vld [vmem:[%s692 + $0x18] sm:$0xf]
      %v2976 = vld [vmem:[%s692 + $0x1c] sm:$0xf]
      %v2977 = vld [vmem:[%s692 + $0x20] sm:$0xf]
      %v2978 = vld [vmem:[%s692 + $0x24] sm:$0xf]
      %v2979 = vld [vmem:[%s692 + $0x28] sm:$0xf]
      %v2980 = vld [vmem:[%s692 + $0x2c] sm:$0xf]
      %v2981 = vld [vmem:[%s692 + $0x30] sm:$0xf]
      %v2982 = vld [vmem:[%s692 + $0x34] sm:$0xf]
      %v2983 = vld [vmem:[%s692 + $0x38] sm:$0xf]
      %v2984 = vld [vmem:[%s692 + $0x3c] sm:$0xf]
      %v3001 = vunpack.c.l.b16 %v2969
      %v3002 = vunpack.c.l.b16 %v2970
      %v3003 = vunpack.c.l.b16 %v2971
      %v3004 = vunpack.c.l.b16 %v2972
      %v3005 = vunpack.c.l.b16 %v2973
      %v3006 = vunpack.c.l.b16 %v2974
      %v3007 = vunpack.c.l.b16 %v2975
      %v3008 = vunpack.c.l.b16 %v2976
      %v3009 = vunpack.c.l.b16 %v2977
      %v3010 = vunpack.c.l.b16 %v2978
      %v3011 = vunpack.c.l.b16 %v2979
      %v3012 = vunpack.c.l.b16 %v2980
      %v3013 = vunpack.c.l.b16 %v2981
      %v3014 = vunpack.c.l.b16 %v2982
      %v3015 = vunpack.c.l.b16 %v2983
      %v3016 = vunpack.c.l.b16 %v2984
      %v3017 = vpack.c.b16 %v3002, %v3001
      %v3018 = vpack.c.b16 %v3004, %v3003
      %v3019 = vpack.c.b16 %v3006, %v3005
      %v3020 = vpack.c.b16 %v3008, %v3007
      %v3021 = vpack.c.b16 %v3010, %v3009
      %v3022 = vpack.c.b16 %v3012, %v3011
      %v3023 = vpack.c.b16 %v3014, %v3013
      %v3024 = vpack.c.b16 %v3016, %v3015
      %3033 = vmatprep.subr.bf16.mxu0 0
      %3034 = vmatpush1.bf16.msra.mxu0 %v3024
      %3035 = vmatprep.subr.bf16.mxu0 0
      %3036 = vmatpush1.bf16.msra.mxu0 %v3023
      %3037 = vmatprep.subr.bf16.mxu0 0
      %3038 = vmatpush1.bf16.msra.mxu0 %v3022
      %3039 = vmatprep.subr.bf16.mxu0 0
      %3040 = vmatpush1.bf16.msra.mxu0 %v3021
      %3041 = vmatprep.subr.bf16.mxu0 0
      %3042 = vmatpush1.bf16.msra.mxu0 %v3020
      %3043 = vmatprep.subr.bf16.mxu0 0
      %3044 = vmatpush1.bf16.msra.mxu0 %v3019
      %3045 = vmatprep.subr.bf16.mxu0 0
      %3046 = vmatpush1.bf16.msra.mxu0 %v3018
      %3047 = vmatprep.subr.bf16.mxu0 0
      %3048 = vmatpush1.bf16.msra.mxu0 %v3017
      %3049 = vmatprep.subr.bf16.mxu0 0
      %3050 = vmatpush2.bf16.msra.mxu0 0
      %3051 = vmatprep.subr.bf16.mxu0 0
      %3052 = vmatpush2.bf16.msra.mxu0 0
      %3053 = vmatprep.subr.bf16.mxu0 0
      %3054 = vmatpush2.bf16.msra.mxu0 0
      %3055 = vmatprep.subr.bf16.mxu0 0
      %3056 = vmatpush2.bf16.msra.mxu0 0
      %3057 = vmatprep.subr.bf16.mxu0 0
      %3058 = vmatpush2.bf16.msra.mxu0 0
      %3059 = vmatprep.subr.bf16.mxu0 0
      %3060 = vmatpush2.bf16.msra.mxu0 0
      %3061 = vmatprep.subr.bf16.mxu0 0
      %3062 = vmatpush2.bf16.msra.mxu0 0
      %3063 = vmatprep.subr.bf16.mxu0 0
      %3064 = vmatpush2.bf16.msra.mxu0 0
      %3065 = vmatprep.mubr.bf16.mxu0 0
      %3066 = vmatmul.mubr.bf16.gmra.mxu0 %v2964
      %v3067 = vpop.f32.mrf.mxu0
      %v3068 = vadd.f32 0.0, %v3067
      %v3069 = vpop.f32.mrf.mxu0
      %v3070 = vpop.f32.mrf.mxu0
      %v3071 = vadd.f32 0.0, %v3070
      %v3072 = vpop.f32.mrf.mxu0
      %3073 = vmatprep.mubr.bf16.mxu0 0
      %3074 = vmatmul.mubr.bf16.gmra.mxu0 %v2965
      %v3075 = vpop.f32.mrf.mxu0
      %v3076 = vadd.f32 0.0, %v3075
      %v3077 = vpop.f32.mrf.mxu0
      %v3078 = vpop.f32.mrf.mxu0
      %v3079 = vadd.f32 0.0, %v3078
      %v3080 = vpop.f32.mrf.mxu0
      %3081 = vmatprep.mubr.bf16.mxu0 0
      %3082 = vmatmul.mubr.bf16.gmra.mxu0 %v2966
      %v3083 = vpop.f32.mrf.mxu0
      %v3084 = vadd.f32 0.0, %v3083
      %v3085 = vpop.f32.mrf.mxu0
      %v3086 = vpop.f32.mrf.mxu0
      %v3087 = vadd.f32 0.0, %v3086
      %v3088 = vpop.f32.mrf.mxu0
      %3089 = vmatprep.mubr.bf16.mxu0 0
      %3090 = vmatmul.mubr.bf16.gmra.mxu0 %v2967
      %v3091 = vpop.f32.mrf.mxu0
      %v3092 = vadd.f32 0.0, %v3091
      %v3093 = vpop.f32.mrf.mxu0
      %v3094 = vpop.f32.mrf.mxu0
      %v3095 = vadd.f32 0.0, %v3094
      %v3096 = vpop.f32.mrf.mxu0
      %3097 = vmatprep.mubr.bf16.mxu0 0
      %3098 = vmatmul.mubr.bf16.gmra.mxu0 %v2968
      %v3099 = vpop.f32.mrf.mxu0
      %v3100 = vadd.f32 0.0, %v3099
      %v3101 = vpop.f32.mrf.mxu0
      %v3102 = vpop.f32.mrf.mxu0
      %v3103 = vadd.f32 0.0, %v3102
      %v3104 = vpop.f32.mrf.mxu0
      %3105 = vdwg.mxu0
      %v3106 = vadd.f32 %v2404, %v3068
      %v3107 = vadd.f32 %v2405, %v3071
      %v3108 = vadd.f32 %v2406, %v3076
      %v3109 = vadd.f32 %v2407, %v3079
      %v3110 = vadd.f32 %v2408, %v3084
      %v3111 = vadd.f32 %v2409, %v3087
      %v3112 = vadd.f32 %v2410, %v3092
      %v3113 = vadd.f32 %v2411, %v3095
      %v3114 = vadd.f32 %v2412, %v3100
      %v3115 = vadd.f32 %v2413, %v3103
      %v3116 = vld [vmem:[%s695] sm:$0x1]
      %v3118 = vlaneseq
      %v3119 = vshrl.u32 %v3118, 7
      %v3120 = vsub.s32 0, %v3119
      %v3121 = vrot.slane %v3116, %v3120
      %v3123 = vadd.f32 %v3106, %v3121
      %v3124 = vadd.f32 %v3107, %v3121
      %v3125 = vadd.f32 %v3108, %v3121
      %v3126 = vadd.f32 %v3109, %v3121
      %v3127 = vadd.f32 %v3110, %v3121
      %v3128 = vadd.f32 %v3111, %v3121
      %v3129 = vadd.f32 %v3112, %v3121
      %v3130 = vadd.f32 %v3113, %v3121
      %v3131 = vadd.f32 %v3114, %v3121
      %v3132 = vadd.f32 %v3115, %v3121
      %3133 = vst.msk [vmem:[#allocation2] sm:$0xff] %vm760, %v3123
      %3134 = vst.msk [vmem:[#allocation2 + $0x8] sm:$0xff] %vm760, %v3124
      %3135 = vst.msk [vmem:[#allocation2 + $0x10] sm:$0xff] %vm760, %v3125
      %3136 = vst.msk [vmem:[#allocation2 + $0x18] sm:$0xff] %vm760, %v3126
      %3137 = vst.msk [vmem:[#allocation2 + $0x20] sm:$0xff] %vm760, %v3127
      %3138 = vst.msk [vmem:[#allocation2 + $0x28] sm:$0xff] %vm760, %v3128
      %3139 = vst.msk [vmem:[#allocation2 + $0x30] sm:$0xff] %vm760, %v3129
      %3140 = vst.msk [vmem:[#allocation2 + $0x38] sm:$0xff] %vm760, %v3130
      %3141 = vst.msk [vmem:[#allocation2 + $0x40] sm:$0xff] %vm760, %v3131
      %3142 = vst.msk [vmem:[#allocation2 + $0x48] sm:$0xff] %vm760, %v3132
      %p3143 = scmp.eq.s32.totalorder %s31, 1
      // Predicated region
      $region85: #{lorat_forward.4} parent=79 // pred_check
        %p3144 = pneg %p3143
      $region86: #{lorat_forward.4} parent=79 // pred_check_branch
        %3146 = sbr.rel (%p3144) target = $region88
      $region87: #{lorat_forward.4} parent=79 // pred_region
        %3147 = vst.msk [vmem:[%s700] sm:$0xff] %vm760, %v3123
        %3148 = vst.msk [vmem:[%s700 + $0x8] sm:$0xff] %vm760, %v3124
        %3149 = vst.msk [vmem:[%s700 + $0x10] sm:$0xff] %vm760, %v3125
        %3150 = vst.msk [vmem:[%s700 + $0x18] sm:$0xff] %vm760, %v3126
        %3151 = vst.msk [vmem:[%s700 + $0x20] sm:$0xff] %vm760, %v3127
        %3152 = vst.msk [vmem:[%s700 + $0x28] sm:$0xff] %vm760, %v3128
        %3153 = vst.msk [vmem:[%s700 + $0x30] sm:$0xff] %vm760, %v3129
        %3154 = vst.msk [vmem:[%s700 + $0x38] sm:$0xff] %vm760, %v3130
        %3155 = vst.msk [vmem:[%s700 + $0x40] sm:$0xff] %vm760, %v3131
        %3156 = vst.msk [vmem:[%s700 + $0x48] sm:$0xff] %vm760, %v3132
      $region88: #{lorat_forward.4} parent=79 // pred_fallthru
        _
      %s3157 = smul.u32 10, %s30
      %p3158 = scmp.lt.s32.totalorder %s3157, 19
      %s3159 = scalar_select %p3158, %s3157, 19
      %s3160 = smul.addr %s3159, 8
      %s3161 = scalar_lea.vmem %s15, %s3160
      // Predicated region
      $region89: #{lorat_forward.4} parent=79 // pred_check
        %p3162 = pneg %p436
      $region90: #{lorat_forward.4} parent=79 // pred_check_branch
        %3164 = sbr.rel (%p3162) target = $region92
      $region91: #{lorat_forward.4} parent=79 // pred_region
        %s3165 = smul.u32 10, %s30
      $region92: #{lorat_forward.4} parent=79 // pred_fallthru
        _
    $region80: #{lorat_forward.4} parent=5 // pred_fallthru
      _
    %p3166 = scmp.le.s32.totalorder 2, %s21
    // Predicated region
    $region93: #{lorat_forward.4} parent=5 // pred_check
      %p3167 = pneg %p3166
    $region94: #{lorat_forward.4} parent=5 // pred_check_branch
      %3169 = sbr.rel (%p3167) target = $region96
    $region95: #{lorat_forward.4} parent=5 // pred_region
      %s3170 = ssub.s32 %s21, 2
      // Predicated region
      $region97: #{lorat_forward.4} parent=95 // pred_check
        %p3171 = pneg %p442
      $region98: #{lorat_forward.4} parent=95 // pred_check_branch
        %3173 = sbr.rel (%p3171) target = $region100
      $region99: #{lorat_forward.4} parent=95 // pred_region
        %s3174 = smul.u32 10, %s32
        %p3175 = scmp.lt.s32.totalorder %s3174, 19
        %s3176 = scalar_select %p3175, %s3174, 19
        %s3177 = smul.addr %s3176, 8
        %s3178 = scalar_lea.vmem %s15, %s3177
      $region100: #{lorat_forward.4} parent=95 // pred_fallthru
        _
    $region96: #{lorat_forward.4} parent=5 // pred_fallthru
      _
  $region6: #{lorat_forward.4} parent=0 // loop_footer
    %s25 = sadd.s32 1, %s21
  $region7: #{lorat_forward.4} parent=0 // loop_footer_branch
    %20 = sbr.rel target = $region3
  $region8: #{lorat_forward.4} parent=0 // loop_exit
    _

</llo_original>
